<compile_context>
chip_gen: v7x
topology: tpu7x:2x2x1
jax: 0.10.0
libtpu: 0.0.40
codegen_flags: <defaults>
</compile_context>

<pallas_src>
import functools
import math

import jax
import jax.numpy as jnp
import numpy as np
from jax.experimental import pallas as pl
from jax.experimental.pallas import tpu as pltpu


def _round_up(x, m):
    return (x + m - 1) // m * m


# =============================================================================
# Graph preprocessing (host-side, ONCE per model — hoisted out of forward)
# =============================================================================
def prepare_graph(graph, *, tm=1024, tk=1024, g_dtype=jnp.bfloat16):
    """Pad + cast the normalized adjacency and extract its block-sparse tile
    structure.  tm: output-row tile, tk: reduction tile (both multiples of 128).
    """
    assert tm % 128 == 0 and tk % 128 == 0
    n = graph.shape[0]
    n_pad = _round_up(n, math.lcm(tm, tk))

    g_np = np.zeros((n_pad, n_pad), np.float32)
    g_np[:n, :n] = np.asarray(graph, np.float32)

    n_i, n_k = n_pad // tm, n_pad // tk
    # (n_i, n_k) boolean mask: does tile (i, k) contain any nonzero?
    tile_nz = g_np.reshape(n_i, tm, n_k, tk).any(axis=(1, 3))

    max_nnz = max(1, int(tile_nz.sum(axis=1).max()))
    nz_k = np.zeros((n_i, max_nnz), np.int32)
    nz_count = np.zeros((n_i,), np.int32)
    for i in range(n_i):
        ks = np.nonzero(tile_nz[i])[0].astype(np.int32)
        nz_count[i] = len(ks)
        if len(ks):
            nz_k[i, : len(ks)] = ks
            # Pad with the last valid k: the repeated block index lets the
            # pipeline skip the DMA on padded steps (the dot is pl.when-gated).
            nz_k[i, len(ks):] = ks[-1]

    return dict(
        g=jnp.asarray(g_np, dtype=g_dtype),
        nz_k=jnp.asarray(nz_k.reshape(-1)),      # flattened 1-D (SMEM-friendly)
        nz_count=jnp.asarray(nz_count),
        n=n, n_pad=n_pad, tm=tm, tk=tk, max_nnz=max_nnz,
    )


# =============================================================================
# Kernel 1: one LightGCN propagation layer (the `computer()` hot path)
#   E_l = G @ E_{l-1}  (block-sparse over nonzero G tiles, bf16 MXU, f32 acc)
#   running_sum_l = running_sum_{l-1} + E_l  (fused writeback at the last step)
# =============================================================================
def _layer_kernel(nz_k_ref, nz_cnt_ref, g_ref, e_ref, acc_in_ref,
                  e_out_ref, acc_out_ref, mm_acc_ref):
    i = pl.program_id(0)
    j = pl.program_id(1)

    @pl.when(j == 0)
    def _():
        mm_acc_ref[...] = jnp.zeros_like(mm_acc_ref)

    # Only accumulate listed (nonzero) tiles for this row block.
    @pl.when(j < nz_cnt_ref[i])
    def _():
        mm_acc_ref[...] += jnp.dot(g_ref[...], e_ref[...],
                                   preferred_element_type=jnp.float32)

    @pl.when(j == pl.num_programs(1) - 1)
    def _():
        e_new = mm_acc_ref[...]
        e_out_ref[...] = e_new.astype(e_out_ref.dtype)     # bf16 inter-layer E
        acc_out_ref[...] = acc_in_ref[...] + e_new         # fused running sum


def _propagate_layer(g, nz_k, nz_count, e, acc, *, tm, tk, max_nnz):
    n_pad, d = e.shape
    grid = (n_pad // tm, max_nnz)

    def g_map(i, j, nz_k_ref, nz_cnt_ref):
        return (i, nz_k_ref[i * max_nnz + j])

    def e_map(i, j, nz_k_ref, nz_cnt_ref):
        return (nz_k_ref[i * max_nnz + j], 0)

    def row_map(i, j, nz_k_ref, nz_cnt_ref):
        return (i, 0)

    return pl.pallas_call(
        _layer_kernel,
        out_shape=(
            jax.ShapeDtypeStruct((n_pad, d), e.dtype),       # E_l  (bf16)
            jax.ShapeDtypeStruct((n_pad, d), jnp.float32),   # running sum
        ),
        grid_spec=pltpu.PrefetchScalarGridSpec(
            num_scalar_prefetch=2,                  # nz_k, nz_count -> SMEM
            grid=grid,
            in_specs=[
                pl.BlockSpec((tm, tk), g_map),      # nonzero G tiles only
                pl.BlockSpec((tk, d), e_map),       # matching E_{l-1} slabs
                pl.BlockSpec((tm, d), row_map),     # running sum in
            ],
            out_specs=(
                pl.BlockSpec((tm, d), row_map),     # E_l
                pl.BlockSpec((tm, d), row_map),     # running sum out
            ),
            scratch_shapes=[pltpu.VMEM((tm, d), jnp.float32)],
        ),
        compiler_params=pltpu.CompilerParams(
            dimension_semantics=("parallel", "arbitrary"),
            vmem_limit_bytes=48 * 1024 * 1024,      # safe on v5e/v6e/v7x
        ),
    )(nz_k, nz_count, g, e, acc)


def lightgcn_propagate(gdata, all_emb, n_layers):
    """light_out = mean_l (G^l @ E0), l = 0..n_layers (rows padded)."""
    n, n_pad = gdata["n"], gdata["n_pad"]
    tm, tk, max_nnz = gdata["tm"], gdata["tk"], gdata["max_nnz"]
    d = all_emb.shape[1]

    e0_f32 = jnp.pad(all_emb.astype(jnp.float32), ((0, n_pad - n), (0, 0)))
    e = e0_f32.astype(jnp.bfloat16)          # inter-layer E stored in bf16
    acc = jnp.zeros((n_pad, d), jnp.float32)
    for _ in range(n_layers):
        e, acc = _propagate_layer(gdata["g"], gdata["nz_k"], gdata["nz_count"],
                                  e, acc, tm=tm, tk=tk, max_nnz=max_nnz)
    # Mean over the (n_layers + 1) embeddings; padded rows stay zero.
    return (e0_f32 + acc) / jnp.float32(n_layers + 1)


# =============================================================================
# Kernel 2: forward() scoring — per-pair dot product over the latent dim
# =============================================================================
def _score_kernel(u_ref, i_ref, out_ref):
    prod = u_ref[...] * i_ref[...]
    out_ref[...] = jnp.sum(prod, axis=1, keepdims=True)   # (TB, 1) per block


def lightgcn_score(light_out, user_rows, item_rows, *, tile_b=128):
    b = user_rows.shape[0]
    d = light_out.shape[1]
    b_pad = _round_up(max(b, 1), tile_b)
    u_idx = jnp.pad(user_rows.astype(jnp.int32), (0, b_pad - b))
    i_idx = jnp.pad(item_rows.astype(jnp.int32), (0, b_pad - b))

    # Row gather straight from the combined table (item rows already offset by
    # num_users), kept row-major — no wrapper-side transpose/relayout.
    u_g = jnp.take(light_out, u_idx, axis=0)   # (B_pad, D) f32
    i_g = jnp.take(light_out, i_idx, axis=0)   # (B_pad, D) f32

    # TODO(synk): for very large batches, fuse the gather into the kernel
    # (light_out in pl.ANY + scalar-prefetched indices + per-row DMA); for tiny
    # batches a plain einsum('bd,bd->b') is cheapest.
    scores = pl.pallas_call(
        _score_kernel,
        out_shape=jax.ShapeDtypeStruct((b_pad, 1), jnp.float32),
        grid=(b_pad // tile_b,),
        in_specs=[
            pl.BlockSpec((tile_b, d), lambda bb: (bb, 0)),
            pl.BlockSpec((tile_b, d), lambda bb: (bb, 0)),
        ],
        out_specs=pl.BlockSpec((tile_b, 1), lambda bb: (bb, 0)),
        compiler_params=pltpu.CompilerParams(
            dimension_semantics=("parallel",),
        ),
    )(u_g, i_g)
    return scores[:b, 0]


# =============================================================================
# Full forward (glue in plain JAX)
# =============================================================================
def lightgcn_forward(user_emb, item_emb, users, items, *, gdata, n_layers,
                     tile_b=128):
    all_emb = jnp.concatenate([user_emb, item_emb], axis=0)
    light_out = lightgcn_propagate(gdata, all_emb, n_layers)
    num_users = user_emb.shape[0]
    # Item rows live at index + num_users inside the combined light_out table.
    return lightgcn_score(light_out, users, items + num_users, tile_b=tile_b)


# =============================================================================
# Pure-JAX reference (mirrors torch semantics, full f32)
# =============================================================================
def reference_forward(user_emb, item_emb, graph, users, items, n_layers):
    all_emb = jnp.concatenate([user_emb, item_emb], axis=0)
    embs = [all_emb]
    e = all_emb
    for _ in range(n_layers):
        e = graph @ e
        embs.append(e)
    light_out = jnp.mean(jnp.stack(embs, axis=1), axis=1)
    nu = user_emb.shape[0]
    ue = light_out[:nu][users]
    ie = light_out[nu:][items]
    return jnp.sum(ue * ie, axis=1)


def build_normalized_graph(key, num_users, num_items):
    # Synthetic bipartite interaction matrix R, then D^{-1/2} A D^{-1/2}
    r = (jax.random.uniform(key, (num_users, num_items)) < 0.05).astype(jnp.float32)
    n = num_users + num_items
    a = jnp.zeros((n, n), jnp.float32)
    a = a.at[:num_users, num_users:].set(r)
    a = a.at[num_users:, :num_users].set(r.T)
    deg = jnp.sum(a, axis=1)
    d_inv_sqrt = jnp.where(deg > 0, 1.0 / jnp.sqrt(jnp.maximum(deg, 1e-12)), 0.0)
    return (a * d_inv_sqrt[:, None]) * d_inv_sqrt[None, :]


if __name__ == "__main__":
    # config: latent_dim_rec=128, lightGCN_n_layers=3, dropout=0, A_split=False
    num_users, num_items, latent_dim, n_layers = 300, 280, 128, 3
    batch = 200

    key = jax.random.PRNGKey(0)
    k_u, k_i, k_g, k_bu, k_bi = jax.random.split(key, 5)

    # nn.init.normal_(std=0.1) equivalents (deterministic, in-script)
    user_emb = 0.1 * jax.random.normal(k_u, (num_users, latent_dim), jnp.float32)
    item_emb = 0.1 * jax.random.normal(k_i, (num_items, latent_dim), jnp.float32)
    graph = build_normalized_graph(k_g, num_users, num_items)

    users = jax.random.randint(k_bu, (batch,), 0, num_users, dtype=jnp.int32)
    items = jax.random.randint(k_bi, (batch,), 0, num_items, dtype=jnp.int32)

    # Graph preprocessing (pad + bf16 cast + block-sparse tile lists) done ONCE,
    # outside the jitted forward.  Small tiles for the tiny demo shapes; real
    # deployments use tm/tk ~1024-2048 (see per-generation notes at the top).
    gdata = prepare_graph(graph, tm=256, tk=256)

    fwd = jax.jit(functools.partial(lightgcn_forward, gdata=gdata,
                                    n_layers=n_layers, tile_b=128))
    gamma = fwd(user_emb, item_emb, users, items)
    gamma = jax.block_until_ready(gamma)

    ref = reference_forward(user_emb, item_emb, graph, users, items, n_layers)
    assert gamma.shape == (batch,)
    # bf16 graph / bf16 E on the MXU with f32 accumulation vs full-f32 reference.
    assert jnp.allclose(gamma, ref, rtol=2e-2, atol=2e-3), (gamma, ref)

    print("KERNEL_OK")
</pallas_src>

<mosaic_0001>
module attributes {stable_mosaic.version = 11 : i64} {
  func.func @_layer_kernel(%arg0: i32, %arg1: i32, %arg2: memref<9xi32, #tpu.memory_space<smem>>, %arg3: memref<3xi32, #tpu.memory_space<smem>>, %arg4: memref<256x256xbf16, #tpu.memory_space<vmem>>, %arg5: memref<256x128xbf16, #tpu.memory_space<vmem>>, %arg6: memref<256x128xf32, #tpu.memory_space<vmem>>, %arg7: memref<256x128xbf16, #tpu.memory_space<vmem>>, %arg8: memref<256x128xf32, #tpu.memory_space<vmem>>, %arg9: memref<256x128xf32, #tpu.memory_space<vmem>>) attributes {dimension_semantics = [#tpu.dimension_semantics<parallel>, #tpu.dimension_semantics<arbitrary>], iteration_bounds = array<i64: 3, 3>, scalar_prefetch = 2 : i64, scratch_operands = 1 : i64, tpu.core_type = #tpu.core_type<tc>, window_params = [{transform_indices = @transform_0, window_bounds = array<i64: 256, 256>}, {transform_indices = @transform_1, window_bounds = array<i64: 256, 128>}, {transform_indices = @transform_2, window_bounds = array<i64: 256, 128>}, {transform_indices = @transform_3, window_bounds = array<i64: 256, 128>}, {transform_indices = @transform_4, window_bounds = array<i64: 256, 128>}]} {
    %c0_i32 = arith.constant 0 : i32
    %0 = arith.cmpi eq, %arg1, %c0_i32 : i32
    %1 = arith.extui %0 : i1 to i32
    %c0_i32_0 = arith.constant 0 : i32
    %2 = arith.cmpi ne, %1, %c0_i32_0 : i32
    scf.if %2 {
      %cst = arith.constant 0.000000e+00 : f32
      %11 = vector.broadcast %cst : f32 to vector<256x128xf32>
      %c0 = arith.constant 0 : index
      %c0_3 = arith.constant 0 : index
      %12 = vector.load %arg9[%c0, %c0_3] : memref<256x128xf32, #tpu.memory_space<vmem>>, vector<256x128xf32>
      tpu.vector_store %arg9[%c0, %c0_3], %11 {strides = array<i32>} : memref<256x128xf32, #tpu.memory_space<vmem>>, vector<256x128xf32>,
    } else {
    }
    %3 = arith.index_cast %arg0 : i32 to index
    %4 = memref.load %arg3[%3] : memref<3xi32, #tpu.memory_space<smem>>
    %5 = arith.cmpi slt, %arg1, %4 : i32
    %6 = arith.extui %5 : i1 to i32
    %c0_i32_1 = arith.constant 0 : i32
    %7 = arith.cmpi ne, %6, %c0_i32_1 : i32
    scf.if %7 {
      %c0 = arith.constant 0 : index
      %c0_3 = arith.constant 0 : index
      %11 = vector.load %arg9[%c0, %c0_3] : memref<256x128xf32, #tpu.memory_space<vmem>>, vector<256x128xf32>
      %c0_4 = arith.constant 0 : index
      %c0_5 = arith.constant 0 : index
      %12 = vector.load %arg4[%c0_4, %c0_5] : memref<256x256xbf16, #tpu.memory_space<vmem>>, vector<256x256xbf16>
      %c0_6 = arith.constant 0 : index
      %c0_7 = arith.constant 0 : index
      %13 = vector.load %arg5[%c0_6, %c0_7] : memref<256x128xbf16, #tpu.memory_space<vmem>>, vector<256x128xbf16>
      %cst = arith.constant dense<0.000000e+00> : vector<256x128xf32>
      %14 = tpu.matmul %12, %13, %cst {dimension_numbers = #tpu.dot_dimension_numbers<[1], [0], [0], [1], [0, 0, 1, 1], [], []>} : vector<256x256xbf16>, vector<256x128xbf16>, vector<256x128xf32> -> vector<256x128xf32>
      %15 = arith.addf %11, %14 : vector<256x128xf32>
      %c0_8 = arith.constant 0 : index
      %c0_9 = arith.constant 0 : index
      %16 = vector.load %arg9[%c0_8, %c0_9] : memref<256x128xf32, #tpu.memory_space<vmem>>, vector<256x128xf32>
      tpu.vector_store %arg9[%c0_8, %c0_9], %15 {strides = array<i32>} : memref<256x128xf32, #tpu.memory_space<vmem>>, vector<256x128xf32>,
    } else {
    }
    %c2_i32 = arith.constant 2 : i32
    %8 = arith.cmpi eq, %arg1, %c2_i32 : i32
    %9 = arith.extui %8 : i1 to i32
    %c0_i32_2 = arith.constant 0 : i32
    %10 = arith.cmpi ne, %9, %c0_i32_2 : i32
    scf.if %10 {
      %c0 = arith.constant 0 : index
      %c0_3 = arith.constant 0 : index
      %11 = vector.load %arg9[%c0, %c0_3] : memref<256x128xf32, #tpu.memory_space<vmem>>, vector<256x128xf32>
      %12 = arith.truncf %11 : vector<256x128xf32> to vector<256x128xbf16>
      %c0_4 = arith.constant 0 : index
      %c0_5 = arith.constant 0 : index
      %13 = vector.load %arg7[%c0_4, %c0_5] : memref<256x128xbf16, #tpu.memory_space<vmem>>, vector<256x128xbf16>
      tpu.vector_store %arg7[%c0_4, %c0_5], %12 {strides = array<i32>} : memref<256x128xbf16, #tpu.memory_space<vmem>>, vector<256x128xbf16>,
      %c0_6 = arith.constant 0 : index
      %c0_7 = arith.constant 0 : index
      %14 = vector.load %arg6[%c0_6, %c0_7] : memref<256x128xf32, #tpu.memory_space<vmem>>, vector<256x128xf32>
      %15 = arith.addf %14, %11 : vector<256x128xf32>
      %c0_8 = arith.constant 0 : index
      %c0_9 = arith.constant 0 : index
      %16 = vector.load %arg8[%c0_8, %c0_9] : memref<256x128xf32, #tpu.memory_space<vmem>>, vector<256x128xf32>
      tpu.vector_store %arg8[%c0_8, %c0_9], %15 {strides = array<i32>} : memref<256x128xf32, #tpu.memory_space<vmem>>, vector<256x128xf32>,
    } else {
    }
    return
  }
  func.func @transform_0(%arg0: i32, %arg1: i32, %arg2: memref<9xi32, #tpu.memory_space<smem>>, %arg3: memref<3xi32, #tpu.memory_space<smem>>) -> (i32, i32) {
    %c3_i32 = arith.constant 3 : i32
    %0 = arith.muli %arg0, %c3_i32 : i32
    %1 = arith.addi %0, %arg1 : i32
    %2 = arith.index_cast %1 : i32 to index
    %3 = memref.load %arg2[%2] : memref<9xi32, #tpu.memory_space<smem>>
    %c0_i32 = arith.constant 0 : i32
    return %arg0, %3 : i32, i32
  }
  func.func @transform_1(%arg0: i32, %arg1: i32, %arg2: memref<9xi32, #tpu.memory_space<smem>>, %arg3: memref<3xi32, #tpu.memory_space<smem>>) -> (i32, i32) {
    %c3_i32 = arith.constant 3 : i32
    %0 = arith.muli %arg0, %c3_i32 : i32
    %1 = arith.addi %0, %arg1 : i32
    %2 = arith.index_cast %1 : i32 to index
    %3 = memref.load %arg2[%2] : memref<9xi32, #tpu.memory_space<smem>>
    %c0_i32 = arith.constant 0 : i32
    %c0_i32_0 = arith.constant 0 : i32
    return %3, %c0_i32 : i32, i32
  }
  func.func @transform_2(%arg0: i32, %arg1: i32, %arg2: memref<9xi32, #tpu.memory_space<smem>>, %arg3: memref<3xi32, #tpu.memory_space<smem>>) -> (i32, i32) {
    %c0_i32 = arith.constant 0 : i32
    %c0_i32_0 = arith.constant 0 : i32
    return %arg0, %c0_i32 : i32, i32
  }
  func.func @transform_3(%arg0: i32, %arg1: i32, %arg2: memref<9xi32, #tpu.memory_space<smem>>, %arg3: memref<3xi32, #tpu.memory_space<smem>>) -> (i32, i32) {
    %c0_i32 = arith.constant 0 : i32
    %c0_i32_0 = arith.constant 0 : i32
    return %arg0, %c0_i32 : i32, i32
  }
  func.func @transform_4(%arg0: i32, %arg1: i32, %arg2: memref<9xi32, #tpu.memory_space<smem>>, %arg3: memref<3xi32, #tpu.memory_space<smem>>) -> (i32, i32) {
    %c0_i32 = arith.constant 0 : i32
    %c0_i32_0 = arith.constant 0 : i32
    return %arg0, %c0_i32 : i32, i32
  }
}

module attributes {stable_mosaic.version = 11 : i64} {
  func.func @_layer_kernel(%arg0: i32, %arg1: i32, %arg2: memref<9xi32, #tpu.memory_space<smem>>, %arg3: memref<3xi32, #tpu.memory_space<smem>>, %arg4: memref<256x256xbf16, #tpu.memory_space<vmem>>, %arg5: memref<256x128xbf16, #tpu.memory_space<vmem>>, %arg6: memref<256x128xf32, #tpu.memory_space<vmem>>, %arg7: memref<256x128xbf16, #tpu.memory_space<vmem>>, %arg8: memref<256x128xf32, #tpu.memory_space<vmem>>, %arg9: memref<256x128xf32, #tpu.memory_space<vmem>>) attributes {dimension_semantics = [#tpu.dimension_semantics<parallel>, #tpu.dimension_semantics<arbitrary>], iteration_bounds = array<i64: 3, 3>, scalar_prefetch = 2 : i64, scratch_operands = 1 : i64, tpu.core_type = #tpu.core_type<tc>, window_params = [{transform_indices = @transform_0, window_bounds = array<i64: 256, 256>}, {transform_indices = @transform_1, window_bounds = array<i64: 256, 128>}, {transform_indices = @transform_2, window_bounds = array<i64: 256, 128>}, {transform_indices = @transform_3, window_bounds = array<i64: 256, 128>}, {transform_indices = @transform_4, window_bounds = array<i64: 256, 128>}]} {
    %c0_i32 = arith.constant 0 : i32
    %0 = arith.cmpi eq, %arg1, %c0_i32 : i32
    %1 = arith.extui %0 : i1 to i32
    %c0_i32_0 = arith.constant 0 : i32
    %2 = arith.cmpi ne, %1, %c0_i32_0 : i32
    scf.if %2 {
      %cst = arith.constant 0.000000e+00 : f32
      %11 = vector.broadcast %cst : f32 to vector<256x128xf32>
      %c0 = arith.constant 0 : index
      %c0_3 = arith.constant 0 : index
      %12 = vector.load %arg9[%c0, %c0_3] : memref<256x128xf32, #tpu.memory_space<vmem>>, vector<256x128xf32>
      tpu.vector_store %arg9[%c0, %c0_3], %11 {strides = array<i32>} : memref<256x128xf32, #tpu.memory_space<vmem>>, vector<256x128xf32>,
    } else {
    }
    %3 = arith.index_cast %arg0 : i32 to index
    %4 = memref.load %arg3[%3] : memref<3xi32, #tpu.memory_space<smem>>
    %5 = arith.cmpi slt, %arg1, %4 : i32
    %6 = arith.extui %5 : i1 to i32
    %c0_i32_1 = arith.constant 0 : i32
    %7 = arith.cmpi ne, %6, %c0_i32_1 : i32
    scf.if %7 {
      %c0 = arith.constant 0 : index
      %c0_3 = arith.constant 0 : index
      %11 = vector.load %arg9[%c0, %c0_3] : memref<256x128xf32, #tpu.memory_space<vmem>>, vector<256x128xf32>
      %c0_4 = arith.constant 0 : index
      %c0_5 = arith.constant 0 : index
      %12 = vector.load %arg4[%c0_4, %c0_5] : memref<256x256xbf16, #tpu.memory_space<vmem>>, vector<256x256xbf16>
      %c0_6 = arith.constant 0 : index
      %c0_7 = arith.constant 0 : index
      %13 = vector.load %arg5[%c0_6, %c0_7] : memref<256x128xbf16, #tpu.memory_space<vmem>>, vector<256x128xbf16>
      %cst = arith.constant dense<0.000000e+00> : vector<256x128xf32>
      %14 = tpu.matmul %12, %13, %cst {dimension_numbers = #tpu.dot_dimension_numbers<[1], [0], [0], [1], [0, 0, 1, 1], [], []>} : vector<256x256xbf16>, vector<256x128xbf16>, vector<256x128xf32> -> vector<256x128xf32>
      %15 = arith.addf %11, %14 : vector<256x128xf32>
      %c0_8 = arith.constant 0 : index
      %c0_9 = arith.constant 0 : index
      %16 = vector.load %arg9[%c0_8, %c0_9] : memref<256x128xf32, #tpu.memory_space<vmem>>, vector<256x128xf32>
      tpu.vector_store %arg9[%c0_8, %c0_9], %15 {strides = array<i32>} : memref<256x128xf32, #tpu.memory_space<vmem>>, vector<256x128xf32>,
    } else {
    }
    %c2_i32 = arith.constant 2 : i32
    %8 = arith.cmpi eq, %arg1, %c2_i32 : i32
    %9 = arith.extui %8 : i1 to i32
    %c0_i32_2 = arith.constant 0 : i32
    %10 = arith.cmpi ne, %9, %c0_i32_2 : i32
    scf.if %10 {
      %c0 = arith.constant 0 : index
      %c0_3 = arith.constant 0 : index
      %11 = vector.load %arg9[%c0, %c0_3] : memref<256x128xf32, #tpu.memory_space<vmem>>, vector<256x128xf32>
      %12 = arith.truncf %11 : vector<256x128xf32> to vector<256x128xbf16>
      %c0_4 = arith.constant 0 : index
      %c0_5 = arith.constant 0 : index
      %13 = vector.load %arg7[%c0_4, %c0_5] : memref<256x128xbf16, #tpu.memory_space<vmem>>, vector<256x128xbf16>
      tpu.vector_store %arg7[%c0_4, %c0_5], %12 {strides = array<i32>} : memref<256x128xbf16, #tpu.memory_space<vmem>>, vector<256x128xbf16>,
      %c0_6 = arith.constant 0 : index
      %c0_7 = arith.constant 0 : index
      %14 = vector.load %arg6[%c0_6, %c0_7] : memref<256x128xf32, #tpu.memory_space<vmem>>, vector<256x128xf32>
      %15 = arith.addf %14, %11 : vector<256x128xf32>
      %c0_8 = arith.constant 0 : index
      %c0_9 = arith.constant 0 : index
      %16 = vector.load %arg8[%c0_8, %c0_9] : memref<256x128xf32, #tpu.memory_space<vmem>>, vector<256x128xf32>
      tpu.vector_store %arg8[%c0_8, %c0_9], %15 {strides = array<i32>} : memref<256x128xf32, #tpu.memory_space<vmem>>, vector<256x128xf32>,
    } else {
    }
    return
  }
  func.func @transform_0(%arg0: i32, %arg1: i32, %arg2: memref<9xi32, #tpu.memory_space<smem>>, %arg3: memref<3xi32, #tpu.memory_space<smem>>) -> (i32, i32) {
    %c3_i32 = arith.constant 3 : i32
    %0 = arith.muli %arg0, %c3_i32 : i32
    %1 = arith.addi %0, %arg1 : i32
    %2 = arith.index_cast %1 : i32 to index
    %3 = memref.load %arg2[%2] : memref<9xi32, #tpu.memory_space<smem>>
    %c0_i32 = arith.constant 0 : i32
    return %arg0, %3 : i32, i32
  }
  func.func @transform_1(%arg0: i32, %arg1: i32, %arg2: memref<9xi32, #tpu.memory_space<smem>>, %arg3: memref<3xi32, #tpu.memory_space<smem>>) -> (i32, i32) {
    %c3_i32 = arith.constant 3 : i32
    %0 = arith.muli %arg0, %c3_i32 : i32
    %1 = arith.addi %0, %arg1 : i32
    %2 = arith.index_cast %1 : i32 to index
    %3 = memref.load %arg2[%2] : memref<9xi32, #tpu.memory_space<smem>>
    %c0_i32 = arith.constant 0 : i32
    %c0_i32_0 = arith.constant 0 : i32
    return %3, %c0_i32 : i32, i32
  }
  func.func @transform_2(%arg0: i32, %arg1: i32, %arg2: memref<9xi32, #tpu.memory_space<smem>>, %arg3: memref<3xi32, #tpu.memory_space<smem>>) -> (i32, i32) {
    %c0_i32 = arith.constant 0 : i32
    %c0_i32_0 = arith.constant 0 : i32
    return %arg0, %c0_i32 : i32, i32
  }
  func.func @transform_3(%arg0: i32, %arg1: i32, %arg2: memref<9xi32, #tpu.memory_space<smem>>, %arg3: memref<3xi32, #tpu.memory_space<smem>>) -> (i32, i32) {
    %c0_i32 = arith.constant 0 : i32
    %c0_i32_0 = arith.constant 0 : i32
    return %arg0, %c0_i32 : i32, i32
  }
  func.func @transform_4(%arg0: i32, %arg1: i32, %arg2: memref<9xi32, #tpu.memory_space<smem>>, %arg3: memref<3xi32, #tpu.memory_space<smem>>) -> (i32, i32) {
    %c0_i32 = arith.constant 0 : i32
    %c0_i32_0 = arith.constant 0 : i32
    return %arg0, %c0_i32 : i32, i32
  }
}

module attributes {stable_mosaic.version = 11 : i64} {
  func.func @_score_kernel(%arg0: i32, %arg1: memref<128x128xf32, #tpu.memory_space<vmem>>, %arg2: memref<128x128xf32, #tpu.memory_space<vmem>>, %arg3: memref<128x1xf32, #tpu.memory_space<vmem>>) attributes {dimension_semantics = [#tpu.dimension_semantics<parallel>], iteration_bounds = array<i64: 2>, scalar_prefetch = 0 : i64, scratch_operands = 0 : i64, tpu.core_type = #tpu.core_type<tc>, window_params = [{transform_indices = @transform_0, window_bounds = array<i64: 128, 128>}, {transform_indices = @transform_1, window_bounds = array<i64: 128, 128>}, {transform_indices = @transform_2, window_bounds = array<i64: 128, 1>}]} {
    %c0 = arith.constant 0 : index
    %c0_0 = arith.constant 0 : index
    %0 = vector.load %arg1[%c0, %c0_0] : memref<128x128xf32, #tpu.memory_space<vmem>>, vector<128x128xf32>
    %c0_1 = arith.constant 0 : index
    %c0_2 = arith.constant 0 : index
    %1 = vector.load %arg2[%c0_1, %c0_2] : memref<128x128xf32, #tpu.memory_space<vmem>>, vector<128x128xf32>
    %2 = arith.mulf %0, %1 : vector<128x128xf32>
    %cst = arith.constant dense<0.000000e+00> : vector<128xf32>
    %3 = vector.multi_reduction <add>, %2, %cst [1] : vector<128x128xf32> to vector<128xf32>
    %4 = vector.shape_cast %3 : vector<128xf32> to vector<128x1xf32>
    %c0_3 = arith.constant 0 : index
    %c0_4 = arith.constant 0 : index
    %5 = vector.load %arg3[%c0_3, %c0_4] : memref<128x1xf32, #tpu.memory_space<vmem>>, vector<128x1xf32>
    tpu.vector_store %arg3[%c0_3, %c0_4], %4 {strides = array<i32>} : memref<128x1xf32, #tpu.memory_space<vmem>>, vector<128x1xf32>,
    return
  }
  func.func @transform_0(%arg0: i32) -> (i32, i32) {
    %c0_i32 = arith.constant 0 : i32
    %c0_i32_0 = arith.constant 0 : i32
    return %arg0, %c0_i32 : i32, i32
  }
  func.func @transform_1(%arg0: i32) -> (i32, i32) {
    %c0_i32 = arith.constant 0 : i32
    %c0_i32_0 = arith.constant 0 : i32
    return %arg0, %c0_i32 : i32, i32
  }
  func.func @transform_2(%arg0: i32) -> (i32, i32) {
    %c0_i32 = arith.constant 0 : i32
    %c0_i32_0 = arith.constant 0 : i32
    return %arg0, %c0_i32 : i32, i32
  }
}

</mosaic_0001>

<llo_original>
// kernel: lightgcn_forward.4
$region0: #{lightgcn_forward.4}
  #allocation0 [shape = 'u32[]', space=smem, size = 0x4, offset = 0x4, fixed_abs, tag = 'smem constant byte address 0x4 - core index']
  #allocation1 [shape = 'u32[144,128]{1,0:T(1,128)}', space=vmem, size = 0x12000, scoped, tag = 'internal scratch']
  #allocation2 [shape = 'f32[256,128]{1,0:T(8,128)}', space=vmem, size = 0x20000, scoped, tag = 'scratch operand']
  #allocation3 [shape = 's32[1]{0}', space=sflag, size = 0x4, scoped, tag = 'scoped memory for lightgcn_forward.4']
  #allocation4 [shape = 'u8[512]{0}', space=smem, size = 0x200, scoped, tag = 'prefetched SMEM operand 0']
  #allocation5 [shape = 'u8[512]{0}', space=smem, size = 0x200, scoped, tag = 'prefetched SMEM operand 1']
  %s0 = inlined_call_operand.vmem [shape: s32[9], index: 0, kind: input, shape index: {}]
  %s1 = inlined_call_operand.vmem [shape: s32[3], index: 1, kind: input, shape index: {}]
  %s2 = inlined_call_operand.vmem [shape: bf16[768,768], index: 2, kind: input, shape index: {}]
  %s3 = inlined_call_operand.vmem [shape: bf16[768,128], index: 3, kind: input, shape index: {}]
  %s4 = inlined_call_operand.vmem [shape: f32[768,128], index: 4, kind: input, shape index: {}]
  %s5 = inlined_call_operand.vmem [shape: bf16[768,128], index: 5, kind: output, shape index: {0}]
  %s6 = inlined_call_operand.vmem [shape: f32[768,128], index: 6, kind: output, shape index: {1}]
  %7 = xla_tuple %s5, %s6
  %s8 = sld [smem:[#allocation0]]
  $region103: #{lightgcn_forward.4} parent=0
    _
  %s10 = ssub.s32 1, %s8
  %s11 = scalar_select 0, %s10, %s8
  %s12 = sshll.u32 %s0, 4
  %s13 = int_to_ptr.vmem [resolvable:$true] %s12
  %15 = dma.vmem_to_smem %s13, 16, [#allocation4], [#allocation3]
  %s16 = sshll.u32 %s1, 4
  %s17 = int_to_ptr.vmem [resolvable:$true] %s16
  %19 = dma.vmem_to_smem %s17, 16, [#allocation5], [#allocation3]
  %20 = dma.done [#allocation3], 32
  %21 = sfence
  $region1: #{lightgcn_forward.4} parent=0
    #allocation6 [shape = 'u8[262144]{0}', space=vmem, size = 0x40000, scoped, tag = 'input window, operand 2']
    loop: start=0, step=1, limit=11
    $region2: #{lightgcn_forward.4} parent=1 // loop_pre_header
      _
    $region3: #{lightgcn_forward.4} parent=1 // loop_header
      %s23 = sphi 0, %s27
      %p24 = scmp.ge.s32.totalorder %s23, 11
      %s30 = sphi 0, %s42
      %s31 = sphi 0, %s38
      %s32 = sphi 0, %s30
      %s33 = sphi 0, %s31
      %s34 = sphi 0, %s32
      %s35 = sphi 0, %s33
      %s53 = sphi 0, %s55
      %s56 = sphi 0, %s53
      %s57 = sphi 0, %s56
      %s73 = sphi 0, %s57
      %s85 = sphi 0, %s87
      %s88 = sphi 0, %s85
      %s89 = sphi 0, %s88
      %s105 = sphi 0, %s89
      %s111 = sphi 0, %s113
      %s114 = sphi 0, %s111
      %s115 = sphi 0, %s114
      %s131 = sphi 0, %s115
      %s137 = sphi 0, %s139
      %s140 = sphi 0, %s137
      %s141 = sphi 0, %s140
      %s157 = sphi 0, %s141
      %s163 = sphi 0, %s165
      %s166 = sphi 0, %s163
      %s167 = sphi 0, %s166
      %s183 = sphi 0, %s167
    $region4: #{lightgcn_forward.4} parent=1 // loop_header_branch
      %26 = sbr.rel (%p24) target = $region8
    $region5: #{lightgcn_forward.4} parent=1 // loop_body
      %s28 = ssub.s32 %s23, 1
      %s29 = ssub.s32 %s23, 2
      %s36 = sadd.s32 1, %s31
      %p37 = scmp.ge.s32.totalorder %s36, 3
      %s38 = scalar_select %p37, 0, %s36
      %s39 = sadd.s32 1, %s30
      %s40 = scalar_select %p37, %s39, %s30
      %p41 = scmp.ge.s32.totalorder %s40, 3
      %s42 = scalar_select %p41, 0, %s40
      %s43 = smul.u32 %s30, 3
      %s44 = sadd.s32 %s43, %s31
      %s45 = sld [smem:[#allocation4 + %s44]]
      %s46 = smul.u32 %s42, 3
      %s47 = sadd.s32 %s46, %s38
      %s48 = sld [smem:[#allocation4 + %s47]]
      %s49 = ssub.s32 %s30, %s42
      %s50 = ssub.s32 %s45, %s48
      %s51 = sor.u32 %s49, %s50
      %p52 = scmp.eq.s32.totalorder %s51, 0
      %s54 = sadd.s32 %s53, 1
      %s55 = scalar_select %p52, %s53, %s54
      %p58 = pneg %p52
      %p59 = scmp.eq.s32.totalorder %s23, 8
      %p60 = por %p58, %p59
      %p61 = scmp.ne.s32.totalorder %s53, %s56
      %p62 = scmp.eq.s32.totalorder %s23, 0
      %p63 = por %p61, %p62
      %p64 = scmp.ne.s32.totalorder %s53, %s56
      %p65 = scmp.eq.s32.totalorder %s28, 8
      %p66 = por %p64, %p65
      %p67 = scmp.ne.s32.totalorder %s56, %s57
      %p68 = scmp.eq.s32.totalorder %s28, 0
      %p69 = por %p67, %p68
      %p70 = scmp.ne.s32.totalorder %s56, %s57
      %p71 = scmp.eq.s32.totalorder %s29, 8
      %p72 = por %p70, %p71
      %p74 = scmp.ne.s32.totalorder %s57, %s73
      %p75 = scmp.eq.s32.totalorder %s29, 0
      %p76 = por %p74, %p75
      %s77 = smul.u32 %s30, 3
      %s78 = sadd.s32 %s77, %s31
      %s79 = sld [smem:[#allocation4 + %s78]]
      %s80 = smul.u32 %s42, 3
      %s81 = sadd.s32 %s80, %s38
      %s82 = sld [smem:[#allocation4 + %s81]]
      %s83 = ssub.s32 %s79, %s82
      %p84 = scmp.eq.s32.totalorder %s83, 0
      %s86 = sadd.s32 %s85, 1
      %s87 = scalar_select %p84, %s85, %s86
      %p90 = pneg %p84
      %p91 = scmp.eq.s32.totalorder %s23, 8
      %p92 = por %p90, %p91
      %p93 = scmp.ne.s32.totalorder %s85, %s88
      %p94 = scmp.eq.s32.totalorder %s23, 0
      %p95 = por %p93, %p94
      %p96 = scmp.ne.s32.totalorder %s85, %s88
      %p97 = scmp.eq.s32.totalorder %s28, 8
      %p98 = por %p96, %p97
      %p99 = scmp.ne.s32.totalorder %s88, %s89
      %p100 = scmp.eq.s32.totalorder %s28, 0
      %p101 = por %p99, %p100
      %p102 = scmp.ne.s32.totalorder %s88, %s89
      %p103 = scmp.eq.s32.totalorder %s29, 8
      %p104 = por %p102, %p103
      %p106 = scmp.ne.s32.totalorder %s89, %s105
      %p107 = scmp.eq.s32.totalorder %s29, 0
      %p108 = por %p106, %p107
      %s109 = ssub.s32 %s30, %s42
      %p110 = scmp.eq.s32.totalorder %s109, 0
      %s112 = sadd.s32 %s111, 1
      %s113 = scalar_select %p110, %s111, %s112
      %p116 = pneg %p110
      %p117 = scmp.eq.s32.totalorder %s23, 8
      %p118 = por %p116, %p117
      %p119 = scmp.ne.s32.totalorder %s111, %s114
      %p120 = scmp.eq.s32.totalorder %s23, 0
      %p121 = por %p119, %p120
      %p122 = scmp.ne.s32.totalorder %s111, %s114
      %p123 = scmp.eq.s32.totalorder %s28, 8
      %p124 = por %p122, %p123
      %p125 = scmp.ne.s32.totalorder %s114, %s115
      %p126 = scmp.eq.s32.totalorder %s28, 0
      %p127 = por %p125, %p126
      %p128 = scmp.ne.s32.totalorder %s114, %s115
      %p129 = scmp.eq.s32.totalorder %s29, 8
      %p130 = por %p128, %p129
      %p132 = scmp.ne.s32.totalorder %s115, %s131
      %p133 = scmp.eq.s32.totalorder %s29, 0
      %p134 = por %p132, %p133
      %s135 = ssub.s32 %s30, %s42
      %p136 = scmp.eq.s32.totalorder %s135, 0
      %s138 = sadd.s32 %s137, 1
      %s139 = scalar_select %p136, %s137, %s138
      %p142 = pneg %p136
      %p143 = scmp.eq.s32.totalorder %s23, 8
      %p144 = por %p142, %p143
      %p145 = scmp.ne.s32.totalorder %s137, %s140
      %p146 = scmp.eq.s32.totalorder %s23, 0
      %p147 = por %p145, %p146
      %p148 = scmp.ne.s32.totalorder %s137, %s140
      %p149 = scmp.eq.s32.totalorder %s28, 8
      %p150 = por %p148, %p149
      %p151 = scmp.ne.s32.totalorder %s140, %s141
      %p152 = scmp.eq.s32.totalorder %s28, 0
      %p153 = por %p151, %p152
      %p154 = scmp.ne.s32.totalorder %s140, %s141
      %p155 = scmp.eq.s32.totalorder %s29, 8
      %p156 = por %p154, %p155
      %p158 = scmp.ne.s32.totalorder %s141, %s157
      %p159 = scmp.eq.s32.totalorder %s29, 0
      %p160 = por %p158, %p159
      %s161 = ssub.s32 %s30, %s42
      %p162 = scmp.eq.s32.totalorder %s161, 0
      %s164 = sadd.s32 %s163, 1
      %s165 = scalar_select %p162, %s163, %s164
      %p168 = pneg %p162
      %p169 = scmp.eq.s32.totalorder %s23, 8
      %p170 = por %p168, %p169
      %p171 = scmp.ne.s32.totalorder %s163, %s166
      %p172 = scmp.eq.s32.totalorder %s23, 0
      %p173 = por %p171, %p172
      %p174 = scmp.ne.s32.totalorder %s163, %s166
      %p175 = scmp.eq.s32.totalorder %s28, 8
      %p176 = por %p174, %p175
      %p177 = scmp.ne.s32.totalorder %s166, %s167
      %p178 = scmp.eq.s32.totalorder %s28, 0
      %p179 = por %p177, %p178
      %p180 = scmp.ne.s32.totalorder %s166, %s167
      %p181 = scmp.eq.s32.totalorder %s29, 8
      %p182 = por %p180, %p181
      %p184 = scmp.ne.s32.totalorder %s167, %s183
      %p185 = scmp.eq.s32.totalorder %s29, 0
      %p186 = por %p184, %p185
      %p187 = scmp.le.s32.totalorder 1, %s23
      %p188 = scmp.lt.s32.totalorder %s23, 10
      %p189 = pnand %p187, %p188
      %p190 = pneg %p189
      // Predicated region
      $region9: #{lightgcn_forward.4} parent=5 // pred_check
        _
      $region10: #{lightgcn_forward.4} parent=5 // pred_check_branch
        %192 = sbr.rel (%p189) target = $region12
      $region11: #{lightgcn_forward.4} parent=5 // pred_region
        %s193 = ssub.s32 %s23, 1
      $region12: #{lightgcn_forward.4} parent=5 // pred_fallthru
        _
      %p194 = scmp.lt.s32.totalorder %s23, 9
      // Predicated region
      $region13: #{lightgcn_forward.4} parent=5 // pred_check
        %p195 = pneg %p194
      $region14: #{lightgcn_forward.4} parent=5 // pred_check_branch
        %197 = sbr.rel (%p195) target = $region16
      $region15: #{lightgcn_forward.4} parent=5 // pred_region
        // Predicated region
        $region17: #{lightgcn_forward.4} parent=15 // pred_check
          %p198 = pneg %p63
        $region18: #{lightgcn_forward.4} parent=15 // pred_check_branch
          %200 = sbr.rel (%p198) target = $region20
        $region19: #{lightgcn_forward.4} parent=15 // pred_region
          %s201 = sand.u32 %s53, 1
          %s202 = sand.u32 %s53, 1
          %s203 = smul.addr %s202, 256
          %s204 = scalar_lea.vmem [#allocation6], %s203
          %s205 = smul.u32 %s30, 3
          %s206 = sadd.s32 %s205, %s31
          %s207 = sld [smem:[#allocation4 + %s206]]
          %s208 = smul.u32 32, %s30
          %s209 = smul.u32 2, %s207
          %s210 = smul.addr %s208, 6
          %s211 = sadd.s32 %s209, %s210
          %s212 = smul.addr %s211, 4
          %s213 = scalar_lea.vmem %s2, %s212
          // Predicated region
          $region21: #{lightgcn_forward.4} parent=19 // pred_check
            _
          $region22: #{lightgcn_forward.4} parent=19 // pred_check_branch
            %215 = sbr.rel (0) target = $region24
          $region23: #{lightgcn_forward.4} parent=19 // pred_region
            // Predicated region
            $region25: #{lightgcn_forward.4} parent=23 // pred_check
              _
            $region26: #{lightgcn_forward.4} parent=23 // pred_check_branch
              %217 = sbr.rel (0) target = $region28
            $region27: #{lightgcn_forward.4} parent=23 // pred_region
              // Predicated region
              $region40: #{lightgcn_forward.4} parent=27 // pred_check
                _
              $region41: #{lightgcn_forward.4} parent=27 // pred_check_branch
                %294 = sbr.rel (0) target = $region43
              $region42: #{lightgcn_forward.4} parent=27 // pred_region
                loop: start=0, step=1, limit=1
                $region44: #{lightgcn_forward.4} parent=42 // loop_pre_header
                  _
                $region45: #{lightgcn_forward.4} parent=42 // loop_header
                  %s296 = sphi 0, %s300
                  %p297 = scmp.ge.s32.totalorder %s296, 1
                  %s301 = sphi %s213, %s213
                  %s302 = sphi %s204, %s204
                $region46: #{lightgcn_forward.4} parent=42 // loop_header_branch
                  %299 = sbr.rel (%p297) target = $region50
                $region47: #{lightgcn_forward.4} parent=42 // loop_body
                  %v303 = vld [vmem:[%s301] sm:$0xff]
                  %304 = vst [vmem:[%s302] sm:$0xff] %v303
                  %v305 = vld [vmem:[%s301 + $0x18] sm:$0xff]
                  %306 = vst [vmem:[%s302 + $0x8] sm:$0xff] %v305
                  %v307 = vld [vmem:[%s301 + $0x30] sm:$0xff]
                  %308 = vst [vmem:[%s302 + $0x10] sm:$0xff] %v307
                  %v309 = vld [vmem:[%s301 + $0x48] sm:$0xff]
                  %310 = vst [vmem:[%s302 + $0x18] sm:$0xff] %v309
                  %v311 = vld [vmem:[%s301 + $0x60] sm:$0xff]
                  %312 = vst [vmem:[%s302 + $0x20] sm:$0xff] %v311
                  %v313 = vld [vmem:[%s301 + $0x78] sm:$0xff]
                  %314 = vst [vmem:[%s302 + $0x28] sm:$0xff] %v313
                  %v315 = vld [vmem:[%s301 + $0x90] sm:$0xff]
                  %316 = vst [vmem:[%s302 + $0x30] sm:$0xff] %v315
                  %v317 = vld [vmem:[%s301 + $0xa8] sm:$0xff]
                  %318 = vst [vmem:[%s302 + $0x38] sm:$0xff] %v317
                  %v319 = vld [vmem:[%s301 + $0xc0] sm:$0xff]
                  %320 = vst [vmem:[%s302 + $0x40] sm:$0xff] %v319
                  %v321 = vld [vmem:[%s301 + $0xd8] sm:$0xff]
                  %322 = vst [vmem:[%s302 + $0x48] sm:$0xff] %v321
                  %v323 = vld [vmem:[%s301 + $0xf0] sm:$0xff]
                  %324 = vst [vmem:[%s302 + $0x50] sm:$0xff] %v323
                  %v325 = vld [vmem:[%s301 + $0x108] sm:$0xff]
                  %326 = vst [vmem:[%s302 + $0x58] sm:$0xff] %v325
                  %v327 = vld [vmem:[%s301 + $0x120] sm:$0xff]
                  %328 = vst [vmem:[%s302 + $0x60] sm:$0xff] %v327
                  %v329 = vld [vmem:[%s301 + $0x138] sm:$0xff]
                  %330 = vst [vmem:[%s302 + $0x68] sm:$0xff] %v329
                  %v331 = vld [vmem:[%s301 + $0x150] sm:$0xff]
                  %332 = vst [vmem:[%s302 + $0x70] sm:$0xff] %v331
                  %v333 = vld [vmem:[%s301 + $0x168] sm:$0xff]
                  %334 = vst [vmem:[%s302 + $0x78] sm:$0xff] %v333
                  %v335 = vld [vmem:[%s301 + $0x180] sm:$0xff]
                  %336 = vst [vmem:[%s302 + $0x80] sm:$0xff] %v335
                  %v337 = vld [vmem:[%s301 + $0x198] sm:$0xff]
                  %338 = vst [vmem:[%s302 + $0x88] sm:$0xff] %v337
                  %v339 = vld [vmem:[%s301 + $0x1b0] sm:$0xff]
                  %340 = vst [vmem:[%s302 + $0x90] sm:$0xff] %v339
                  %v341 = vld [vmem:[%s301 + $0x1c8] sm:$0xff]
                  %342 = vst [vmem:[%s302 + $0x98] sm:$0xff] %v341
                  %v343 = vld [vmem:[%s301 + $0x1e0] sm:$0xff]
                  %344 = vst [vmem:[%s302 + $0xa0] sm:$0xff] %v343
                  %v345 = vld [vmem:[%s301 + $0x1f8] sm:$0xff]
                  %346 = vst [vmem:[%s302 + $0xa8] sm:$0xff] %v345
                  %v347 = vld [vmem:[%s301 + $0x210] sm:$0xff]
                  %348 = vst [vmem:[%s302 + $0xb0] sm:$0xff] %v347
                  %v349 = vld [vmem:[%s301 + $0x228] sm:$0xff]
                  %350 = vst [vmem:[%s302 + $0xb8] sm:$0xff] %v349
                  %v351 = vld [vmem:[%s301 + $0x240] sm:$0xff]
                  %352 = vst [vmem:[%s302 + $0xc0] sm:$0xff] %v351
                  %v353 = vld [vmem:[%s301 + $0x258] sm:$0xff]
                  %354 = vst [vmem:[%s302 + $0xc8] sm:$0xff] %v353
                  %v355 = vld [vmem:[%s301 + $0x270] sm:$0xff]
                  %356 = vst [vmem:[%s302 + $0xd0] sm:$0xff] %v355
                  %v357 = vld [vmem:[%s301 + $0x288] sm:$0xff]
                  %358 = vst [vmem:[%s302 + $0xd8] sm:$0xff] %v357
                  %v359 = vld [vmem:[%s301 + $0x2a0] sm:$0xff]
                  %360 = vst [vmem:[%s302 + $0xe0] sm:$0xff] %v359
                  %v361 = vld [vmem:[%s301 + $0x2b8] sm:$0xff]
                  %362 = vst [vmem:[%s302 + $0xe8] sm:$0xff] %v361
                  %v363 = vld [vmem:[%s301 + $0x2d0] sm:$0xff]
                  %364 = vst [vmem:[%s302 + $0xf0] sm:$0xff] %v363
                  %v365 = vld [vmem:[%s301 + $0x2e8] sm:$0xff]
                  %366 = vst [vmem:[%s302 + $0xf8] sm:$0xff] %v365
                $region48: #{lightgcn_forward.4} parent=42 // loop_footer
                  %s300 = sadd.s32 1, %s296
                $region49: #{lightgcn_forward.4} parent=42 // loop_footer_branch
                  %295 = sbr.rel target = $region45
                $region50: #{lightgcn_forward.4} parent=42 // loop_exit
                  _
              $region43: #{lightgcn_forward.4} parent=27 // pred_fallthru
                _
              // Predicated region
              $region51: #{lightgcn_forward.4} parent=27 // pred_check
                _
              $region52: #{lightgcn_forward.4} parent=27 // pred_check_branch
                %368 = sbr.rel target = $region54
              $region53: #{lightgcn_forward.4} parent=27 // pred_region
                _
              $region54: #{lightgcn_forward.4} parent=27 // pred_fallthru
                _
            $region28: #{lightgcn_forward.4} parent=23 // pred_fallthru
              _
            // Predicated region
            $region29: #{lightgcn_forward.4} parent=23 // pred_check
              _
            $region30: #{lightgcn_forward.4} parent=23 // pred_check_branch
              %219 = sbr.rel target = $region32
            $region31: #{lightgcn_forward.4} parent=23 // pred_region
              loop: start=0, step=1, limit=1
              $region33: #{lightgcn_forward.4} parent=31 // loop_pre_header
                _
              $region34: #{lightgcn_forward.4} parent=31 // loop_header
                %s222 = sphi 0, %s226
                %p223 = scmp.ge.s32.totalorder %s222, 1
                %s227 = sphi %s213, %s213
                %s228 = sphi %s204, %s204
              $region35: #{lightgcn_forward.4} parent=31 // loop_header_branch
                %225 = sbr.rel (%p223) target = $region39
              $region36: #{lightgcn_forward.4} parent=31 // loop_body
                %v229 = vld [vmem:[%s227] sm:$0xff]
                %230 = vst [vmem:[%s228] sm:$0xff] %v229
                %v231 = vld [vmem:[%s227 + $0x18] sm:$0xff]
                %232 = vst [vmem:[%s228 + $0x8] sm:$0xff] %v231
                %v233 = vld [vmem:[%s227 + $0x30] sm:$0xff]
                %234 = vst [vmem:[%s228 + $0x10] sm:$0xff] %v233
                %v235 = vld [vmem:[%s227 + $0x48] sm:$0xff]
                %236 = vst [vmem:[%s228 + $0x18] sm:$0xff] %v235
                %v237 = vld [vmem:[%s227 + $0x60] sm:$0xff]
                %238 = vst [vmem:[%s228 + $0x20] sm:$0xff] %v237
                %v239 = vld [vmem:[%s227 + $0x78] sm:$0xff]
                %240 = vst [vmem:[%s228 + $0x28] sm:$0xff] %v239
                %v241 = vld [vmem:[%s227 + $0x90] sm:$0xff]
                %242 = vst [vmem:[%s228 + $0x30] sm:$0xff] %v241
                %v243 = vld [vmem:[%s227 + $0xa8] sm:$0xff]
                %244 = vst [vmem:[%s228 + $0x38] sm:$0xff] %v243
                %v245 = vld [vmem:[%s227 + $0xc0] sm:$0xff]
                %246 = vst [vmem:[%s228 + $0x40] sm:$0xff] %v245
                %v247 = vld [vmem:[%s227 + $0xd8] sm:$0xff]
                %248 = vst [vmem:[%s228 + $0x48] sm:$0xff] %v247
                %v249 = vld [vmem:[%s227 + $0xf0] sm:$0xff]
                %250 = vst [vmem:[%s228 + $0x50] sm:$0xff] %v249
                %v251 = vld [vmem:[%s227 + $0x108] sm:$0xff]
                %252 = vst [vmem:[%s228 + $0x58] sm:$0xff] %v251
                %v253 = vld [vmem:[%s227 + $0x120] sm:$0xff]
                %254 = vst [vmem:[%s228 + $0x60] sm:$0xff] %v253
                %v255 = vld [vmem:[%s227 + $0x138] sm:$0xff]
                %256 = vst [vmem:[%s228 + $0x68] sm:$0xff] %v255
                %v257 = vld [vmem:[%s227 + $0x150] sm:$0xff]
                %258 = vst [vmem:[%s228 + $0x70] sm:$0xff] %v257
                %v259 = vld [vmem:[%s227 + $0x168] sm:$0xff]
                %260 = vst [vmem:[%s228 + $0x78] sm:$0xff] %v259
                %v261 = vld [vmem:[%s227 + $0x180] sm:$0xff]
                %262 = vst [vmem:[%s228 + $0x80] sm:$0xff] %v261
                %v263 = vld [vmem:[%s227 + $0x198] sm:$0xff]
                %264 = vst [vmem:[%s228 + $0x88] sm:$0xff] %v263
                %v265 = vld [vmem:[%s227 + $0x1b0] sm:$0xff]
                %266 = vst [vmem:[%s228 + $0x90] sm:$0xff] %v265
                %v267 = vld [vmem:[%s227 + $0x1c8] sm:$0xff]
                %268 = vst [vmem:[%s228 + $0x98] sm:$0xff] %v267
                %v269 = vld [vmem:[%s227 + $0x1e0] sm:$0xff]
                %270 = vst [vmem:[%s228 + $0xa0] sm:$0xff] %v269
                %v271 = vld [vmem:[%s227 + $0x1f8] sm:$0xff]
                %272 = vst [vmem:[%s228 + $0xa8] sm:$0xff] %v271
                %v273 = vld [vmem:[%s227 + $0x210] sm:$0xff]
                %274 = vst [vmem:[%s228 + $0xb0] sm:$0xff] %v273
                %v275 = vld [vmem:[%s227 + $0x228] sm:$0xff]
                %276 = vst [vmem:[%s228 + $0xb8] sm:$0xff] %v275
                %v277 = vld [vmem:[%s227 + $0x240] sm:$0xff]
                %278 = vst [vmem:[%s228 + $0xc0] sm:$0xff] %v277
                %v279 = vld [vmem:[%s227 + $0x258] sm:$0xff]
                %280 = vst [vmem:[%s228 + $0xc8] sm:$0xff] %v279
                %v281 = vld [vmem:[%s227 + $0x270] sm:$0xff]
                %282 = vst [vmem:[%s228 + $0xd0] sm:$0xff] %v281
                %v283 = vld [vmem:[%s227 + $0x288] sm:$0xff]
                %284 = vst [vmem:[%s228 + $0xd8] sm:$0xff] %v283
                %v285 = vld [vmem:[%s227 + $0x2a0] sm:$0xff]
                %286 = vst [vmem:[%s228 + $0xe0] sm:$0xff] %v285
                %v287 = vld [vmem:[%s227 + $0x2b8] sm:$0xff]
                %288 = vst [vmem:[%s228 + $0xe8] sm:$0xff] %v287
                %v289 = vld [vmem:[%s227 + $0x2d0] sm:$0xff]
                %290 = vst [vmem:[%s228 + $0xf0] sm:$0xff] %v289
                %v291 = vld [vmem:[%s227 + $0x2e8] sm:$0xff]
                %292 = vst [vmem:[%s228 + $0xf8] sm:$0xff] %v291
              $region37: #{lightgcn_forward.4} parent=31 // loop_footer
                %s226 = sadd.s32 1, %s222
              $region38: #{lightgcn_forward.4} parent=31 // loop_footer_branch
                %221 = sbr.rel target = $region34
              $region39: #{lightgcn_forward.4} parent=31 // loop_exit
                _
            $region32: #{lightgcn_forward.4} parent=23 // pred_fallthru
              _
          $region24: #{lightgcn_forward.4} parent=19 // pred_fallthru
            _
          %369 = vnop
        $region20: #{lightgcn_forward.4} parent=15 // pred_fallthru
          _
        // Predicated region
        $region55: #{lightgcn_forward.4} parent=15 // pred_check
          %p370 = pneg %p95
        $region56: #{lightgcn_forward.4} parent=15 // pred_check_branch
          %372 = sbr.rel (%p370) target = $region58
        $region57: #{lightgcn_forward.4} parent=15 // pred_region
          %s373 = smul.u32 %s30, 3
          %s374 = sadd.s32 %s373, %s31
          %s375 = sld [smem:[#allocation4 + %s374]]
          %s376 = smul.u32 32, %s375
          %p377 = scmp.lt.s32.totalorder %s376, 95
          %s378 = scalar_select %p377, %s376, 95
          %s379 = smul.addr %s378, 4
          %s380 = scalar_lea.vmem %s3, %s379
          %s381 = smul.u32 %s30, 3
          %s382 = sadd.s32 %s381, %s31
          %s383 = sld [smem:[#allocation4 + %s382]]
          %s384 = smul.u32 32, %s383
        $region58: #{lightgcn_forward.4} parent=15 // pred_fallthru
          _
        // Predicated region
        $region59: #{lightgcn_forward.4} parent=15 // pred_check
          %p385 = pneg %p121
        $region60: #{lightgcn_forward.4} parent=15 // pred_check_branch
          %387 = sbr.rel (%p385) target = $region62
        $region61: #{lightgcn_forward.4} parent=15 // pred_region
          %s388 = smul.u32 32, %s30
          %p389 = scmp.lt.s32.totalorder %s388, 95
          %s390 = scalar_select %p389, %s388, 95
          %s391 = smul.addr %s390, 8
          %s392 = scalar_lea.vmem %s4, %s391
          %s393 = smul.u32 32, %s30
        $region62: #{lightgcn_forward.4} parent=15 // pred_fallthru
          _
      $region16: #{lightgcn_forward.4} parent=5 // pred_fallthru
        _
      %p394 = scmp.le.s32.totalorder 1, %s23
      %p395 = scmp.lt.s32.totalorder %s23, 10
      %p396 = pnand %p394, %p395
      %p397 = pneg %p396
      // Predicated region
      $region63: #{lightgcn_forward.4} parent=5 // pred_check
        _
      $region64: #{lightgcn_forward.4} parent=5 // pred_check_branch
        %399 = sbr.rel (%p396) target = $region66
      $region65: #{lightgcn_forward.4} parent=5 // pred_region
        %s400 = ssub.s32 %s23, 1
        %s401 = sand.u32 %s56, 1
        %s402 = sand.u32 %s56, 1
        %s403 = smul.addr %s402, 256
        %s404 = scalar_lea.vmem [#allocation6], %s403
        // Predicated region
        $region67: #{lightgcn_forward.4} parent=65 // pred_check
          %p405 = pneg %p69
        $region68: #{lightgcn_forward.4} parent=65 // pred_check_branch
          %407 = sbr.rel (%p405) target = $region70
        $region69: #{lightgcn_forward.4} parent=65 // pred_region
          _
        $region70: #{lightgcn_forward.4} parent=65 // pred_fallthru
          _
        %s408 = sand.u32 %s56, 1
        %s409 = sand.u32 %s56, 1
        %s410 = smul.addr %s409, 256
        %s411 = scalar_lea.vmem [#allocation6], %s410
        %p412 = pneg %p69
        %p413 = pneg %p66
        %s414 = smul.u32 %s32, 3
        %s415 = sadd.s32 %s414, %s33
        %s416 = sld [smem:[#allocation4 + %s415]]
        %s417 = smul.u32 32, %s416
        %p418 = scmp.lt.s32.totalorder %s417, 95
        %s419 = scalar_select %p418, %s417, 95
        %s420 = smul.addr %s419, 4
        %s421 = scalar_lea.vmem %s3, %s420
        %p422 = pneg %p101
        %p423 = pneg %p98
        %s424 = smul.u32 32, %s32
        %p425 = scmp.lt.s32.totalorder %s424, 95
        %s426 = scalar_select %p425, %s424, 95
        %s427 = smul.addr %s426, 8
        %s428 = scalar_lea.vmem %s4, %s427
        %p429 = pneg %p127
        %p430 = pneg %p124
        %p431 = pneg %p153
        %p432 = pneg %p150
        %s433 = smul.u32 32, %s32
        %p434 = scmp.lt.s32.totalorder %s433, 95
        %s435 = scalar_select %p434, %s433, 95
        %s436 = smul.addr %s435, 4
        %s437 = scalar_lea.vmem %s5, %s436
        %p438 = pneg %p179
        %p439 = pneg %p176
        %s440 = smul.u32 32, %s32
        %p441 = scmp.lt.s32.totalorder %s440, 95
        %s442 = scalar_select %p441, %s440, 95
        %s443 = smul.addr %s442, 8
        %s444 = scalar_lea.vmem %s6, %s443
        %s445 = smul.u32 %s32, 3
        %s446 = sadd.s32 %s445, %s33
        %s447 = sld [smem:[#allocation4 + %s446]]
        %s448 = smul.u32 32, %s32
        %s449 = smul.u32 2, %s447
        %s450 = smul.u32 %s32, 3
        %s451 = sadd.s32 %s450, %s33
        %s452 = sld [smem:[#allocation4 + %s451]]
        %s453 = smul.u32 32, %s452
        %p454 = scmp.lt.s32.totalorder %s453, 95
        %s455 = scalar_select %p454, %s453, 95
        %s456 = smul.addr %s455, 4
        %s457 = scalar_lea.vmem %s3, %s456
        %s458 = smul.u32 %s32, 3
        %s459 = sadd.s32 %s458, %s33
        %s460 = sld [smem:[#allocation4 + %s459]]
        %s461 = smul.u32 32, %s460
        %s462 = smul.u32 32, %s32
        %p463 = scmp.lt.s32.totalorder %s462, 95
        %s464 = scalar_select %p463, %s462, 95
        %s465 = smul.addr %s464, 8
        %s466 = scalar_lea.vmem %s4, %s465
        %s467 = smul.u32 32, %s32
        %s468 = smul.u32 32, %s32
        %p469 = scmp.lt.s32.totalorder %s468, 95
        %s470 = scalar_select %p469, %s468, 95
        %s471 = smul.addr %s470, 4
        %s472 = scalar_lea.vmem %s5, %s471
        %s473 = smul.u32 32, %s32
        %s474 = smul.u32 32, %s32
        %p475 = scmp.lt.s32.totalorder %s474, 95
        %s476 = scalar_select %p475, %s474, 95
        %s477 = smul.addr %s476, 8
        %s478 = scalar_lea.vmem %s6, %s477
        %s479 = smul.u32 32, %s32
        %p481 = scmp.eq.s32.totalorder %s33, 0
        // Predicated region
        $region71: #{lightgcn_forward.4} parent=65 // pred_check
          %p482 = pneg %p481
        $region72: #{lightgcn_forward.4} parent=65 // pred_check_branch
          %484 = sbr.rel (%p482) target = $region74
        $region73: #{lightgcn_forward.4} parent=65 // pred_region
          %485 = vst [vmem:[#allocation2] sm:$0xff] 0.0
          %486 = vst [vmem:[#allocation2 + $0x8] sm:$0xff] 0.0
          %487 = vst [vmem:[#allocation2 + $0x10] sm:$0xff] 0.0
          %488 = vst [vmem:[#allocation2 + $0x18] sm:$0xff] 0.0
          %489 = vst [vmem:[#allocation2 + $0x20] sm:$0xff] 0.0
          %490 = vst [vmem:[#allocation2 + $0x28] sm:$0xff] 0.0
          %491 = vst [vmem:[#allocation2 + $0x30] sm:$0xff] 0.0
          %492 = vst [vmem:[#allocation2 + $0x38] sm:$0xff] 0.0
          %493 = vst [vmem:[#allocation2 + $0x40] sm:$0xff] 0.0
          %494 = vst [vmem:[#allocation2 + $0x48] sm:$0xff] 0.0
          %495 = vst [vmem:[#allocation2 + $0x50] sm:$0xff] 0.0
          %496 = vst [vmem:[#allocation2 + $0x58] sm:$0xff] 0.0
          %497 = vst [vmem:[#allocation2 + $0x60] sm:$0xff] 0.0
          %498 = vst [vmem:[#allocation2 + $0x68] sm:$0xff] 0.0
          %499 = vst [vmem:[#allocation2 + $0x70] sm:$0xff] 0.0
          %500 = vst [vmem:[#allocation2 + $0x78] sm:$0xff] 0.0
          %501 = vst [vmem:[#allocation2 + $0x80] sm:$0xff] 0.0
          %502 = vst [vmem:[#allocation2 + $0x88] sm:$0xff] 0.0
          %503 = vst [vmem:[#allocation2 + $0x90] sm:$0xff] 0.0
          %504 = vst [vmem:[#allocation2 + $0x98] sm:$0xff] 0.0
          %505 = vst [vmem:[#allocation2 + $0xa0] sm:$0xff] 0.0
          %506 = vst [vmem:[#allocation2 + $0xa8] sm:$0xff] 0.0
          %507 = vst [vmem:[#allocation2 + $0xb0] sm:$0xff] 0.0
          %508 = vst [vmem:[#allocation2 + $0xb8] sm:$0xff] 0.0
          %509 = vst [vmem:[#allocation2 + $0xc0] sm:$0xff] 0.0
          %510 = vst [vmem:[#allocation2 + $0xc8] sm:$0xff] 0.0
          %511 = vst [vmem:[#allocation2 + $0xd0] sm:$0xff] 0.0
          %512 = vst [vmem:[#allocation2 + $0xd8] sm:$0xff] 0.0
          %513 = vst [vmem:[#allocation2 + $0xe0] sm:$0xff] 0.0
          %514 = vst [vmem:[#allocation2 + $0xe8] sm:$0xff] 0.0
          %515 = vst [vmem:[#allocation2 + $0xf0] sm:$0xff] 0.0
          %516 = vst [vmem:[#allocation2 + $0xf8] sm:$0xff] 0.0
        $region74: #{lightgcn_forward.4} parent=65 // pred_fallthru
          _
        %s517 = sld [smem:[#allocation5 + %s32]]
        %p518 = scmp.lt.s32.totalorder %s33, %s517
        // Predicated region
        $region75: #{lightgcn_forward.4} parent=65 // pred_check
          %p519 = pneg %p518
        $region76: #{lightgcn_forward.4} parent=65 // pred_check_branch
          %521 = sbr.rel (%p519) target = $region78
        $region77: #{lightgcn_forward.4} parent=65 // pred_region
          %v522 = vld [vmem:[#allocation2] sm:$0xff]
          %v523 = vld [vmem:[#allocation2 + $0x8] sm:$0xff]
          %v524 = vld [vmem:[#allocation2 + $0x10] sm:$0xff]
          %v525 = vld [vmem:[#allocation2 + $0x18] sm:$0xff]
          %v526 = vld [vmem:[#allocation2 + $0x20] sm:$0xff]
          %v527 = vld [vmem:[#allocation2 + $0x28] sm:$0xff]
          %v528 = vld [vmem:[#allocation2 + $0x30] sm:$0xff]
          %v529 = vld [vmem:[#allocation2 + $0x38] sm:$0xff]
          %v530 = vld [vmem:[#allocation2 + $0x40] sm:$0xff]
          %v531 = vld [vmem:[#allocation2 + $0x48] sm:$0xff]
          %v532 = vld [vmem:[#allocation2 + $0x50] sm:$0xff]
          %v533 = vld [vmem:[#allocation2 + $0x58] sm:$0xff]
          %v534 = vld [vmem:[#allocation2 + $0x60] sm:$0xff]
          %v535 = vld [vmem:[#allocation2 + $0x68] sm:$0xff]
          %v536 = vld [vmem:[#allocation2 + $0x70] sm:$0xff]
          %v537 = vld [vmem:[#allocation2 + $0x78] sm:$0xff]
          %v538 = vld [vmem:[#allocation2 + $0x80] sm:$0xff]
          %v539 = vld [vmem:[#allocation2 + $0x88] sm:$0xff]
          %v540 = vld [vmem:[#allocation2 + $0x90] sm:$0xff]
          %v541 = vld [vmem:[#allocation2 + $0x98] sm:$0xff]
          %v542 = vld [vmem:[#allocation2 + $0xa0] sm:$0xff]
          %v543 = vld [vmem:[#allocation2 + $0xa8] sm:$0xff]
          %v544 = vld [vmem:[#allocation2 + $0xb0] sm:$0xff]
          %v545 = vld [vmem:[#allocation2 + $0xb8] sm:$0xff]
          %v546 = vld [vmem:[#allocation2 + $0xc0] sm:$0xff]
          %v547 = vld [vmem:[#allocation2 + $0xc8] sm:$0xff]
          %v548 = vld [vmem:[#allocation2 + $0xd0] sm:$0xff]
          %v549 = vld [vmem:[#allocation2 + $0xd8] sm:$0xff]
          %v550 = vld [vmem:[#allocation2 + $0xe0] sm:$0xff]
          %v551 = vld [vmem:[#allocation2 + $0xe8] sm:$0xff]
          %v552 = vld [vmem:[#allocation2 + $0xf0] sm:$0xff]
          %v553 = vld [vmem:[#allocation2 + $0xf8] sm:$0xff]
          %v554 = vld [vmem:[%s404] sm:$0xff]
          %v555 = vld [vmem:[%s404 + $0x8] sm:$0xff]
          %v556 = vld [vmem:[%s404 + $0x10] sm:$0xff]
          %v557 = vld [vmem:[%s404 + $0x18] sm:$0xff]
          %v558 = vld [vmem:[%s404 + $0x20] sm:$0xff]
          %v559 = vld [vmem:[%s404 + $0x28] sm:$0xff]
          %v560 = vld [vmem:[%s404 + $0x30] sm:$0xff]
          %v561 = vld [vmem:[%s404 + $0x38] sm:$0xff]
          %v562 = vld [vmem:[%s404 + $0x40] sm:$0xff]
          %v563 = vld [vmem:[%s404 + $0x48] sm:$0xff]
          %v564 = vld [vmem:[%s404 + $0x50] sm:$0xff]
          %v565 = vld [vmem:[%s404 + $0x58] sm:$0xff]
          %v566 = vld [vmem:[%s404 + $0x60] sm:$0xff]
          %v567 = vld [vmem:[%s404 + $0x68] sm:$0xff]
          %v568 = vld [vmem:[%s404 + $0x70] sm:$0xff]
          %v569 = vld [vmem:[%s404 + $0x78] sm:$0xff]
          %v570 = vld [vmem:[%s404 + $0x80] sm:$0xff]
          %v571 = vld [vmem:[%s404 + $0x88] sm:$0xff]
          %v572 = vld [vmem:[%s404 + $0x90] sm:$0xff]
          %v573 = vld [vmem:[%s404 + $0x98] sm:$0xff]
          %v574 = vld [vmem:[%s404 + $0xa0] sm:$0xff]
          %v575 = vld [vmem:[%s404 + $0xa8] sm:$0xff]
          %v576 = vld [vmem:[%s404 + $0xb0] sm:$0xff]
          %v577 = vld [vmem:[%s404 + $0xb8] sm:$0xff]
          %v578 = vld [vmem:[%s404 + $0xc0] sm:$0xff]
          %v579 = vld [vmem:[%s404 + $0xc8] sm:$0xff]
          %v580 = vld [vmem:[%s404 + $0xd0] sm:$0xff]
          %v581 = vld [vmem:[%s404 + $0xd8] sm:$0xff]
          %v582 = vld [vmem:[%s404 + $0xe0] sm:$0xff]
          %v583 = vld [vmem:[%s404 + $0xe8] sm:$0xff]
          %v584 = vld [vmem:[%s404 + $0xf0] sm:$0xff]
          %v585 = vld [vmem:[%s404 + $0xf8] sm:$0xff]
          %v586 = vld [vmem:[%s457] sm:$0xf]
          %v587 = vld [vmem:[%s457 + $0x4] sm:$0xf]
          %v588 = vld [vmem:[%s457 + $0x8] sm:$0xf]
          %v589 = vld [vmem:[%s457 + $0xc] sm:$0xf]
          %v590 = vld [vmem:[%s457 + $0x10] sm:$0xf]
          %v591 = vld [vmem:[%s457 + $0x14] sm:$0xf]
          %v592 = vld [vmem:[%s457 + $0x18] sm:$0xf]
          %v593 = vld [vmem:[%s457 + $0x1c] sm:$0xf]
          %v594 = vld [vmem:[%s457 + $0x20] sm:$0xf]
          %v595 = vld [vmem:[%s457 + $0x24] sm:$0xf]
          %v596 = vld [vmem:[%s457 + $0x28] sm:$0xf]
          %v597 = vld [vmem:[%s457 + $0x2c] sm:$0xf]
          %v598 = vld [vmem:[%s457 + $0x30] sm:$0xf]
          %v599 = vld [vmem:[%s457 + $0x34] sm:$0xf]
          %v600 = vld [vmem:[%s457 + $0x38] sm:$0xf]
          %v601 = vld [vmem:[%s457 + $0x3c] sm:$0xf]
          %v602 = vld [vmem:[%s457 + $0x40] sm:$0xf]
          %v603 = vld [vmem:[%s457 + $0x44] sm:$0xf]
          %v604 = vld [vmem:[%s457 + $0x48] sm:$0xf]
          %v605 = vld [vmem:[%s457 + $0x4c] sm:$0xf]
          %v606 = vld [vmem:[%s457 + $0x50] sm:$0xf]
          %v607 = vld [vmem:[%s457 + $0x54] sm:$0xf]
          %v608 = vld [vmem:[%s457 + $0x58] sm:$0xf]
          %v609 = vld [vmem:[%s457 + $0x5c] sm:$0xf]
          %v610 = vld [vmem:[%s457 + $0x60] sm:$0xf]
          %v611 = vld [vmem:[%s457 + $0x64] sm:$0xf]
          %v612 = vld [vmem:[%s457 + $0x68] sm:$0xf]
          %v613 = vld [vmem:[%s457 + $0x6c] sm:$0xf]
          %v614 = vld [vmem:[%s457 + $0x70] sm:$0xf]
          %v615 = vld [vmem:[%s457 + $0x74] sm:$0xf]
          %v616 = vld [vmem:[%s457 + $0x78] sm:$0xf]
          %v617 = vld [vmem:[%s457 + $0x7c] sm:$0xf]
          %v650 = vunpack.c.l.b16 %v554
          %v651 = vunpack.c.h.b16 %v554
          %v652 = vunpack.c.l.b16 %v555
          %v653 = vunpack.c.h.b16 %v555
          %v654 = vunpack.c.l.b16 %v556
          %v655 = vunpack.c.h.b16 %v556
          %v656 = vunpack.c.l.b16 %v557
          %v657 = vunpack.c.h.b16 %v557
          %v658 = vunpack.c.l.b16 %v558
          %v659 = vunpack.c.h.b16 %v558
          %v660 = vunpack.c.l.b16 %v559
          %v661 = vunpack.c.h.b16 %v559
          %v662 = vunpack.c.l.b16 %v560
          %v663 = vunpack.c.h.b16 %v560
          %v664 = vunpack.c.l.b16 %v561
          %v665 = vunpack.c.h.b16 %v561
          %v666 = vunpack.c.l.b16 %v562
          %v667 = vunpack.c.h.b16 %v562
          %v668 = vunpack.c.l.b16 %v563
          %v669 = vunpack.c.h.b16 %v563
          %v670 = vunpack.c.l.b16 %v564
          %v671 = vunpack.c.h.b16 %v564
          %v672 = vunpack.c.l.b16 %v565
          %v673 = vunpack.c.h.b16 %v565
          %v674 = vunpack.c.l.b16 %v566
          %v675 = vunpack.c.h.b16 %v566
          %v676 = vunpack.c.l.b16 %v567
          %v677 = vunpack.c.h.b16 %v567
          %v678 = vunpack.c.l.b16 %v568
          %v679 = vunpack.c.h.b16 %v568
          %v680 = vunpack.c.l.b16 %v569
          %v681 = vunpack.c.h.b16 %v569
          %v682 = vunpack.c.l.b16 %v570
          %v683 = vunpack.c.h.b16 %v570
          %v684 = vunpack.c.l.b16 %v571
          %v685 = vunpack.c.h.b16 %v571
          %v686 = vunpack.c.l.b16 %v572
          %v687 = vunpack.c.h.b16 %v572
          %v688 = vunpack.c.l.b16 %v573
          %v689 = vunpack.c.h.b16 %v573
          %v690 = vunpack.c.l.b16 %v574
          %v691 = vunpack.c.h.b16 %v574
          %v692 = vunpack.c.l.b16 %v575
          %v693 = vunpack.c.h.b16 %v575
          %v694 = vunpack.c.l.b16 %v576
          %v695 = vunpack.c.h.b16 %v576
          %v696 = vunpack.c.l.b16 %v577
          %v697 = vunpack.c.h.b16 %v577
          %v698 = vunpack.c.l.b16 %v578
          %v699 = vunpack.c.h.b16 %v578
          %v700 = vunpack.c.l.b16 %v579
          %v701 = vunpack.c.h.b16 %v579
          %v702 = vunpack.c.l.b16 %v580
          %v703 = vunpack.c.h.b16 %v580
          %v704 = vunpack.c.l.b16 %v581
          %v705 = vunpack.c.h.b16 %v581
          %v706 = vunpack.c.l.b16 %v582
          %v707 = vunpack.c.h.b16 %v582
          %v708 = vunpack.c.l.b16 %v583
          %v709 = vunpack.c.h.b16 %v583
          %v710 = vunpack.c.l.b16 %v584
          %v711 = vunpack.c.h.b16 %v584
          %v712 = vunpack.c.l.b16 %v585
          %v713 = vunpack.c.h.b16 %v585
          %v714 = vpack.c.b16 %v652, %v650
          %v715 = vpack.c.b16 %v653, %v651
          %v716 = vpack.c.b16 %v656, %v654
          %v717 = vpack.c.b16 %v657, %v655
          %v718 = vpack.c.b16 %v660, %v658
          %v719 = vpack.c.b16 %v661, %v659
          %v720 = vpack.c.b16 %v664, %v662
          %v721 = vpack.c.b16 %v665, %v663
          %v722 = vpack.c.b16 %v668, %v666
          %v723 = vpack.c.b16 %v669, %v667
          %v724 = vpack.c.b16 %v672, %v670
          %v725 = vpack.c.b16 %v673, %v671
          %v726 = vpack.c.b16 %v676, %v674
          %v727 = vpack.c.b16 %v677, %v675
          %v728 = vpack.c.b16 %v680, %v678
          %v729 = vpack.c.b16 %v681, %v679
          %v730 = vpack.c.b16 %v684, %v682
          %v731 = vpack.c.b16 %v685, %v683
          %v732 = vpack.c.b16 %v688, %v686
          %v733 = vpack.c.b16 %v689, %v687
          %v734 = vpack.c.b16 %v692, %v690
          %v735 = vpack.c.b16 %v693, %v691
          %v736 = vpack.c.b16 %v696, %v694
          %v737 = vpack.c.b16 %v697, %v695
          %v738 = vpack.c.b16 %v700, %v698
          %v739 = vpack.c.b16 %v701, %v699
          %v740 = vpack.c.b16 %v704, %v702
          %v741 = vpack.c.b16 %v705, %v703
          %v742 = vpack.c.b16 %v708, %v706
          %v743 = vpack.c.b16 %v709, %v707
          %v744 = vpack.c.b16 %v712, %v710
          %v745 = vpack.c.b16 %v713, %v711
          %v810 = vunpack.c.l.b16 %v586
          %v811 = vunpack.c.l.b16 %v587
          %v812 = vunpack.c.l.b16 %v588
          %v813 = vunpack.c.l.b16 %v589
          %v814 = vunpack.c.l.b16 %v590
          %v815 = vunpack.c.l.b16 %v591
          %v816 = vunpack.c.l.b16 %v592
          %v817 = vunpack.c.l.b16 %v593
          %v818 = vunpack.c.l.b16 %v594
          %v819 = vunpack.c.l.b16 %v595
          %v820 = vunpack.c.l.b16 %v596
          %v821 = vunpack.c.l.b16 %v597
          %v822 = vunpack.c.l.b16 %v598
          %v823 = vunpack.c.l.b16 %v599
          %v824 = vunpack.c.l.b16 %v600
          %v825 = vunpack.c.l.b16 %v601
          %v826 = vunpack.c.l.b16 %v602
          %v827 = vunpack.c.l.b16 %v603
          %v828 = vunpack.c.l.b16 %v604
          %v829 = vunpack.c.l.b16 %v605
          %v830 = vunpack.c.l.b16 %v606
          %v831 = vunpack.c.l.b16 %v607
          %v832 = vunpack.c.l.b16 %v608
          %v833 = vunpack.c.l.b16 %v609
          %v834 = vunpack.c.l.b16 %v610
          %v835 = vunpack.c.l.b16 %v611
          %v836 = vunpack.c.l.b16 %v612
          %v837 = vunpack.c.l.b16 %v613
          %v838 = vunpack.c.l.b16 %v614
          %v839 = vunpack.c.l.b16 %v615
          %v840 = vunpack.c.l.b16 %v616
          %v841 = vunpack.c.l.b16 %v617
          %v842 = vpack.c.b16 %v811, %v810
          %v843 = vpack.c.b16 %v813, %v812
          %v844 = vpack.c.b16 %v815, %v814
          %v845 = vpack.c.b16 %v817, %v816
          %v846 = vpack.c.b16 %v819, %v818
          %v847 = vpack.c.b16 %v821, %v820
          %v848 = vpack.c.b16 %v823, %v822
          %v849 = vpack.c.b16 %v825, %v824
          %v850 = vpack.c.b16 %v827, %v826
          %v851 = vpack.c.b16 %v829, %v828
          %v852 = vpack.c.b16 %v831, %v830
          %v853 = vpack.c.b16 %v833, %v832
          %v854 = vpack.c.b16 %v835, %v834
          %v855 = vpack.c.b16 %v837, %v836
          %v856 = vpack.c.b16 %v839, %v838
          %v857 = vpack.c.b16 %v841, %v840
          %874 = vmatprep.subr.bf16.mxu0 0
          %875 = vmatpush1.bf16.msra.mxu0 %v842
          %876 = vmatprep.subr.bf16.mxu0 0
          %877 = vmatpush1.bf16.msra.mxu0 %v843
          %878 = vmatprep.subr.bf16.mxu0 0
          %879 = vmatpush1.bf16.msra.mxu0 %v844
          %880 = vmatprep.subr.bf16.mxu0 0
          %881 = vmatpush1.bf16.msra.mxu0 %v845
          %882 = vmatprep.subr.bf16.mxu0 0
          %883 = vmatpush1.bf16.msra.mxu0 %v846
          %884 = vmatprep.subr.bf16.mxu0 0
          %885 = vmatpush1.bf16.msra.mxu0 %v847
          %886 = vmatprep.subr.bf16.mxu0 0
          %887 = vmatpush1.bf16.msra.mxu0 %v848
          %888 = vmatprep.subr.bf16.mxu0 0
          %889 = vmatpush1.bf16.msra.mxu0 %v849
          %890 = vmatprep.subr.bf16.mxu0 0
          %891 = vmatpush1.bf16.msra.mxu0 %v850
          %892 = vmatprep.subr.bf16.mxu0 0
          %893 = vmatpush1.bf16.msra.mxu0 %v851
          %894 = vmatprep.subr.bf16.mxu0 0
          %895 = vmatpush1.bf16.msra.mxu0 %v852
          %896 = vmatprep.subr.bf16.mxu0 0
          %897 = vmatpush1.bf16.msra.mxu0 %v853
          %898 = vmatprep.subr.bf16.mxu0 0
          %899 = vmatpush1.bf16.msra.mxu0 %v854
          %900 = vmatprep.subr.bf16.mxu0 0
          %901 = vmatpush1.bf16.msra.mxu0 %v855
          %902 = vmatprep.subr.bf16.mxu0 0
          %903 = vmatpush1.bf16.msra.mxu0 %v856
          %904 = vmatprep.subr.bf16.mxu0 0
          %905 = vmatpush1.bf16.msra.mxu0 %v857
          %906 = vmatprep.mubr.bf16.mxu0 %v715
          %907 = vmatmul.mubr.bf16.gmra.mrb[0].mxu0 %v714
          %v908 = vpop.f32.mrb[0].mxu0
          %v909 = vadd.f32 0.0, %v908
          %v910 = vpop.f32.mrb[0].mxu0
          %v911 = vpop.f32.mrb[0].mxu0
          %v912 = vadd.f32 0.0, %v911
          %v913 = vpop.f32.mrb[0].mxu0
          %914 = vmatprep.mubr.bf16.mxu0 %v717
          %915 = vmatmul.mubr.bf16.gmra.mrb[0].mxu0 %v716
          %v916 = vpop.f32.mrb[0].mxu0
          %v917 = vadd.f32 0.0, %v916
          %v918 = vpop.f32.mrb[0].mxu0
          %v919 = vpop.f32.mrb[0].mxu0
          %v920 = vadd.f32 0.0, %v919
          %v921 = vpop.f32.mrb[0].mxu0
          %922 = vmatprep.mubr.bf16.mxu0 %v719
          %923 = vmatmul.mubr.bf16.gmra.mrb[0].mxu0 %v718
          %v924 = vpop.f32.mrb[0].mxu0
          %v925 = vadd.f32 0.0, %v924
          %v926 = vpop.f32.mrb[0].mxu0
          %v927 = vpop.f32.mrb[0].mxu0
          %v928 = vadd.f32 0.0, %v927
          %v929 = vpop.f32.mrb[0].mxu0
          %930 = vmatprep.mubr.bf16.mxu0 %v721
          %931 = vmatmul.mubr.bf16.gmra.mrb[0].mxu0 %v720
          %v932 = vpop.f32.mrb[0].mxu0
          %v933 = vadd.f32 0.0, %v932
          %v934 = vpop.f32.mrb[0].mxu0
          %v935 = vpop.f32.mrb[0].mxu0
          %v936 = vadd.f32 0.0, %v935
          %v937 = vpop.f32.mrb[0].mxu0
          %938 = vmatprep.mubr.bf16.mxu0 %v723
          %939 = vmatmul.mubr.bf16.gmra.mrb[0].mxu0 %v722
          %v940 = vpop.f32.mrb[0].mxu0
          %v941 = vadd.f32 0.0, %v940
          %v942 = vpop.f32.mrb[0].mxu0
          %v943 = vpop.f32.mrb[0].mxu0
          %v944 = vadd.f32 0.0, %v943
          %v945 = vpop.f32.mrb[0].mxu0
          %946 = vmatprep.mubr.bf16.mxu0 %v725
          %947 = vmatmul.mubr.bf16.gmra.mrb[0].mxu0 %v724
          %v948 = vpop.f32.mrb[0].mxu0
          %v949 = vadd.f32 0.0, %v948
          %v950 = vpop.f32.mrb[0].mxu0
          %v951 = vpop.f32.mrb[0].mxu0
          %v952 = vadd.f32 0.0, %v951
          %v953 = vpop.f32.mrb[0].mxu0
          %954 = vmatprep.mubr.bf16.mxu0 %v727
          %955 = vmatmul.mubr.bf16.gmra.mrb[0].mxu0 %v726
          %v956 = vpop.f32.mrb[0].mxu0
          %v957 = vadd.f32 0.0, %v956
          %v958 = vpop.f32.mrb[0].mxu0
          %v959 = vpop.f32.mrb[0].mxu0
          %v960 = vadd.f32 0.0, %v959
          %v961 = vpop.f32.mrb[0].mxu0
          %962 = vmatprep.mubr.bf16.mxu0 %v729
          %963 = vmatmul.mubr.bf16.gmra.mrb[0].mxu0 %v728
          %v964 = vpop.f32.mrb[0].mxu0
          %v965 = vadd.f32 0.0, %v964
          %v966 = vpop.f32.mrb[0].mxu0
          %v967 = vpop.f32.mrb[0].mxu0
          %v968 = vadd.f32 0.0, %v967
          %v969 = vpop.f32.mrb[0].mxu0
          %970 = vmatprep.mubr.bf16.mxu0 %v731
          %971 = vmatmul.mubr.bf16.gmra.mrb[0].mxu0 %v730
          %v972 = vpop.f32.mrb[0].mxu0
          %v973 = vadd.f32 0.0, %v972
          %v974 = vpop.f32.mrb[0].mxu0
          %v975 = vpop.f32.mrb[0].mxu0
          %v976 = vadd.f32 0.0, %v975
          %v977 = vpop.f32.mrb[0].mxu0
          %978 = vmatprep.mubr.bf16.mxu0 %v733
          %979 = vmatmul.mubr.bf16.gmra.mrb[0].mxu0 %v732
          %v980 = vpop.f32.mrb[0].mxu0
          %v981 = vadd.f32 0.0, %v980
          %v982 = vpop.f32.mrb[0].mxu0
          %v983 = vpop.f32.mrb[0].mxu0
          %v984 = vadd.f32 0.0, %v983
          %v985 = vpop.f32.mrb[0].mxu0
          %986 = vmatprep.mubr.bf16.mxu0 %v735
          %987 = vmatmul.mubr.bf16.gmra.mrb[0].mxu0 %v734
          %v988 = vpop.f32.mrb[0].mxu0
          %v989 = vadd.f32 0.0, %v988
          %v990 = vpop.f32.mrb[0].mxu0
          %v991 = vpop.f32.mrb[0].mxu0
          %v992 = vadd.f32 0.0, %v991
          %v993 = vpop.f32.mrb[0].mxu0
          %994 = vmatprep.mubr.bf16.mxu0 %v737
          %995 = vmatmul.mubr.bf16.gmra.mrb[0].mxu0 %v736
          %v996 = vpop.f32.mrb[0].mxu0
          %v997 = vadd.f32 0.0, %v996
          %v998 = vpop.f32.mrb[0].mxu0
          %v999 = vpop.f32.mrb[0].mxu0
          %v1000 = vadd.f32 0.0, %v999
          %v1001 = vpop.f32.mrb[0].mxu0
          %1002 = vmatprep.mubr.bf16.mxu0 %v739
          %1003 = vmatmul.mubr.bf16.gmra.mrb[0].mxu0 %v738
          %v1004 = vpop.f32.mrb[0].mxu0
          %v1005 = vadd.f32 0.0, %v1004
          %v1006 = vpop.f32.mrb[0].mxu0
          %v1007 = vpop.f32.mrb[0].mxu0
          %v1008 = vadd.f32 0.0, %v1007
          %v1009 = vpop.f32.mrb[0].mxu0
          %1010 = vmatprep.mubr.bf16.mxu0 %v741
          %1011 = vmatmul.mubr.bf16.gmra.mrb[0].mxu0 %v740
          %v1012 = vpop.f32.mrb[0].mxu0
          %v1013 = vadd.f32 0.0, %v1012
          %v1014 = vpop.f32.mrb[0].mxu0
          %v1015 = vpop.f32.mrb[0].mxu0
          %v1016 = vadd.f32 0.0, %v1015
          %v1017 = vpop.f32.mrb[0].mxu0
          %1018 = vmatprep.mubr.bf16.mxu0 %v743
          %1019 = vmatmul.mubr.bf16.gmra.mrb[0].mxu0 %v742
          %v1020 = vpop.f32.mrb[0].mxu0
          %v1021 = vadd.f32 0.0, %v1020
          %v1022 = vpop.f32.mrb[0].mxu0
          %v1023 = vpop.f32.mrb[0].mxu0
          %v1024 = vadd.f32 0.0, %v1023
          %v1025 = vpop.f32.mrb[0].mxu0
          %1026 = vmatprep.mubr.bf16.mxu0 %v745
          %1027 = vmatmul.mubr.bf16.gmra.mrb[0].mxu0 %v744
          %v1028 = vpop.f32.mrb[0].mxu0
          %v1029 = vadd.f32 0.0, %v1028
          %v1030 = vpop.f32.mrb[0].mxu0
          %v1031 = vpop.f32.mrb[0].mxu0
          %v1032 = vadd.f32 0.0, %v1031
          %v1033 = vpop.f32.mrb[0].mxu0
          %1034 = vdwg.mxu0
          %v1035 = vadd.f32 %v522, %v909
          %v1036 = vadd.f32 %v523, %v912
          %v1037 = vadd.f32 %v524, %v917
          %v1038 = vadd.f32 %v525, %v920
          %v1039 = vadd.f32 %v526, %v925
          %v1040 = vadd.f32 %v527, %v928
          %v1041 = vadd.f32 %v528, %v933
          %v1042 = vadd.f32 %v529, %v936
          %v1043 = vadd.f32 %v530, %v941
          %v1044 = vadd.f32 %v531, %v944
          %v1045 = vadd.f32 %v532, %v949
          %v1046 = vadd.f32 %v533, %v952
          %v1047 = vadd.f32 %v534, %v957
          %v1048 = vadd.f32 %v535, %v960
          %v1049 = vadd.f32 %v536, %v965
          %v1050 = vadd.f32 %v537, %v968
          %v1051 = vadd.f32 %v538, %v973
          %v1052 = vadd.f32 %v539, %v976
          %v1053 = vadd.f32 %v540, %v981
          %v1054 = vadd.f32 %v541, %v984
          %v1055 = vadd.f32 %v542, %v989
          %v1056 = vadd.f32 %v543, %v992
          %v1057 = vadd.f32 %v544, %v997
          %v1058 = vadd.f32 %v545, %v1000
          %v1059 = vadd.f32 %v546, %v1005
          %v1060 = vadd.f32 %v547, %v1008
          %v1061 = vadd.f32 %v548, %v1013
          %v1062 = vadd.f32 %v549, %v1016
          %v1063 = vadd.f32 %v550, %v1021
          %v1064 = vadd.f32 %v551, %v1024
          %v1065 = vadd.f32 %v552, %v1029
          %v1066 = vadd.f32 %v553, %v1032
          %1067 = vst [vmem:[#allocation2] sm:$0xff] %v1035
          %1068 = vst [vmem:[#allocation2 + $0x8] sm:$0xff] %v1036
          %1069 = vst [vmem:[#allocation2 + $0x10] sm:$0xff] %v1037
          %1070 = vst [vmem:[#allocation2 + $0x18] sm:$0xff] %v1038
          %1071 = vst [vmem:[#allocation2 + $0x20] sm:$0xff] %v1039
          %1072 = vst [vmem:[#allocation2 + $0x28] sm:$0xff] %v1040
          %1073 = vst [vmem:[#allocation2 + $0x30] sm:$0xff] %v1041
          %1074 = vst [vmem:[#allocation2 + $0x38] sm:$0xff] %v1042
          %1075 = vst [vmem:[#allocation2 + $0x40] sm:$0xff] %v1043
          %1076 = vst [vmem:[#allocation2 + $0x48] sm:$0xff] %v1044
          %1077 = vst [vmem:[#allocation2 + $0x50] sm:$0xff] %v1045
          %1078 = vst [vmem:[#allocation2 + $0x58] sm:$0xff] %v1046
          %1079 = vst [vmem:[#allocation2 + $0x60] sm:$0xff] %v1047
          %1080 = vst [vmem:[#allocation2 + $0x68] sm:$0xff] %v1048
          %1081 = vst [vmem:[#allocation2 + $0x70] sm:$0xff] %v1049
          %1082 = vst [vmem:[#allocation2 + $0x78] sm:$0xff] %v1050
          %1083 = vst [vmem:[#allocation2 + $0x80] sm:$0xff] %v1051
          %1084 = vst [vmem:[#allocation2 + $0x88] sm:$0xff] %v1052
          %1085 = vst [vmem:[#allocation2 + $0x90] sm:$0xff] %v1053
          %1086 = vst [vmem:[#allocation2 + $0x98] sm:$0xff] %v1054
          %1087 = vst [vmem:[#allocation2 + $0xa0] sm:$0xff] %v1055
          %1088 = vst [vmem:[#allocation2 + $0xa8] sm:$0xff] %v1056
          %1089 = vst [vmem:[#allocation2 + $0xb0] sm:$0xff] %v1057
          %1090 = vst [vmem:[#allocation2 + $0xb8] sm:$0xff] %v1058
          %1091 = vst [vmem:[#allocation2 + $0xc0] sm:$0xff] %v1059
          %1092 = vst [vmem:[#allocation2 + $0xc8] sm:$0xff] %v1060
          %1093 = vst [vmem:[#allocation2 + $0xd0] sm:$0xff] %v1061
          %1094 = vst [vmem:[#allocation2 + $0xd8] sm:$0xff] %v1062
          %1095 = vst [vmem:[#allocation2 + $0xe0] sm:$0xff] %v1063
          %1096 = vst [vmem:[#allocation2 + $0xe8] sm:$0xff] %v1064
          %1097 = vst [vmem:[#allocation2 + $0xf0] sm:$0xff] %v1065
          %1098 = vst [vmem:[#allocation2 + $0xf8] sm:$0xff] %v1066
        $region78: #{lightgcn_forward.4} parent=65 // pred_fallthru
          _
        %p1099 = scmp.eq.s32.totalorder %s33, 2
        // Predicated region
        $region79: #{lightgcn_forward.4} parent=65 // pred_check
          %p1100 = pneg %p1099
        $region80: #{lightgcn_forward.4} parent=65 // pred_check_branch
          %1102 = sbr.rel (%p1100) target = $region82
        $region81: #{lightgcn_forward.4} parent=65 // pred_region
          %v1103 = vld [vmem:[#allocation2] sm:$0xff]
          %v1104 = vld [vmem:[#allocation2 + $0x8] sm:$0xff]
          %v1105 = vld [vmem:[#allocation2 + $0x10] sm:$0xff]
          %v1106 = vld [vmem:[#allocation2 + $0x18] sm:$0xff]
          %v1107 = vld [vmem:[#allocation2 + $0x20] sm:$0xff]
          %v1108 = vld [vmem:[#allocation2 + $0x28] sm:$0xff]
          %v1109 = vld [vmem:[#allocation2 + $0x30] sm:$0xff]
          %v1110 = vld [vmem:[#allocation2 + $0x38] sm:$0xff]
          %v1111 = vld [vmem:[#allocation2 + $0x40] sm:$0xff]
          %v1112 = vld [vmem:[#allocation2 + $0x48] sm:$0xff]
          %v1113 = vld [vmem:[#allocation2 + $0x50] sm:$0xff]
          %v1114 = vld [vmem:[#allocation2 + $0x58] sm:$0xff]
          %v1115 = vld [vmem:[#allocation2 + $0x60] sm:$0xff]
          %v1116 = vld [vmem:[#allocation2 + $0x68] sm:$0xff]
          %v1117 = vld [vmem:[#allocation2 + $0x70] sm:$0xff]
          %v1118 = vld [vmem:[#allocation2 + $0x78] sm:$0xff]
          %v1119 = vld [vmem:[#allocation2 + $0x80] sm:$0xff]
          %v1120 = vld [vmem:[#allocation2 + $0x88] sm:$0xff]
          %v1121 = vld [vmem:[#allocation2 + $0x90] sm:$0xff]
          %v1122 = vld [vmem:[#allocation2 + $0x98] sm:$0xff]
          %v1123 = vld [vmem:[#allocation2 + $0xa0] sm:$0xff]
          %v1124 = vld [vmem:[#allocation2 + $0xa8] sm:$0xff]
          %v1125 = vld [vmem:[#allocation2 + $0xb0] sm:$0xff]
          %v1126 = vld [vmem:[#allocation2 + $0xb8] sm:$0xff]
          %v1127 = vld [vmem:[#allocation2 + $0xc0] sm:$0xff]
          %v1128 = vld [vmem:[#allocation2 + $0xc8] sm:$0xff]
          %v1129 = vld [vmem:[#allocation2 + $0xd0] sm:$0xff]
          %v1130 = vld [vmem:[#allocation2 + $0xd8] sm:$0xff]
          %v1131 = vld [vmem:[#allocation2 + $0xe0] sm:$0xff]
          %v1132 = vld [vmem:[#allocation2 + $0xe8] sm:$0xff]
          %v1133 = vld [vmem:[#allocation2 + $0xf0] sm:$0xff]
          %v1134 = vld [vmem:[#allocation2 + $0xf8] sm:$0xff]
          %v1135 = vpack.c.bf16 %v1104, %v1103
          %v1136 = vpack.c.bf16 %v1106, %v1105
          %v1137 = vpack.c.bf16 %v1108, %v1107
          %v1138 = vpack.c.bf16 %v1110, %v1109
          %v1139 = vpack.c.bf16 %v1112, %v1111
          %v1140 = vpack.c.bf16 %v1114, %v1113
          %v1141 = vpack.c.bf16 %v1116, %v1115
          %v1142 = vpack.c.bf16 %v1118, %v1117
          %v1143 = vpack.c.bf16 %v1120, %v1119
          %v1144 = vpack.c.bf16 %v1122, %v1121
          %v1145 = vpack.c.bf16 %v1124, %v1123
          %v1146 = vpack.c.bf16 %v1126, %v1125
          %v1147 = vpack.c.bf16 %v1128, %v1127
          %v1148 = vpack.c.bf16 %v1130, %v1129
          %v1149 = vpack.c.bf16 %v1132, %v1131
          %v1150 = vpack.c.bf16 %v1134, %v1133
          %v1167 = vunpack.c.l.b16 %v1135
          %v1168 = vunpack.c.h.b16 %v1135
          %v1169 = vunpack.c.l.b16 %v1136
          %v1170 = vunpack.c.h.b16 %v1136
          %v1171 = vunpack.c.l.b16 %v1137
          %v1172 = vunpack.c.h.b16 %v1137
          %v1173 = vunpack.c.l.b16 %v1138
          %v1174 = vunpack.c.h.b16 %v1138
          %v1175 = vunpack.c.l.b16 %v1139
          %v1176 = vunpack.c.h.b16 %v1139
          %v1177 = vunpack.c.l.b16 %v1140
          %v1178 = vunpack.c.h.b16 %v1140
          %v1179 = vunpack.c.l.b16 %v1141
          %v1180 = vunpack.c.h.b16 %v1141
          %v1181 = vunpack.c.l.b16 %v1142
          %v1182 = vunpack.c.h.b16 %v1142
          %v1183 = vunpack.c.l.b16 %v1143
          %v1184 = vunpack.c.h.b16 %v1143
          %v1185 = vunpack.c.l.b16 %v1144
          %v1186 = vunpack.c.h.b16 %v1144
          %v1187 = vunpack.c.l.b16 %v1145
          %v1188 = vunpack.c.h.b16 %v1145
          %v1189 = vunpack.c.l.b16 %v1146
          %v1190 = vunpack.c.h.b16 %v1146
          %v1191 = vunpack.c.l.b16 %v1147
          %v1192 = vunpack.c.h.b16 %v1147
          %v1193 = vunpack.c.l.b16 %v1148
          %v1194 = vunpack.c.h.b16 %v1148
          %v1195 = vunpack.c.l.b16 %v1149
          %v1196 = vunpack.c.h.b16 %v1149
          %v1197 = vunpack.c.l.b16 %v1150
          %v1198 = vunpack.c.h.b16 %v1150
          %v1199 = vpack.c.b16 %v1167, %v1167
          %v1200 = vpack.c.b16 %v1168, %v1168
          %v1201 = vpack.c.b16 %v1169, %v1169
          %v1202 = vpack.c.b16 %v1170, %v1170
          %v1203 = vpack.c.b16 %v1171, %v1171
          %v1204 = vpack.c.b16 %v1172, %v1172
          %v1205 = vpack.c.b16 %v1173, %v1173
          %v1206 = vpack.c.b16 %v1174, %v1174
          %v1207 = vpack.c.b16 %v1175, %v1175
          %v1208 = vpack.c.b16 %v1176, %v1176
          %v1209 = vpack.c.b16 %v1177, %v1177
          %v1210 = vpack.c.b16 %v1178, %v1178
          %v1211 = vpack.c.b16 %v1179, %v1179
          %v1212 = vpack.c.b16 %v1180, %v1180
          %v1213 = vpack.c.b16 %v1181, %v1181
          %v1214 = vpack.c.b16 %v1182, %v1182
          %v1215 = vpack.c.b16 %v1183, %v1183
          %v1216 = vpack.c.b16 %v1184, %v1184
          %v1217 = vpack.c.b16 %v1185, %v1185
          %v1218 = vpack.c.b16 %v1186, %v1186
          %v1219 = vpack.c.b16 %v1187, %v1187
          %v1220 = vpack.c.b16 %v1188, %v1188
          %v1221 = vpack.c.b16 %v1189, %v1189
          %v1222 = vpack.c.b16 %v1190, %v1190
          %v1223 = vpack.c.b16 %v1191, %v1191
          %v1224 = vpack.c.b16 %v1192, %v1192
          %v1225 = vpack.c.b16 %v1193, %v1193
          %v1226 = vpack.c.b16 %v1194, %v1194
          %v1227 = vpack.c.b16 %v1195, %v1195
          %v1228 = vpack.c.b16 %v1196, %v1196
          %v1229 = vpack.c.b16 %v1197, %v1197
          %v1230 = vpack.c.b16 %v1198, %v1198
          %1263 = vst [vmem:[%s472] sm:$0xf] %v1199
          %1264 = vst [vmem:[%s472 + $0x4] sm:$0xf] %v1200
          %1265 = vst [vmem:[%s472 + $0x8] sm:$0xf] %v1201
          %1266 = vst [vmem:[%s472 + $0xc] sm:$0xf] %v1202
          %1267 = vst [vmem:[%s472 + $0x10] sm:$0xf] %v1203
          %1268 = vst [vmem:[%s472 + $0x14] sm:$0xf] %v1204
          %1269 = vst [vmem:[%s472 + $0x18] sm:$0xf] %v1205
          %1270 = vst [vmem:[%s472 + $0x1c] sm:$0xf] %v1206
          %1271 = vst [vmem:[%s472 + $0x20] sm:$0xf] %v1207
          %1272 = vst [vmem:[%s472 + $0x24] sm:$0xf] %v1208
          %1273 = vst [vmem:[%s472 + $0x28] sm:$0xf] %v1209
          %1274 = vst [vmem:[%s472 + $0x2c] sm:$0xf] %v1210
          %1275 = vst [vmem:[%s472 + $0x30] sm:$0xf] %v1211
          %1276 = vst [vmem:[%s472 + $0x34] sm:$0xf] %v1212
          %1277 = vst [vmem:[%s472 + $0x38] sm:$0xf] %v1213
          %1278 = vst [vmem:[%s472 + $0x3c] sm:$0xf] %v1214
          %1279 = vst [vmem:[%s472 + $0x40] sm:$0xf] %v1215
          %1280 = vst [vmem:[%s472 + $0x44] sm:$0xf] %v1216
          %1281 = vst [vmem:[%s472 + $0x48] sm:$0xf] %v1217
          %1282 = vst [vmem:[%s472 + $0x4c] sm:$0xf] %v1218
          %1283 = vst [vmem:[%s472 + $0x50] sm:$0xf] %v1219
          %1284 = vst [vmem:[%s472 + $0x54] sm:$0xf] %v1220
          %1285 = vst [vmem:[%s472 + $0x58] sm:$0xf] %v1221
          %1286 = vst [vmem:[%s472 + $0x5c] sm:$0xf] %v1222
          %1287 = vst [vmem:[%s472 + $0x60] sm:$0xf] %v1223
          %1288 = vst [vmem:[%s472 + $0x64] sm:$0xf] %v1224
          %1289 = vst [vmem:[%s472 + $0x68] sm:$0xf] %v1225
          %1290 = vst [vmem:[%s472 + $0x6c] sm:$0xf] %v1226
          %1291 = vst [vmem:[%s472 + $0x70] sm:$0xf] %v1227
          %1292 = vst [vmem:[%s472 + $0x74] sm:$0xf] %v1228
          %1293 = vst [vmem:[%s472 + $0x78] sm:$0xf] %v1229
          %1294 = vst [vmem:[%s472 + $0x7c] sm:$0xf] %v1230
          %v1295 = vld [vmem:[%s466] sm:$0xff]
          %v1296 = vld [vmem:[%s466 + $0x8] sm:$0xff]
          %v1297 = vld [vmem:[%s466 + $0x10] sm:$0xff]
          %v1298 = vld [vmem:[%s466 + $0x18] sm:$0xff]
          %v1299 = vld [vmem:[%s466 + $0x20] sm:$0xff]
          %v1300 = vld [vmem:[%s466 + $0x28] sm:$0xff]
          %v1301 = vld [vmem:[%s466 + $0x30] sm:$0xff]
          %v1302 = vld [vmem:[%s466 + $0x38] sm:$0xff]
          %v1303 = vld [vmem:[%s466 + $0x40] sm:$0xff]
          %v1304 = vld [vmem:[%s466 + $0x48] sm:$0xff]
          %v1305 = vld [vmem:[%s466 + $0x50] sm:$0xff]
          %v1306 = vld [vmem:[%s466 + $0x58] sm:$0xff]
          %v1307 = vld [vmem:[%s466 + $0x60] sm:$0xff]
          %v1308 = vld [vmem:[%s466 + $0x68] sm:$0xff]
          %v1309 = vld [vmem:[%s466 + $0x70] sm:$0xff]
          %v1310 = vld [vmem:[%s466 + $0x78] sm:$0xff]
          %v1311 = vld [vmem:[%s466 + $0x80] sm:$0xff]
          %v1312 = vld [vmem:[%s466 + $0x88] sm:$0xff]
          %v1313 = vld [vmem:[%s466 + $0x90] sm:$0xff]
          %v1314 = vld [vmem:[%s466 + $0x98] sm:$0xff]
          %v1315 = vld [vmem:[%s466 + $0xa0] sm:$0xff]
          %v1316 = vld [vmem:[%s466 + $0xa8] sm:$0xff]
          %v1317 = vld [vmem:[%s466 + $0xb0] sm:$0xff]
          %v1318 = vld [vmem:[%s466 + $0xb8] sm:$0xff]
          %v1319 = vld [vmem:[%s466 + $0xc0] sm:$0xff]
          %v1320 = vld [vmem:[%s466 + $0xc8] sm:$0xff]
          %v1321 = vld [vmem:[%s466 + $0xd0] sm:$0xff]
          %v1322 = vld [vmem:[%s466 + $0xd8] sm:$0xff]
          %v1323 = vld [vmem:[%s466 + $0xe0] sm:$0xff]
          %v1324 = vld [vmem:[%s466 + $0xe8] sm:$0xff]
          %v1325 = vld [vmem:[%s466 + $0xf0] sm:$0xff]
          %v1326 = vld [vmem:[%s466 + $0xf8] sm:$0xff]
          %v1327 = vadd.f32 %v1295, %v1103
          %v1328 = vadd.f32 %v1296, %v1104
          %v1329 = vadd.f32 %v1297, %v1105
          %v1330 = vadd.f32 %v1298, %v1106
          %v1331 = vadd.f32 %v1299, %v1107
          %v1332 = vadd.f32 %v1300, %v1108
          %v1333 = vadd.f32 %v1301, %v1109
          %v1334 = vadd.f32 %v1302, %v1110
          %v1335 = vadd.f32 %v1303, %v1111
          %v1336 = vadd.f32 %v1304, %v1112
          %v1337 = vadd.f32 %v1305, %v1113
          %v1338 = vadd.f32 %v1306, %v1114
          %v1339 = vadd.f32 %v1307, %v1115
          %v1340 = vadd.f32 %v1308, %v1116
          %v1341 = vadd.f32 %v1309, %v1117
          %v1342 = vadd.f32 %v1310, %v1118
          %v1343 = vadd.f32 %v1311, %v1119
          %v1344 = vadd.f32 %v1312, %v1120
          %v1345 = vadd.f32 %v1313, %v1121
          %v1346 = vadd.f32 %v1314, %v1122
          %v1347 = vadd.f32 %v1315, %v1123
          %v1348 = vadd.f32 %v1316, %v1124
          %v1349 = vadd.f32 %v1317, %v1125
          %v1350 = vadd.f32 %v1318, %v1126
          %v1351 = vadd.f32 %v1319, %v1127
          %v1352 = vadd.f32 %v1320, %v1128
          %v1353 = vadd.f32 %v1321, %v1129
          %v1354 = vadd.f32 %v1322, %v1130
          %v1355 = vadd.f32 %v1323, %v1131
          %v1356 = vadd.f32 %v1324, %v1132
          %v1357 = vadd.f32 %v1325, %v1133
          %v1358 = vadd.f32 %v1326, %v1134
          %1359 = vst [vmem:[%s478] sm:$0xff] %v1327
          %1360 = vst [vmem:[%s478 + $0x8] sm:$0xff] %v1328
          %1361 = vst [vmem:[%s478 + $0x10] sm:$0xff] %v1329
          %1362 = vst [vmem:[%s478 + $0x18] sm:$0xff] %v1330
          %1363 = vst [vmem:[%s478 + $0x20] sm:$0xff] %v1331
          %1364 = vst [vmem:[%s478 + $0x28] sm:$0xff] %v1332
          %1365 = vst [vmem:[%s478 + $0x30] sm:$0xff] %v1333
          %1366 = vst [vmem:[%s478 + $0x38] sm:$0xff] %v1334
          %1367 = vst [vmem:[%s478 + $0x40] sm:$0xff] %v1335
          %1368 = vst [vmem:[%s478 + $0x48] sm:$0xff] %v1336
          %1369 = vst [vmem:[%s478 + $0x50] sm:$0xff] %v1337
          %1370 = vst [vmem:[%s478 + $0x58] sm:$0xff] %v1338
          %1371 = vst [vmem:[%s478 + $0x60] sm:$0xff] %v1339
          %1372 = vst [vmem:[%s478 + $0x68] sm:$0xff] %v1340
          %1373 = vst [vmem:[%s478 + $0x70] sm:$0xff] %v1341
          %1374 = vst [vmem:[%s478 + $0x78] sm:$0xff] %v1342
          %1375 = vst [vmem:[%s478 + $0x80] sm:$0xff] %v1343
          %1376 = vst [vmem:[%s478 + $0x88] sm:$0xff] %v1344
          %1377 = vst [vmem:[%s478 + $0x90] sm:$0xff] %v1345
          %1378 = vst [vmem:[%s478 + $0x98] sm:$0xff] %v1346
          %1379 = vst [vmem:[%s478 + $0xa0] sm:$0xff] %v1347
          %1380 = vst [vmem:[%s478 + $0xa8] sm:$0xff] %v1348
          %1381 = vst [vmem:[%s478 + $0xb0] sm:$0xff] %v1349
          %1382 = vst [vmem:[%s478 + $0xb8] sm:$0xff] %v1350
          %1383 = vst [vmem:[%s478 + $0xc0] sm:$0xff] %v1351
          %1384 = vst [vmem:[%s478 + $0xc8] sm:$0xff] %v1352
          %1385 = vst [vmem:[%s478 + $0xd0] sm:$0xff] %v1353
          %1386 = vst [vmem:[%s478 + $0xd8] sm:$0xff] %v1354
          %1387 = vst [vmem:[%s478 + $0xe0] sm:$0xff] %v1355
          %1388 = vst [vmem:[%s478 + $0xe8] sm:$0xff] %v1356
          %1389 = vst [vmem:[%s478 + $0xf0] sm:$0xff] %v1357
          %1390 = vst [vmem:[%s478 + $0xf8] sm:$0xff] %v1358
        $region82: #{lightgcn_forward.4} parent=65 // pred_fallthru
          _
        %s1391 = smul.u32 32, %s32
        %p1392 = scmp.lt.s32.totalorder %s1391, 95
        %s1393 = scalar_select %p1392, %s1391, 95
        %s1394 = smul.addr %s1393, 4
        %s1395 = scalar_lea.vmem %s5, %s1394
        %s1396 = smul.u32 32, %s32
        %p1397 = scmp.lt.s32.totalorder %s1396, 95
        %s1398 = scalar_select %p1397, %s1396, 95
        %s1399 = smul.addr %s1398, 8
        %s1400 = scalar_lea.vmem %s6, %s1399
        // Predicated region
        $region83: #{lightgcn_forward.4} parent=65 // pred_check
          %p1401 = pneg %p150
        $region84: #{lightgcn_forward.4} parent=65 // pred_check_branch
          %1403 = sbr.rel (%p1401) target = $region86
        $region85: #{lightgcn_forward.4} parent=65 // pred_region
          %s1404 = smul.u32 32, %s32
        $region86: #{lightgcn_forward.4} parent=65 // pred_fallthru
          _
        // Predicated region
        $region87: #{lightgcn_forward.4} parent=65 // pred_check
          %p1405 = pneg %p176
        $region88: #{lightgcn_forward.4} parent=65 // pred_check_branch
          %1407 = sbr.rel (%p1405) target = $region90
        $region89: #{lightgcn_forward.4} parent=65 // pred_region
          %s1408 = smul.u32 32, %s32
        $region90: #{lightgcn_forward.4} parent=65 // pred_fallthru
          _
      $region66: #{lightgcn_forward.4} parent=5 // pred_fallthru
        _
      %p1409 = scmp.le.s32.totalorder 2, %s23
      // Predicated region
      $region91: #{lightgcn_forward.4} parent=5 // pred_check
        %p1410 = pneg %p1409
      $region92: #{lightgcn_forward.4} parent=5 // pred_check_branch
        %1412 = sbr.rel (%p1410) target = $region94
      $region93: #{lightgcn_forward.4} parent=5 // pred_region
        %s1413 = ssub.s32 %s23, 2
        // Predicated region
        $region95: #{lightgcn_forward.4} parent=93 // pred_check
          %p1414 = pneg %p156
        $region96: #{lightgcn_forward.4} parent=93 // pred_check_branch
          %1416 = sbr.rel (%p1414) target = $region98
        $region97: #{lightgcn_forward.4} parent=93 // pred_region
          %s1417 = smul.u32 32, %s34
          %p1418 = scmp.lt.s32.totalorder %s1417, 95
          %s1419 = scalar_select %p1418, %s1417, 95
          %s1420 = smul.addr %s1419, 4
          %s1421 = scalar_lea.vmem %s5, %s1420
        $region98: #{lightgcn_forward.4} parent=93 // pred_fallthru
          _
        // Predicated region
        $region99: #{lightgcn_forward.4} parent=93 // pred_check
          %p1422 = pneg %p182
        $region100: #{lightgcn_forward.4} parent=93 // pred_check_branch
          %1424 = sbr.rel (%p1422) target = $region102
        $region101: #{lightgcn_forward.4} parent=93 // pred_region
          %s1425 = smul.u32 32, %s34
          %p1426 = scmp.lt.s32.totalorder %s1425, 95
          %s1427 = scalar_select %p1426, %s1425, 95
          %s1428 = smul.addr %s1427, 8
          %s1429 = scalar_lea.vmem %s6, %s1428
        $region102: #{lightgcn_forward.4} parent=93 // pred_fallthru
          _
      $region94: #{lightgcn_forward.4} parent=5 // pred_fallthru
        _
    $region6: #{lightgcn_forward.4} parent=1 // loop_footer
      %s27 = sadd.s32 1, %s23
    $region7: #{lightgcn_forward.4} parent=1 // loop_footer_branch
      %22 = sbr.rel target = $region3
    $region8: #{lightgcn_forward.4} parent=1 // loop_exit
      _

// kernel: lightgcn_forward.6
$region0: #{lightgcn_forward.6}
  #allocation0 [shape = 'u32[]', space=smem, size = 0x4, offset = 0x4, fixed_abs, tag = 'smem constant byte address 0x4 - core index']
  #allocation1 [shape = 'u32[144,128]{1,0:T(1,128)}', space=vmem, size = 0x12000, scoped, tag = 'internal scratch']
  #allocation2 [shape = 'f32[256,128]{1,0:T(8,128)}', space=vmem, size = 0x20000, scoped, tag = 'scratch operand']
  #allocation3 [shape = 's32[1]{0}', space=sflag, size = 0x4, scoped, tag = 'scoped memory for lightgcn_forward.6']
  #allocation4 [shape = 'u8[512]{0}', space=smem, size = 0x200, scoped, tag = 'prefetched SMEM operand 0']
  #allocation5 [shape = 'u8[512]{0}', space=smem, size = 0x200, scoped, tag = 'prefetched SMEM operand 1']
  %s0 = inlined_call_operand.vmem [shape: s32[9], index: 0, kind: input, shape index: {}]
  %s1 = inlined_call_operand.vmem [shape: s32[3], index: 1, kind: input, shape index: {}]
  %s2 = inlined_call_operand.vmem [shape: bf16[768,768], index: 2, kind: input, shape index: {}]
  %s3 = inlined_call_operand.vmem [shape: bf16[768,128], index: 3, kind: input, shape index: {}]
  %s4 = inlined_call_operand.vmem [shape: f32[768,128], index: 4, kind: input, shape index: {}]
  %s5 = inlined_call_operand.hbm [shape: bf16[768,128], index: 5, kind: output, shape index: {0}]
  %s6 = inlined_call_operand.vmem [shape: f32[768,128], index: 6, kind: output, shape index: {1}]
  %7 = xla_tuple %s5, %s6
  %s8 = sld [smem:[#allocation0]]
  $region103: #{lightgcn_forward.6} parent=0
    _
  %s10 = ssub.s32 1, %s8
  %s11 = scalar_select 0, %s10, %s8
  %s12 = sshll.u32 %s0, 4
  %s13 = int_to_ptr.vmem [resolvable:$true] %s12
  %15 = dma.vmem_to_smem %s13, 16, [#allocation4], [#allocation3]
  %s16 = sshll.u32 %s1, 4
  %s17 = int_to_ptr.vmem [resolvable:$true] %s16
  %19 = dma.vmem_to_smem %s17, 16, [#allocation5], [#allocation3]
  %20 = dma.done [#allocation3], 32
  %21 = sfence
  $region1: #{lightgcn_forward.6} parent=0
    #allocation6 [shape = 'u8[262144]{0}', space=vmem, size = 0x40000, scoped, tag = 'input window, operand 2']
    #allocation7 [shape = 'u8[131072]{0}', space=vmem, size = 0x20000, scoped, tag = 'output window, operand 0']
    #allocation8 [shape = 's32[2]{0}', space=sflag, size = 0x8, scoped, tag = 'scoped memory for lightgcn_forward.6']
    %22 = vsyncpa [#allocation8], 0
    %s23 = scalar_lea.sflag [#allocation8], 1
    %24 = vsyncpa %s23, 0
    loop: start=0, step=1, limit=11
    $region2: #{lightgcn_forward.6} parent=1 // loop_pre_header
      _
    $region3: #{lightgcn_forward.6} parent=1 // loop_header
      %s26 = sphi 0, %s30
      %p27 = scmp.ge.s32.totalorder %s26, 11
      %s33 = sphi 0, %s45
      %s34 = sphi 0, %s41
      %s35 = sphi 0, %s33
      %s36 = sphi 0, %s34
      %s37 = sphi 0, %s35
      %s38 = sphi 0, %s36
      %s56 = sphi 0, %s58
      %s59 = sphi 0, %s56
      %s60 = sphi 0, %s59
      %s76 = sphi 0, %s60
      %s88 = sphi 0, %s90
      %s91 = sphi 0, %s88
      %s92 = sphi 0, %s91
      %s108 = sphi 0, %s92
      %s114 = sphi 0, %s116
      %s117 = sphi 0, %s114
      %s118 = sphi 0, %s117
      %s134 = sphi 0, %s118
      %s140 = sphi 0, %s142
      %s143 = sphi 0, %s140
      %s144 = sphi 0, %s143
      %s160 = sphi 0, %s144
      %s166 = sphi 0, %s168
      %s169 = sphi 0, %s166
      %s170 = sphi 0, %s169
      %s186 = sphi 0, %s170
    $region4: #{lightgcn_forward.6} parent=1 // loop_header_branch
      %29 = sbr.rel (%p27) target = $region8
    $region5: #{lightgcn_forward.6} parent=1 // loop_body
      %s31 = ssub.s32 %s26, 1
      %s32 = ssub.s32 %s26, 2
      %s39 = sadd.s32 1, %s34
      %p40 = scmp.ge.s32.totalorder %s39, 3
      %s41 = scalar_select %p40, 0, %s39
      %s42 = sadd.s32 1, %s33
      %s43 = scalar_select %p40, %s42, %s33
      %p44 = scmp.ge.s32.totalorder %s43, 3
      %s45 = scalar_select %p44, 0, %s43
      %s46 = smul.u32 %s33, 3
      %s47 = sadd.s32 %s46, %s34
      %s48 = sld [smem:[#allocation4 + %s47]]
      %s49 = smul.u32 %s45, 3
      %s50 = sadd.s32 %s49, %s41
      %s51 = sld [smem:[#allocation4 + %s50]]
      %s52 = ssub.s32 %s33, %s45
      %s53 = ssub.s32 %s48, %s51
      %s54 = sor.u32 %s52, %s53
      %p55 = scmp.eq.s32.totalorder %s54, 0
      %s57 = sadd.s32 %s56, 1
      %s58 = scalar_select %p55, %s56, %s57
      %p61 = pneg %p55
      %p62 = scmp.eq.s32.totalorder %s26, 8
      %p63 = por %p61, %p62
      %p64 = scmp.ne.s32.totalorder %s56, %s59
      %p65 = scmp.eq.s32.totalorder %s26, 0
      %p66 = por %p64, %p65
      %p67 = scmp.ne.s32.totalorder %s56, %s59
      %p68 = scmp.eq.s32.totalorder %s31, 8
      %p69 = por %p67, %p68
      %p70 = scmp.ne.s32.totalorder %s59, %s60
      %p71 = scmp.eq.s32.totalorder %s31, 0
      %p72 = por %p70, %p71
      %p73 = scmp.ne.s32.totalorder %s59, %s60
      %p74 = scmp.eq.s32.totalorder %s32, 8
      %p75 = por %p73, %p74
      %p77 = scmp.ne.s32.totalorder %s60, %s76
      %p78 = scmp.eq.s32.totalorder %s32, 0
      %p79 = por %p77, %p78
      %s80 = smul.u32 %s33, 3
      %s81 = sadd.s32 %s80, %s34
      %s82 = sld [smem:[#allocation4 + %s81]]
      %s83 = smul.u32 %s45, 3
      %s84 = sadd.s32 %s83, %s41
      %s85 = sld [smem:[#allocation4 + %s84]]
      %s86 = ssub.s32 %s82, %s85
      %p87 = scmp.eq.s32.totalorder %s86, 0
      %s89 = sadd.s32 %s88, 1
      %s90 = scalar_select %p87, %s88, %s89
      %p93 = pneg %p87
      %p94 = scmp.eq.s32.totalorder %s26, 8
      %p95 = por %p93, %p94
      %p96 = scmp.ne.s32.totalorder %s88, %s91
      %p97 = scmp.eq.s32.totalorder %s26, 0
      %p98 = por %p96, %p97
      %p99 = scmp.ne.s32.totalorder %s88, %s91
      %p100 = scmp.eq.s32.totalorder %s31, 8
      %p101 = por %p99, %p100
      %p102 = scmp.ne.s32.totalorder %s91, %s92
      %p103 = scmp.eq.s32.totalorder %s31, 0
      %p104 = por %p102, %p103
      %p105 = scmp.ne.s32.totalorder %s91, %s92
      %p106 = scmp.eq.s32.totalorder %s32, 8
      %p107 = por %p105, %p106
      %p109 = scmp.ne.s32.totalorder %s92, %s108
      %p110 = scmp.eq.s32.totalorder %s32, 0
      %p111 = por %p109, %p110
      %s112 = ssub.s32 %s33, %s45
      %p113 = scmp.eq.s32.totalorder %s112, 0
      %s115 = sadd.s32 %s114, 1
      %s116 = scalar_select %p113, %s114, %s115
      %p119 = pneg %p113
      %p120 = scmp.eq.s32.totalorder %s26, 8
      %p121 = por %p119, %p120
      %p122 = scmp.ne.s32.totalorder %s114, %s117
      %p123 = scmp.eq.s32.totalorder %s26, 0
      %p124 = por %p122, %p123
      %p125 = scmp.ne.s32.totalorder %s114, %s117
      %p126 = scmp.eq.s32.totalorder %s31, 8
      %p127 = por %p125, %p126
      %p128 = scmp.ne.s32.totalorder %s117, %s118
      %p129 = scmp.eq.s32.totalorder %s31, 0
      %p130 = por %p128, %p129
      %p131 = scmp.ne.s32.totalorder %s117, %s118
      %p132 = scmp.eq.s32.totalorder %s32, 8
      %p133 = por %p131, %p132
      %p135 = scmp.ne.s32.totalorder %s118, %s134
      %p136 = scmp.eq.s32.totalorder %s32, 0
      %p137 = por %p135, %p136
      %s138 = ssub.s32 %s33, %s45
      %p139 = scmp.eq.s32.totalorder %s138, 0
      %s141 = sadd.s32 %s140, 1
      %s142 = scalar_select %p139, %s140, %s141
      %p145 = pneg %p139
      %p146 = scmp.eq.s32.totalorder %s26, 8
      %p147 = por %p145, %p146
      %p148 = scmp.ne.s32.totalorder %s140, %s143
      %p149 = scmp.eq.s32.totalorder %s26, 0
      %p150 = por %p148, %p149
      %p151 = scmp.ne.s32.totalorder %s140, %s143
      %p152 = scmp.eq.s32.totalorder %s31, 8
      %p153 = por %p151, %p152
      %p154 = scmp.ne.s32.totalorder %s143, %s144
      %p155 = scmp.eq.s32.totalorder %s31, 0
      %p156 = por %p154, %p155
      %p157 = scmp.ne.s32.totalorder %s143, %s144
      %p158 = scmp.eq.s32.totalorder %s32, 8
      %p159 = por %p157, %p158
      %p161 = scmp.ne.s32.totalorder %s144, %s160
      %p162 = scmp.eq.s32.totalorder %s32, 0
      %p163 = por %p161, %p162
      %s164 = ssub.s32 %s33, %s45
      %p165 = scmp.eq.s32.totalorder %s164, 0
      %s167 = sadd.s32 %s166, 1
      %s168 = scalar_select %p165, %s166, %s167
      %p171 = pneg %p165
      %p172 = scmp.eq.s32.totalorder %s26, 8
      %p173 = por %p171, %p172
      %p174 = scmp.ne.s32.totalorder %s166, %s169
      %p175 = scmp.eq.s32.totalorder %s26, 0
      %p176 = por %p174, %p175
      %p177 = scmp.ne.s32.totalorder %s166, %s169
      %p178 = scmp.eq.s32.totalorder %s31, 8
      %p179 = por %p177, %p178
      %p180 = scmp.ne.s32.totalorder %s169, %s170
      %p181 = scmp.eq.s32.totalorder %s31, 0
      %p182 = por %p180, %p181
      %p183 = scmp.ne.s32.totalorder %s169, %s170
      %p184 = scmp.eq.s32.totalorder %s32, 8
      %p185 = por %p183, %p184
      %p187 = scmp.ne.s32.totalorder %s170, %s186
      %p188 = scmp.eq.s32.totalorder %s32, 0
      %p189 = por %p187, %p188
      %p190 = scmp.le.s32.totalorder 1, %s26
      %p191 = scmp.lt.s32.totalorder %s26, 10
      %p192 = pnand %p190, %p191
      %p193 = pneg %p192
      // Predicated region
      $region9: #{lightgcn_forward.6} parent=5 // pred_check
        _
      $region10: #{lightgcn_forward.6} parent=5 // pred_check_branch
        %195 = sbr.rel (%p192) target = $region12
      $region11: #{lightgcn_forward.6} parent=5 // pred_region
        %s196 = ssub.s32 %s26, 1
      $region12: #{lightgcn_forward.6} parent=5 // pred_fallthru
        _
      %p197 = scmp.lt.s32.totalorder %s26, 9
      // Predicated region
      $region13: #{lightgcn_forward.6} parent=5 // pred_check
        %p198 = pneg %p197
      $region14: #{lightgcn_forward.6} parent=5 // pred_check_branch
        %200 = sbr.rel (%p198) target = $region16
      $region15: #{lightgcn_forward.6} parent=5 // pred_region
        // Predicated region
        $region17: #{lightgcn_forward.6} parent=15 // pred_check
          %p201 = pneg %p66
        $region18: #{lightgcn_forward.6} parent=15 // pred_check_branch
          %203 = sbr.rel (%p201) target = $region20
        $region19: #{lightgcn_forward.6} parent=15 // pred_region
          %s204 = sand.u32 %s56, 1
          %s205 = sand.u32 %s56, 1
          %s206 = smul.addr %s205, 256
          %s207 = scalar_lea.vmem [#allocation6], %s206
          %s208 = smul.u32 %s33, 3
          %s209 = sadd.s32 %s208, %s34
          %s210 = sld [smem:[#allocation4 + %s209]]
          %s211 = smul.u32 32, %s33
          %s212 = smul.u32 2, %s210
          %s213 = smul.addr %s211, 6
          %s214 = sadd.s32 %s212, %s213
          %s215 = smul.addr %s214, 4
          %s216 = scalar_lea.vmem %s2, %s215
          // Predicated region
          $region21: #{lightgcn_forward.6} parent=19 // pred_check
            _
          $region22: #{lightgcn_forward.6} parent=19 // pred_check_branch
            %218 = sbr.rel (0) target = $region24
          $region23: #{lightgcn_forward.6} parent=19 // pred_region
            // Predicated region
            $region25: #{lightgcn_forward.6} parent=23 // pred_check
              _
            $region26: #{lightgcn_forward.6} parent=23 // pred_check_branch
              %220 = sbr.rel (0) target = $region28
            $region27: #{lightgcn_forward.6} parent=23 // pred_region
              // Predicated region
              $region40: #{lightgcn_forward.6} parent=27 // pred_check
                _
              $region41: #{lightgcn_forward.6} parent=27 // pred_check_branch
                %297 = sbr.rel (0) target = $region43
              $region42: #{lightgcn_forward.6} parent=27 // pred_region
                loop: start=0, step=1, limit=1
                $region44: #{lightgcn_forward.6} parent=42 // loop_pre_header
                  _
                $region45: #{lightgcn_forward.6} parent=42 // loop_header
                  %s299 = sphi 0, %s303
                  %p300 = scmp.ge.s32.totalorder %s299, 1
                  %s304 = sphi %s216, %s216
                  %s305 = sphi %s207, %s207
                $region46: #{lightgcn_forward.6} parent=42 // loop_header_branch
                  %302 = sbr.rel (%p300) target = $region50
                $region47: #{lightgcn_forward.6} parent=42 // loop_body
                  %v306 = vld [vmem:[%s304] sm:$0xff]
                  %307 = vst [vmem:[%s305] sm:$0xff] %v306
                  %v308 = vld [vmem:[%s304 + $0x18] sm:$0xff]
                  %309 = vst [vmem:[%s305 + $0x8] sm:$0xff] %v308
                  %v310 = vld [vmem:[%s304 + $0x30] sm:$0xff]
                  %311 = vst [vmem:[%s305 + $0x10] sm:$0xff] %v310
                  %v312 = vld [vmem:[%s304 + $0x48] sm:$0xff]
                  %313 = vst [vmem:[%s305 + $0x18] sm:$0xff] %v312
                  %v314 = vld [vmem:[%s304 + $0x60] sm:$0xff]
                  %315 = vst [vmem:[%s305 + $0x20] sm:$0xff] %v314
                  %v316 = vld [vmem:[%s304 + $0x78] sm:$0xff]
                  %317 = vst [vmem:[%s305 + $0x28] sm:$0xff] %v316
                  %v318 = vld [vmem:[%s304 + $0x90] sm:$0xff]
                  %319 = vst [vmem:[%s305 + $0x30] sm:$0xff] %v318
                  %v320 = vld [vmem:[%s304 + $0xa8] sm:$0xff]
                  %321 = vst [vmem:[%s305 + $0x38] sm:$0xff] %v320
                  %v322 = vld [vmem:[%s304 + $0xc0] sm:$0xff]
                  %323 = vst [vmem:[%s305 + $0x40] sm:$0xff] %v322
                  %v324 = vld [vmem:[%s304 + $0xd8] sm:$0xff]
                  %325 = vst [vmem:[%s305 + $0x48] sm:$0xff] %v324
                  %v326 = vld [vmem:[%s304 + $0xf0] sm:$0xff]
                  %327 = vst [vmem:[%s305 + $0x50] sm:$0xff] %v326
                  %v328 = vld [vmem:[%s304 + $0x108] sm:$0xff]
                  %329 = vst [vmem:[%s305 + $0x58] sm:$0xff] %v328
                  %v330 = vld [vmem:[%s304 + $0x120] sm:$0xff]
                  %331 = vst [vmem:[%s305 + $0x60] sm:$0xff] %v330
                  %v332 = vld [vmem:[%s304 + $0x138] sm:$0xff]
                  %333 = vst [vmem:[%s305 + $0x68] sm:$0xff] %v332
                  %v334 = vld [vmem:[%s304 + $0x150] sm:$0xff]
                  %335 = vst [vmem:[%s305 + $0x70] sm:$0xff] %v334
                  %v336 = vld [vmem:[%s304 + $0x168] sm:$0xff]
                  %337 = vst [vmem:[%s305 + $0x78] sm:$0xff] %v336
                  %v338 = vld [vmem:[%s304 + $0x180] sm:$0xff]
                  %339 = vst [vmem:[%s305 + $0x80] sm:$0xff] %v338
                  %v340 = vld [vmem:[%s304 + $0x198] sm:$0xff]
                  %341 = vst [vmem:[%s305 + $0x88] sm:$0xff] %v340
                  %v342 = vld [vmem:[%s304 + $0x1b0] sm:$0xff]
                  %343 = vst [vmem:[%s305 + $0x90] sm:$0xff] %v342
                  %v344 = vld [vmem:[%s304 + $0x1c8] sm:$0xff]
                  %345 = vst [vmem:[%s305 + $0x98] sm:$0xff] %v344
                  %v346 = vld [vmem:[%s304 + $0x1e0] sm:$0xff]
                  %347 = vst [vmem:[%s305 + $0xa0] sm:$0xff] %v346
                  %v348 = vld [vmem:[%s304 + $0x1f8] sm:$0xff]
                  %349 = vst [vmem:[%s305 + $0xa8] sm:$0xff] %v348
                  %v350 = vld [vmem:[%s304 + $0x210] sm:$0xff]
                  %351 = vst [vmem:[%s305 + $0xb0] sm:$0xff] %v350
                  %v352 = vld [vmem:[%s304 + $0x228] sm:$0xff]
                  %353 = vst [vmem:[%s305 + $0xb8] sm:$0xff] %v352
                  %v354 = vld [vmem:[%s304 + $0x240] sm:$0xff]
                  %355 = vst [vmem:[%s305 + $0xc0] sm:$0xff] %v354
                  %v356 = vld [vmem:[%s304 + $0x258] sm:$0xff]
                  %357 = vst [vmem:[%s305 + $0xc8] sm:$0xff] %v356
                  %v358 = vld [vmem:[%s304 + $0x270] sm:$0xff]
                  %359 = vst [vmem:[%s305 + $0xd0] sm:$0xff] %v358
                  %v360 = vld [vmem:[%s304 + $0x288] sm:$0xff]
                  %361 = vst [vmem:[%s305 + $0xd8] sm:$0xff] %v360
                  %v362 = vld [vmem:[%s304 + $0x2a0] sm:$0xff]
                  %363 = vst [vmem:[%s305 + $0xe0] sm:$0xff] %v362
                  %v364 = vld [vmem:[%s304 + $0x2b8] sm:$0xff]
                  %365 = vst [vmem:[%s305 + $0xe8] sm:$0xff] %v364
                  %v366 = vld [vmem:[%s304 + $0x2d0] sm:$0xff]
                  %367 = vst [vmem:[%s305 + $0xf0] sm:$0xff] %v366
                  %v368 = vld [vmem:[%s304 + $0x2e8] sm:$0xff]
                  %369 = vst [vmem:[%s305 + $0xf8] sm:$0xff] %v368
                $region48: #{lightgcn_forward.6} parent=42 // loop_footer
                  %s303 = sadd.s32 1, %s299
                $region49: #{lightgcn_forward.6} parent=42 // loop_footer_branch
                  %298 = sbr.rel target = $region45
                $region50: #{lightgcn_forward.6} parent=42 // loop_exit
                  _
              $region43: #{lightgcn_forward.6} parent=27 // pred_fallthru
                _
              // Predicated region
              $region51: #{lightgcn_forward.6} parent=27 // pred_check
                _
              $region52: #{lightgcn_forward.6} parent=27 // pred_check_branch
                %371 = sbr.rel target = $region54
              $region53: #{lightgcn_forward.6} parent=27 // pred_region
                _
              $region54: #{lightgcn_forward.6} parent=27 // pred_fallthru
                _
            $region28: #{lightgcn_forward.6} parent=23 // pred_fallthru
              _
            // Predicated region
            $region29: #{lightgcn_forward.6} parent=23 // pred_check
              _
            $region30: #{lightgcn_forward.6} parent=23 // pred_check_branch
              %222 = sbr.rel target = $region32
            $region31: #{lightgcn_forward.6} parent=23 // pred_region
              loop: start=0, step=1, limit=1
              $region33: #{lightgcn_forward.6} parent=31 // loop_pre_header
                _
              $region34: #{lightgcn_forward.6} parent=31 // loop_header
                %s225 = sphi 0, %s229
                %p226 = scmp.ge.s32.totalorder %s225, 1
                %s230 = sphi %s216, %s216
                %s231 = sphi %s207, %s207
              $region35: #{lightgcn_forward.6} parent=31 // loop_header_branch
                %228 = sbr.rel (%p226) target = $region39
              $region36: #{lightgcn_forward.6} parent=31 // loop_body
                %v232 = vld [vmem:[%s230] sm:$0xff]
                %233 = vst [vmem:[%s231] sm:$0xff] %v232
                %v234 = vld [vmem:[%s230 + $0x18] sm:$0xff]
                %235 = vst [vmem:[%s231 + $0x8] sm:$0xff] %v234
                %v236 = vld [vmem:[%s230 + $0x30] sm:$0xff]
                %237 = vst [vmem:[%s231 + $0x10] sm:$0xff] %v236
                %v238 = vld [vmem:[%s230 + $0x48] sm:$0xff]
                %239 = vst [vmem:[%s231 + $0x18] sm:$0xff] %v238
                %v240 = vld [vmem:[%s230 + $0x60] sm:$0xff]
                %241 = vst [vmem:[%s231 + $0x20] sm:$0xff] %v240
                %v242 = vld [vmem:[%s230 + $0x78] sm:$0xff]
                %243 = vst [vmem:[%s231 + $0x28] sm:$0xff] %v242
                %v244 = vld [vmem:[%s230 + $0x90] sm:$0xff]
                %245 = vst [vmem:[%s231 + $0x30] sm:$0xff] %v244
                %v246 = vld [vmem:[%s230 + $0xa8] sm:$0xff]
                %247 = vst [vmem:[%s231 + $0x38] sm:$0xff] %v246
                %v248 = vld [vmem:[%s230 + $0xc0] sm:$0xff]
                %249 = vst [vmem:[%s231 + $0x40] sm:$0xff] %v248
                %v250 = vld [vmem:[%s230 + $0xd8] sm:$0xff]
                %251 = vst [vmem:[%s231 + $0x48] sm:$0xff] %v250
                %v252 = vld [vmem:[%s230 + $0xf0] sm:$0xff]
                %253 = vst [vmem:[%s231 + $0x50] sm:$0xff] %v252
                %v254 = vld [vmem:[%s230 + $0x108] sm:$0xff]
                %255 = vst [vmem:[%s231 + $0x58] sm:$0xff] %v254
                %v256 = vld [vmem:[%s230 + $0x120] sm:$0xff]
                %257 = vst [vmem:[%s231 + $0x60] sm:$0xff] %v256
                %v258 = vld [vmem:[%s230 + $0x138] sm:$0xff]
                %259 = vst [vmem:[%s231 + $0x68] sm:$0xff] %v258
                %v260 = vld [vmem:[%s230 + $0x150] sm:$0xff]
                %261 = vst [vmem:[%s231 + $0x70] sm:$0xff] %v260
                %v262 = vld [vmem:[%s230 + $0x168] sm:$0xff]
                %263 = vst [vmem:[%s231 + $0x78] sm:$0xff] %v262
                %v264 = vld [vmem:[%s230 + $0x180] sm:$0xff]
                %265 = vst [vmem:[%s231 + $0x80] sm:$0xff] %v264
                %v266 = vld [vmem:[%s230 + $0x198] sm:$0xff]
                %267 = vst [vmem:[%s231 + $0x88] sm:$0xff] %v266
                %v268 = vld [vmem:[%s230 + $0x1b0] sm:$0xff]
                %269 = vst [vmem:[%s231 + $0x90] sm:$0xff] %v268
                %v270 = vld [vmem:[%s230 + $0x1c8] sm:$0xff]
                %271 = vst [vmem:[%s231 + $0x98] sm:$0xff] %v270
                %v272 = vld [vmem:[%s230 + $0x1e0] sm:$0xff]
                %273 = vst [vmem:[%s231 + $0xa0] sm:$0xff] %v272
                %v274 = vld [vmem:[%s230 + $0x1f8] sm:$0xff]
                %275 = vst [vmem:[%s231 + $0xa8] sm:$0xff] %v274
                %v276 = vld [vmem:[%s230 + $0x210] sm:$0xff]
                %277 = vst [vmem:[%s231 + $0xb0] sm:$0xff] %v276
                %v278 = vld [vmem:[%s230 + $0x228] sm:$0xff]
                %279 = vst [vmem:[%s231 + $0xb8] sm:$0xff] %v278
                %v280 = vld [vmem:[%s230 + $0x240] sm:$0xff]
                %281 = vst [vmem:[%s231 + $0xc0] sm:$0xff] %v280
                %v282 = vld [vmem:[%s230 + $0x258] sm:$0xff]
                %283 = vst [vmem:[%s231 + $0xc8] sm:$0xff] %v282
                %v284 = vld [vmem:[%s230 + $0x270] sm:$0xff]
                %285 = vst [vmem:[%s231 + $0xd0] sm:$0xff] %v284
                %v286 = vld [vmem:[%s230 + $0x288] sm:$0xff]
                %287 = vst [vmem:[%s231 + $0xd8] sm:$0xff] %v286
                %v288 = vld [vmem:[%s230 + $0x2a0] sm:$0xff]
                %289 = vst [vmem:[%s231 + $0xe0] sm:$0xff] %v288
                %v290 = vld [vmem:[%s230 + $0x2b8] sm:$0xff]
                %291 = vst [vmem:[%s231 + $0xe8] sm:$0xff] %v290
                %v292 = vld [vmem:[%s230 + $0x2d0] sm:$0xff]
                %293 = vst [vmem:[%s231 + $0xf0] sm:$0xff] %v292
                %v294 = vld [vmem:[%s230 + $0x2e8] sm:$0xff]
                %295 = vst [vmem:[%s231 + $0xf8] sm:$0xff] %v294
              $region37: #{lightgcn_forward.6} parent=31 // loop_footer
                %s229 = sadd.s32 1, %s225
              $region38: #{lightgcn_forward.6} parent=31 // loop_footer_branch
                %224 = sbr.rel target = $region34
              $region39: #{lightgcn_forward.6} parent=31 // loop_exit
                _
            $region32: #{lightgcn_forward.6} parent=23 // pred_fallthru
              _
          $region24: #{lightgcn_forward.6} parent=19 // pred_fallthru
            _
          %372 = vnop
        $region20: #{lightgcn_forward.6} parent=15 // pred_fallthru
          _
        // Predicated region
        $region55: #{lightgcn_forward.6} parent=15 // pred_check
          %p373 = pneg %p98
        $region56: #{lightgcn_forward.6} parent=15 // pred_check_branch
          %375 = sbr.rel (%p373) target = $region58
        $region57: #{lightgcn_forward.6} parent=15 // pred_region
          %s376 = smul.u32 %s33, 3
          %s377 = sadd.s32 %s376, %s34
          %s378 = sld [smem:[#allocation4 + %s377]]
          %s379 = smul.u32 32, %s378
          %p380 = scmp.lt.s32.totalorder %s379, 95
          %s381 = scalar_select %p380, %s379, 95
          %s382 = smul.addr %s381, 4
          %s383 = scalar_lea.vmem %s3, %s382
          %s384 = smul.u32 %s33, 3
          %s385 = sadd.s32 %s384, %s34
          %s386 = sld [smem:[#allocation4 + %s385]]
          %s387 = smul.u32 32, %s386
        $region58: #{lightgcn_forward.6} parent=15 // pred_fallthru
          _
        // Predicated region
        $region59: #{lightgcn_forward.6} parent=15 // pred_check
          %p388 = pneg %p124
        $region60: #{lightgcn_forward.6} parent=15 // pred_check_branch
          %390 = sbr.rel (%p388) target = $region62
        $region61: #{lightgcn_forward.6} parent=15 // pred_region
          %s391 = smul.u32 32, %s33
          %p392 = scmp.lt.s32.totalorder %s391, 95
          %s393 = scalar_select %p392, %s391, 95
          %s394 = smul.addr %s393, 8
          %s395 = scalar_lea.vmem %s4, %s394
          %s396 = smul.u32 32, %s33
        $region62: #{lightgcn_forward.6} parent=15 // pred_fallthru
          _
      $region16: #{lightgcn_forward.6} parent=5 // pred_fallthru
        _
      %p397 = scmp.le.s32.totalorder 1, %s26
      %p398 = scmp.lt.s32.totalorder %s26, 10
      %p399 = pnand %p397, %p398
      %p400 = pneg %p399
      // Predicated region
      $region63: #{lightgcn_forward.6} parent=5 // pred_check
        _
      $region64: #{lightgcn_forward.6} parent=5 // pred_check_branch
        %402 = sbr.rel (%p399) target = $region66
      $region65: #{lightgcn_forward.6} parent=5 // pred_region
        %s403 = ssub.s32 %s26, 1
        %s404 = sand.u32 %s59, 1
        %s405 = sand.u32 %s59, 1
        %s406 = smul.addr %s405, 256
        %s407 = scalar_lea.vmem [#allocation6], %s406
        // Predicated region
        $region67: #{lightgcn_forward.6} parent=65 // pred_check
          %p408 = pneg %p72
        $region68: #{lightgcn_forward.6} parent=65 // pred_check_branch
          %410 = sbr.rel (%p408) target = $region70
        $region69: #{lightgcn_forward.6} parent=65 // pred_region
          _
        $region70: #{lightgcn_forward.6} parent=65 // pred_fallthru
          _
        %s411 = sand.u32 %s59, 1
        %s412 = sand.u32 %s59, 1
        %s413 = smul.addr %s412, 256
        %s414 = scalar_lea.vmem [#allocation6], %s413
        %p415 = pneg %p72
        %p416 = pneg %p69
        %s417 = smul.u32 %s35, 3
        %s418 = sadd.s32 %s417, %s36
        %s419 = sld [smem:[#allocation4 + %s418]]
        %s420 = smul.u32 32, %s419
        %p421 = scmp.lt.s32.totalorder %s420, 95
        %s422 = scalar_select %p421, %s420, 95
        %s423 = smul.addr %s422, 4
        %s424 = scalar_lea.vmem %s3, %s423
        %p425 = pneg %p104
        %p426 = pneg %p101
        %s427 = smul.u32 32, %s35
        %p428 = scmp.lt.s32.totalorder %s427, 95
        %s429 = scalar_select %p428, %s427, 95
        %s430 = smul.addr %s429, 8
        %s431 = scalar_lea.vmem %s4, %s430
        %p432 = pneg %p130
        %p433 = pneg %p127
        %p434 = pneg %p156
        %p435 = pneg %p153
        %s436 = sand.u32 %s143, 1
        %s437 = scalar_lea.sflag [#allocation8], %s436
        %s438 = sand.u32 %s143, 1
        %s439 = smul.addr %s438, 128
        %s440 = scalar_lea.vmem [#allocation7], %s439
        %p441 = pneg %p182
        %p442 = pneg %p179
        %s443 = smul.u32 32, %s35
        %p444 = scmp.lt.s32.totalorder %s443, 95
        %s445 = scalar_select %p444, %s443, 95
        %s446 = smul.addr %s445, 8
        %s447 = scalar_lea.vmem %s6, %s446
        %s448 = smul.u32 %s35, 3
        %s449 = sadd.s32 %s448, %s36
        %s450 = sld [smem:[#allocation4 + %s449]]
        %s451 = smul.u32 32, %s35
        %s452 = smul.u32 2, %s450
        %s453 = smul.u32 %s35, 3
        %s454 = sadd.s32 %s453, %s36
        %s455 = sld [smem:[#allocation4 + %s454]]
        %s456 = smul.u32 32, %s455
        %p457 = scmp.lt.s32.totalorder %s456, 95
        %s458 = scalar_select %p457, %s456, 95
        %s459 = smul.addr %s458, 4
        %s460 = scalar_lea.vmem %s3, %s459
        %s461 = smul.u32 %s35, 3
        %s462 = sadd.s32 %s461, %s36
        %s463 = sld [smem:[#allocation4 + %s462]]
        %s464 = smul.u32 32, %s463
        %s465 = smul.u32 32, %s35
        %p466 = scmp.lt.s32.totalorder %s465, 95
        %s467 = scalar_select %p466, %s465, 95
        %s468 = smul.addr %s467, 8
        %s469 = scalar_lea.vmem %s4, %s468
        %s470 = smul.u32 32, %s35
        %s471 = smul.u32 32, %s35
        %s472 = smul.u32 32, %s35
        %p473 = scmp.lt.s32.totalorder %s472, 95
        %s474 = scalar_select %p473, %s472, 95
        %s475 = smul.addr %s474, 8
        %s476 = scalar_lea.vmem %s6, %s475
        %s477 = smul.u32 32, %s35
        %p479 = scmp.eq.s32.totalorder %s36, 0
        // Predicated region
        $region71: #{lightgcn_forward.6} parent=65 // pred_check
          %p480 = pneg %p479
        $region72: #{lightgcn_forward.6} parent=65 // pred_check_branch
          %482 = sbr.rel (%p480) target = $region74
        $region73: #{lightgcn_forward.6} parent=65 // pred_region
          %483 = vst [vmem:[#allocation2] sm:$0xff] 0.0
          %484 = vst [vmem:[#allocation2 + $0x8] sm:$0xff] 0.0
          %485 = vst [vmem:[#allocation2 + $0x10] sm:$0xff] 0.0
          %486 = vst [vmem:[#allocation2 + $0x18] sm:$0xff] 0.0
          %487 = vst [vmem:[#allocation2 + $0x20] sm:$0xff] 0.0
          %488 = vst [vmem:[#allocation2 + $0x28] sm:$0xff] 0.0
          %489 = vst [vmem:[#allocation2 + $0x30] sm:$0xff] 0.0
          %490 = vst [vmem:[#allocation2 + $0x38] sm:$0xff] 0.0
          %491 = vst [vmem:[#allocation2 + $0x40] sm:$0xff] 0.0
          %492 = vst [vmem:[#allocation2 + $0x48] sm:$0xff] 0.0
          %493 = vst [vmem:[#allocation2 + $0x50] sm:$0xff] 0.0
          %494 = vst [vmem:[#allocation2 + $0x58] sm:$0xff] 0.0
          %495 = vst [vmem:[#allocation2 + $0x60] sm:$0xff] 0.0
          %496 = vst [vmem:[#allocation2 + $0x68] sm:$0xff] 0.0
          %497 = vst [vmem:[#allocation2 + $0x70] sm:$0xff] 0.0
          %498 = vst [vmem:[#allocation2 + $0x78] sm:$0xff] 0.0
          %499 = vst [vmem:[#allocation2 + $0x80] sm:$0xff] 0.0
          %500 = vst [vmem:[#allocation2 + $0x88] sm:$0xff] 0.0
          %501 = vst [vmem:[#allocation2 + $0x90] sm:$0xff] 0.0
          %502 = vst [vmem:[#allocation2 + $0x98] sm:$0xff] 0.0
          %503 = vst [vmem:[#allocation2 + $0xa0] sm:$0xff] 0.0
          %504 = vst [vmem:[#allocation2 + $0xa8] sm:$0xff] 0.0
          %505 = vst [vmem:[#allocation2 + $0xb0] sm:$0xff] 0.0
          %506 = vst [vmem:[#allocation2 + $0xb8] sm:$0xff] 0.0
          %507 = vst [vmem:[#allocation2 + $0xc0] sm:$0xff] 0.0
          %508 = vst [vmem:[#allocation2 + $0xc8] sm:$0xff] 0.0
          %509 = vst [vmem:[#allocation2 + $0xd0] sm:$0xff] 0.0
          %510 = vst [vmem:[#allocation2 + $0xd8] sm:$0xff] 0.0
          %511 = vst [vmem:[#allocation2 + $0xe0] sm:$0xff] 0.0
          %512 = vst [vmem:[#allocation2 + $0xe8] sm:$0xff] 0.0
          %513 = vst [vmem:[#allocation2 + $0xf0] sm:$0xff] 0.0
          %514 = vst [vmem:[#allocation2 + $0xf8] sm:$0xff] 0.0
        $region74: #{lightgcn_forward.6} parent=65 // pred_fallthru
          _
        %s515 = sld [smem:[#allocation5 + %s35]]
        %p516 = scmp.lt.s32.totalorder %s36, %s515
        // Predicated region
        $region75: #{lightgcn_forward.6} parent=65 // pred_check
          %p517 = pneg %p516
        $region76: #{lightgcn_forward.6} parent=65 // pred_check_branch
          %519 = sbr.rel (%p517) target = $region78
        $region77: #{lightgcn_forward.6} parent=65 // pred_region
          %v520 = vld [vmem:[#allocation2] sm:$0xff]
          %v521 = vld [vmem:[#allocation2 + $0x8] sm:$0xff]
          %v522 = vld [vmem:[#allocation2 + $0x10] sm:$0xff]
          %v523 = vld [vmem:[#allocation2 + $0x18] sm:$0xff]
          %v524 = vld [vmem:[#allocation2 + $0x20] sm:$0xff]
          %v525 = vld [vmem:[#allocation2 + $0x28] sm:$0xff]
          %v526 = vld [vmem:[#allocation2 + $0x30] sm:$0xff]
          %v527 = vld [vmem:[#allocation2 + $0x38] sm:$0xff]
          %v528 = vld [vmem:[#allocation2 + $0x40] sm:$0xff]
          %v529 = vld [vmem:[#allocation2 + $0x48] sm:$0xff]
          %v530 = vld [vmem:[#allocation2 + $0x50] sm:$0xff]
          %v531 = vld [vmem:[#allocation2 + $0x58] sm:$0xff]
          %v532 = vld [vmem:[#allocation2 + $0x60] sm:$0xff]
          %v533 = vld [vmem:[#allocation2 + $0x68] sm:$0xff]
          %v534 = vld [vmem:[#allocation2 + $0x70] sm:$0xff]
          %v535 = vld [vmem:[#allocation2 + $0x78] sm:$0xff]
          %v536 = vld [vmem:[#allocation2 + $0x80] sm:$0xff]
          %v537 = vld [vmem:[#allocation2 + $0x88] sm:$0xff]
          %v538 = vld [vmem:[#allocation2 + $0x90] sm:$0xff]
          %v539 = vld [vmem:[#allocation2 + $0x98] sm:$0xff]
          %v540 = vld [vmem:[#allocation2 + $0xa0] sm:$0xff]
          %v541 = vld [vmem:[#allocation2 + $0xa8] sm:$0xff]
          %v542 = vld [vmem:[#allocation2 + $0xb0] sm:$0xff]
          %v543 = vld [vmem:[#allocation2 + $0xb8] sm:$0xff]
          %v544 = vld [vmem:[#allocation2 + $0xc0] sm:$0xff]
          %v545 = vld [vmem:[#allocation2 + $0xc8] sm:$0xff]
          %v546 = vld [vmem:[#allocation2 + $0xd0] sm:$0xff]
          %v547 = vld [vmem:[#allocation2 + $0xd8] sm:$0xff]
          %v548 = vld [vmem:[#allocation2 + $0xe0] sm:$0xff]
          %v549 = vld [vmem:[#allocation2 + $0xe8] sm:$0xff]
          %v550 = vld [vmem:[#allocation2 + $0xf0] sm:$0xff]
          %v551 = vld [vmem:[#allocation2 + $0xf8] sm:$0xff]
          %v552 = vld [vmem:[%s407] sm:$0xff]
          %v553 = vld [vmem:[%s407 + $0x8] sm:$0xff]
          %v554 = vld [vmem:[%s407 + $0x10] sm:$0xff]
          %v555 = vld [vmem:[%s407 + $0x18] sm:$0xff]
          %v556 = vld [vmem:[%s407 + $0x20] sm:$0xff]
          %v557 = vld [vmem:[%s407 + $0x28] sm:$0xff]
          %v558 = vld [vmem:[%s407 + $0x30] sm:$0xff]
          %v559 = vld [vmem:[%s407 + $0x38] sm:$0xff]
          %v560 = vld [vmem:[%s407 + $0x40] sm:$0xff]
          %v561 = vld [vmem:[%s407 + $0x48] sm:$0xff]
          %v562 = vld [vmem:[%s407 + $0x50] sm:$0xff]
          %v563 = vld [vmem:[%s407 + $0x58] sm:$0xff]
          %v564 = vld [vmem:[%s407 + $0x60] sm:$0xff]
          %v565 = vld [vmem:[%s407 + $0x68] sm:$0xff]
          %v566 = vld [vmem:[%s407 + $0x70] sm:$0xff]
          %v567 = vld [vmem:[%s407 + $0x78] sm:$0xff]
          %v568 = vld [vmem:[%s407 + $0x80] sm:$0xff]
          %v569 = vld [vmem:[%s407 + $0x88] sm:$0xff]
          %v570 = vld [vmem:[%s407 + $0x90] sm:$0xff]
          %v571 = vld [vmem:[%s407 + $0x98] sm:$0xff]
          %v572 = vld [vmem:[%s407 + $0xa0] sm:$0xff]
          %v573 = vld [vmem:[%s407 + $0xa8] sm:$0xff]
          %v574 = vld [vmem:[%s407 + $0xb0] sm:$0xff]
          %v575 = vld [vmem:[%s407 + $0xb8] sm:$0xff]
          %v576 = vld [vmem:[%s407 + $0xc0] sm:$0xff]
          %v577 = vld [vmem:[%s407 + $0xc8] sm:$0xff]
          %v578 = vld [vmem:[%s407 + $0xd0] sm:$0xff]
          %v579 = vld [vmem:[%s407 + $0xd8] sm:$0xff]
          %v580 = vld [vmem:[%s407 + $0xe0] sm:$0xff]
          %v581 = vld [vmem:[%s407 + $0xe8] sm:$0xff]
          %v582 = vld [vmem:[%s407 + $0xf0] sm:$0xff]
          %v583 = vld [vmem:[%s407 + $0xf8] sm:$0xff]
          %v584 = vld [vmem:[%s460] sm:$0xf]
          %v585 = vld [vmem:[%s460 + $0x4] sm:$0xf]
          %v586 = vld [vmem:[%s460 + $0x8] sm:$0xf]
          %v587 = vld [vmem:[%s460 + $0xc] sm:$0xf]
          %v588 = vld [vmem:[%s460 + $0x10] sm:$0xf]
          %v589 = vld [vmem:[%s460 + $0x14] sm:$0xf]
          %v590 = vld [vmem:[%s460 + $0x18] sm:$0xf]
          %v591 = vld [vmem:[%s460 + $0x1c] sm:$0xf]
          %v592 = vld [vmem:[%s460 + $0x20] sm:$0xf]
          %v593 = vld [vmem:[%s460 + $0x24] sm:$0xf]
          %v594 = vld [vmem:[%s460 + $0x28] sm:$0xf]
          %v595 = vld [vmem:[%s460 + $0x2c] sm:$0xf]
          %v596 = vld [vmem:[%s460 + $0x30] sm:$0xf]
          %v597 = vld [vmem:[%s460 + $0x34] sm:$0xf]
          %v598 = vld [vmem:[%s460 + $0x38] sm:$0xf]
          %v599 = vld [vmem:[%s460 + $0x3c] sm:$0xf]
          %v600 = vld [vmem:[%s460 + $0x40] sm:$0xf]
          %v601 = vld [vmem:[%s460 + $0x44] sm:$0xf]
          %v602 = vld [vmem:[%s460 + $0x48] sm:$0xf]
          %v603 = vld [vmem:[%s460 + $0x4c] sm:$0xf]
          %v604 = vld [vmem:[%s460 + $0x50] sm:$0xf]
          %v605 = vld [vmem:[%s460 + $0x54] sm:$0xf]
          %v606 = vld [vmem:[%s460 + $0x58] sm:$0xf]
          %v607 = vld [vmem:[%s460 + $0x5c] sm:$0xf]
          %v608 = vld [vmem:[%s460 + $0x60] sm:$0xf]
          %v609 = vld [vmem:[%s460 + $0x64] sm:$0xf]
          %v610 = vld [vmem:[%s460 + $0x68] sm:$0xf]
          %v611 = vld [vmem:[%s460 + $0x6c] sm:$0xf]
          %v612 = vld [vmem:[%s460 + $0x70] sm:$0xf]
          %v613 = vld [vmem:[%s460 + $0x74] sm:$0xf]
          %v614 = vld [vmem:[%s460 + $0x78] sm:$0xf]
          %v615 = vld [vmem:[%s460 + $0x7c] sm:$0xf]
          %v648 = vunpack.c.l.b16 %v552
          %v649 = vunpack.c.h.b16 %v552
          %v650 = vunpack.c.l.b16 %v553
          %v651 = vunpack.c.h.b16 %v553
          %v652 = vunpack.c.l.b16 %v554
          %v653 = vunpack.c.h.b16 %v554
          %v654 = vunpack.c.l.b16 %v555
          %v655 = vunpack.c.h.b16 %v555
          %v656 = vunpack.c.l.b16 %v556
          %v657 = vunpack.c.h.b16 %v556
          %v658 = vunpack.c.l.b16 %v557
          %v659 = vunpack.c.h.b16 %v557
          %v660 = vunpack.c.l.b16 %v558
          %v661 = vunpack.c.h.b16 %v558
          %v662 = vunpack.c.l.b16 %v559
          %v663 = vunpack.c.h.b16 %v559
          %v664 = vunpack.c.l.b16 %v560
          %v665 = vunpack.c.h.b16 %v560
          %v666 = vunpack.c.l.b16 %v561
          %v667 = vunpack.c.h.b16 %v561
          %v668 = vunpack.c.l.b16 %v562
          %v669 = vunpack.c.h.b16 %v562
          %v670 = vunpack.c.l.b16 %v563
          %v671 = vunpack.c.h.b16 %v563
          %v672 = vunpack.c.l.b16 %v564
          %v673 = vunpack.c.h.b16 %v564
          %v674 = vunpack.c.l.b16 %v565
          %v675 = vunpack.c.h.b16 %v565
          %v676 = vunpack.c.l.b16 %v566
          %v677 = vunpack.c.h.b16 %v566
          %v678 = vunpack.c.l.b16 %v567
          %v679 = vunpack.c.h.b16 %v567
          %v680 = vunpack.c.l.b16 %v568
          %v681 = vunpack.c.h.b16 %v568
          %v682 = vunpack.c.l.b16 %v569
          %v683 = vunpack.c.h.b16 %v569
          %v684 = vunpack.c.l.b16 %v570
          %v685 = vunpack.c.h.b16 %v570
          %v686 = vunpack.c.l.b16 %v571
          %v687 = vunpack.c.h.b16 %v571
          %v688 = vunpack.c.l.b16 %v572
          %v689 = vunpack.c.h.b16 %v572
          %v690 = vunpack.c.l.b16 %v573
          %v691 = vunpack.c.h.b16 %v573
          %v692 = vunpack.c.l.b16 %v574
          %v693 = vunpack.c.h.b16 %v574
          %v694 = vunpack.c.l.b16 %v575
          %v695 = vunpack.c.h.b16 %v575
          %v696 = vunpack.c.l.b16 %v576
          %v697 = vunpack.c.h.b16 %v576
          %v698 = vunpack.c.l.b16 %v577
          %v699 = vunpack.c.h.b16 %v577
          %v700 = vunpack.c.l.b16 %v578
          %v701 = vunpack.c.h.b16 %v578
          %v702 = vunpack.c.l.b16 %v579
          %v703 = vunpack.c.h.b16 %v579
          %v704 = vunpack.c.l.b16 %v580
          %v705 = vunpack.c.h.b16 %v580
          %v706 = vunpack.c.l.b16 %v581
          %v707 = vunpack.c.h.b16 %v581
          %v708 = vunpack.c.l.b16 %v582
          %v709 = vunpack.c.h.b16 %v582
          %v710 = vunpack.c.l.b16 %v583
          %v711 = vunpack.c.h.b16 %v583
          %v712 = vpack.c.b16 %v650, %v648
          %v713 = vpack.c.b16 %v651, %v649
          %v714 = vpack.c.b16 %v654, %v652
          %v715 = vpack.c.b16 %v655, %v653
          %v716 = vpack.c.b16 %v658, %v656
          %v717 = vpack.c.b16 %v659, %v657
          %v718 = vpack.c.b16 %v662, %v660
          %v719 = vpack.c.b16 %v663, %v661
          %v720 = vpack.c.b16 %v666, %v664
          %v721 = vpack.c.b16 %v667, %v665
          %v722 = vpack.c.b16 %v670, %v668
          %v723 = vpack.c.b16 %v671, %v669
          %v724 = vpack.c.b16 %v674, %v672
          %v725 = vpack.c.b16 %v675, %v673
          %v726 = vpack.c.b16 %v678, %v676
          %v727 = vpack.c.b16 %v679, %v677
          %v728 = vpack.c.b16 %v682, %v680
          %v729 = vpack.c.b16 %v683, %v681
          %v730 = vpack.c.b16 %v686, %v684
          %v731 = vpack.c.b16 %v687, %v685
          %v732 = vpack.c.b16 %v690, %v688
          %v733 = vpack.c.b16 %v691, %v689
          %v734 = vpack.c.b16 %v694, %v692
          %v735 = vpack.c.b16 %v695, %v693
          %v736 = vpack.c.b16 %v698, %v696
          %v737 = vpack.c.b16 %v699, %v697
          %v738 = vpack.c.b16 %v702, %v700
          %v739 = vpack.c.b16 %v703, %v701
          %v740 = vpack.c.b16 %v706, %v704
          %v741 = vpack.c.b16 %v707, %v705
          %v742 = vpack.c.b16 %v710, %v708
          %v743 = vpack.c.b16 %v711, %v709
          %v808 = vunpack.c.l.b16 %v584
          %v809 = vunpack.c.l.b16 %v585
          %v810 = vunpack.c.l.b16 %v586
          %v811 = vunpack.c.l.b16 %v587
          %v812 = vunpack.c.l.b16 %v588
          %v813 = vunpack.c.l.b16 %v589
          %v814 = vunpack.c.l.b16 %v590
          %v815 = vunpack.c.l.b16 %v591
          %v816 = vunpack.c.l.b16 %v592
          %v817 = vunpack.c.l.b16 %v593
          %v818 = vunpack.c.l.b16 %v594
          %v819 = vunpack.c.l.b16 %v595
          %v820 = vunpack.c.l.b16 %v596
          %v821 = vunpack.c.l.b16 %v597
          %v822 = vunpack.c.l.b16 %v598
          %v823 = vunpack.c.l.b16 %v599
          %v824 = vunpack.c.l.b16 %v600
          %v825 = vunpack.c.l.b16 %v601
          %v826 = vunpack.c.l.b16 %v602
          %v827 = vunpack.c.l.b16 %v603
          %v828 = vunpack.c.l.b16 %v604
          %v829 = vunpack.c.l.b16 %v605
          %v830 = vunpack.c.l.b16 %v606
          %v831 = vunpack.c.l.b16 %v607
          %v832 = vunpack.c.l.b16 %v608
          %v833 = vunpack.c.l.b16 %v609
          %v834 = vunpack.c.l.b16 %v610
          %v835 = vunpack.c.l.b16 %v611
          %v836 = vunpack.c.l.b16 %v612
          %v837 = vunpack.c.l.b16 %v613
          %v838 = vunpack.c.l.b16 %v614
          %v839 = vunpack.c.l.b16 %v615
          %v840 = vpack.c.b16 %v809, %v808
          %v841 = vpack.c.b16 %v811, %v810
          %v842 = vpack.c.b16 %v813, %v812
          %v843 = vpack.c.b16 %v815, %v814
          %v844 = vpack.c.b16 %v817, %v816
          %v845 = vpack.c.b16 %v819, %v818
          %v846 = vpack.c.b16 %v821, %v820
          %v847 = vpack.c.b16 %v823, %v822
          %v848 = vpack.c.b16 %v825, %v824
          %v849 = vpack.c.b16 %v827, %v826
          %v850 = vpack.c.b16 %v829, %v828
          %v851 = vpack.c.b16 %v831, %v830
          %v852 = vpack.c.b16 %v833, %v832
          %v853 = vpack.c.b16 %v835, %v834
          %v854 = vpack.c.b16 %v837, %v836
          %v855 = vpack.c.b16 %v839, %v838
          %872 = vmatprep.subr.bf16.mxu0 0
          %873 = vmatpush1.bf16.msra.mxu0 %v840
          %874 = vmatprep.subr.bf16.mxu0 0
          %875 = vmatpush1.bf16.msra.mxu0 %v841
          %876 = vmatprep.subr.bf16.mxu0 0
          %877 = vmatpush1.bf16.msra.mxu0 %v842
          %878 = vmatprep.subr.bf16.mxu0 0
          %879 = vmatpush1.bf16.msra.mxu0 %v843
          %880 = vmatprep.subr.bf16.mxu0 0
          %881 = vmatpush1.bf16.msra.mxu0 %v844
          %882 = vmatprep.subr.bf16.mxu0 0
          %883 = vmatpush1.bf16.msra.mxu0 %v845
          %884 = vmatprep.subr.bf16.mxu0 0
          %885 = vmatpush1.bf16.msra.mxu0 %v846
          %886 = vmatprep.subr.bf16.mxu0 0
          %887 = vmatpush1.bf16.msra.mxu0 %v847
          %888 = vmatprep.subr.bf16.mxu0 0
          %889 = vmatpush1.bf16.msra.mxu0 %v848
          %890 = vmatprep.subr.bf16.mxu0 0
          %891 = vmatpush1.bf16.msra.mxu0 %v849
          %892 = vmatprep.subr.bf16.mxu0 0
          %893 = vmatpush1.bf16.msra.mxu0 %v850
          %894 = vmatprep.subr.bf16.mxu0 0
          %895 = vmatpush1.bf16.msra.mxu0 %v851
          %896 = vmatprep.subr.bf16.mxu0 0
          %897 = vmatpush1.bf16.msra.mxu0 %v852
          %898 = vmatprep.subr.bf16.mxu0 0
          %899 = vmatpush1.bf16.msra.mxu0 %v853
          %900 = vmatprep.subr.bf16.mxu0 0
          %901 = vmatpush1.bf16.msra.mxu0 %v854
          %902 = vmatprep.subr.bf16.mxu0 0
          %903 = vmatpush1.bf16.msra.mxu0 %v855
          %904 = vmatprep.mubr.bf16.mxu0 %v713
          %905 = vmatmul.mubr.bf16.gmra.mrb[0].mxu0 %v712
          %v906 = vpop.f32.mrb[0].mxu0
          %v907 = vadd.f32 0.0, %v906
          %v908 = vpop.f32.mrb[0].mxu0
          %v909 = vpop.f32.mrb[0].mxu0
          %v910 = vadd.f32 0.0, %v909
          %v911 = vpop.f32.mrb[0].mxu0
          %912 = vmatprep.mubr.bf16.mxu0 %v715
          %913 = vmatmul.mubr.bf16.gmra.mrb[0].mxu0 %v714
          %v914 = vpop.f32.mrb[0].mxu0
          %v915 = vadd.f32 0.0, %v914
          %v916 = vpop.f32.mrb[0].mxu0
          %v917 = vpop.f32.mrb[0].mxu0
          %v918 = vadd.f32 0.0, %v917
          %v919 = vpop.f32.mrb[0].mxu0
          %920 = vmatprep.mubr.bf16.mxu0 %v717
          %921 = vmatmul.mubr.bf16.gmra.mrb[0].mxu0 %v716
          %v922 = vpop.f32.mrb[0].mxu0
          %v923 = vadd.f32 0.0, %v922
          %v924 = vpop.f32.mrb[0].mxu0
          %v925 = vpop.f32.mrb[0].mxu0
          %v926 = vadd.f32 0.0, %v925
          %v927 = vpop.f32.mrb[0].mxu0
          %928 = vmatprep.mubr.bf16.mxu0 %v719
          %929 = vmatmul.mubr.bf16.gmra.mrb[0].mxu0 %v718
          %v930 = vpop.f32.mrb[0].mxu0
          %v931 = vadd.f32 0.0, %v930
          %v932 = vpop.f32.mrb[0].mxu0
          %v933 = vpop.f32.mrb[0].mxu0
          %v934 = vadd.f32 0.0, %v933
          %v935 = vpop.f32.mrb[0].mxu0
          %936 = vmatprep.mubr.bf16.mxu0 %v721
          %937 = vmatmul.mubr.bf16.gmra.mrb[0].mxu0 %v720
          %v938 = vpop.f32.mrb[0].mxu0
          %v939 = vadd.f32 0.0, %v938
          %v940 = vpop.f32.mrb[0].mxu0
          %v941 = vpop.f32.mrb[0].mxu0
          %v942 = vadd.f32 0.0, %v941
          %v943 = vpop.f32.mrb[0].mxu0
          %944 = vmatprep.mubr.bf16.mxu0 %v723
          %945 = vmatmul.mubr.bf16.gmra.mrb[0].mxu0 %v722
          %v946 = vpop.f32.mrb[0].mxu0
          %v947 = vadd.f32 0.0, %v946
          %v948 = vpop.f32.mrb[0].mxu0
          %v949 = vpop.f32.mrb[0].mxu0
          %v950 = vadd.f32 0.0, %v949
          %v951 = vpop.f32.mrb[0].mxu0
          %952 = vmatprep.mubr.bf16.mxu0 %v725
          %953 = vmatmul.mubr.bf16.gmra.mrb[0].mxu0 %v724
          %v954 = vpop.f32.mrb[0].mxu0
          %v955 = vadd.f32 0.0, %v954
          %v956 = vpop.f32.mrb[0].mxu0
          %v957 = vpop.f32.mrb[0].mxu0
          %v958 = vadd.f32 0.0, %v957
          %v959 = vpop.f32.mrb[0].mxu0
          %960 = vmatprep.mubr.bf16.mxu0 %v727
          %961 = vmatmul.mubr.bf16.gmra.mrb[0].mxu0 %v726
          %v962 = vpop.f32.mrb[0].mxu0
          %v963 = vadd.f32 0.0, %v962
          %v964 = vpop.f32.mrb[0].mxu0
          %v965 = vpop.f32.mrb[0].mxu0
          %v966 = vadd.f32 0.0, %v965
          %v967 = vpop.f32.mrb[0].mxu0
          %968 = vmatprep.mubr.bf16.mxu0 %v729
          %969 = vmatmul.mubr.bf16.gmra.mrb[0].mxu0 %v728
          %v970 = vpop.f32.mrb[0].mxu0
          %v971 = vadd.f32 0.0, %v970
          %v972 = vpop.f32.mrb[0].mxu0
          %v973 = vpop.f32.mrb[0].mxu0
          %v974 = vadd.f32 0.0, %v973
          %v975 = vpop.f32.mrb[0].mxu0
          %976 = vmatprep.mubr.bf16.mxu0 %v731
          %977 = vmatmul.mubr.bf16.gmra.mrb[0].mxu0 %v730
          %v978 = vpop.f32.mrb[0].mxu0
          %v979 = vadd.f32 0.0, %v978
          %v980 = vpop.f32.mrb[0].mxu0
          %v981 = vpop.f32.mrb[0].mxu0
          %v982 = vadd.f32 0.0, %v981
          %v983 = vpop.f32.mrb[0].mxu0
          %984 = vmatprep.mubr.bf16.mxu0 %v733
          %985 = vmatmul.mubr.bf16.gmra.mrb[0].mxu0 %v732
          %v986 = vpop.f32.mrb[0].mxu0
          %v987 = vadd.f32 0.0, %v986
          %v988 = vpop.f32.mrb[0].mxu0
          %v989 = vpop.f32.mrb[0].mxu0
          %v990 = vadd.f32 0.0, %v989
          %v991 = vpop.f32.mrb[0].mxu0
          %992 = vmatprep.mubr.bf16.mxu0 %v735
          %993 = vmatmul.mubr.bf16.gmra.mrb[0].mxu0 %v734
          %v994 = vpop.f32.mrb[0].mxu0
          %v995 = vadd.f32 0.0, %v994
          %v996 = vpop.f32.mrb[0].mxu0
          %v997 = vpop.f32.mrb[0].mxu0
          %v998 = vadd.f32 0.0, %v997
          %v999 = vpop.f32.mrb[0].mxu0
          %1000 = vmatprep.mubr.bf16.mxu0 %v737
          %1001 = vmatmul.mubr.bf16.gmra.mrb[0].mxu0 %v736
          %v1002 = vpop.f32.mrb[0].mxu0
          %v1003 = vadd.f32 0.0, %v1002
          %v1004 = vpop.f32.mrb[0].mxu0
          %v1005 = vpop.f32.mrb[0].mxu0
          %v1006 = vadd.f32 0.0, %v1005
          %v1007 = vpop.f32.mrb[0].mxu0
          %1008 = vmatprep.mubr.bf16.mxu0 %v739
          %1009 = vmatmul.mubr.bf16.gmra.mrb[0].mxu0 %v738
          %v1010 = vpop.f32.mrb[0].mxu0
          %v1011 = vadd.f32 0.0, %v1010
          %v1012 = vpop.f32.mrb[0].mxu0
          %v1013 = vpop.f32.mrb[0].mxu0
          %v1014 = vadd.f32 0.0, %v1013
          %v1015 = vpop.f32.mrb[0].mxu0
          %1016 = vmatprep.mubr.bf16.mxu0 %v741
          %1017 = vmatmul.mubr.bf16.gmra.mrb[0].mxu0 %v740
          %v1018 = vpop.f32.mrb[0].mxu0
          %v1019 = vadd.f32 0.0, %v1018
          %v1020 = vpop.f32.mrb[0].mxu0
          %v1021 = vpop.f32.mrb[0].mxu0
          %v1022 = vadd.f32 0.0, %v1021
          %v1023 = vpop.f32.mrb[0].mxu0
          %1024 = vmatprep.mubr.bf16.mxu0 %v743
          %1025 = vmatmul.mubr.bf16.gmra.mrb[0].mxu0 %v742
          %v1026 = vpop.f32.mrb[0].mxu0
          %v1027 = vadd.f32 0.0, %v1026
          %v1028 = vpop.f32.mrb[0].mxu0
          %v1029 = vpop.f32.mrb[0].mxu0
          %v1030 = vadd.f32 0.0, %v1029
          %v1031 = vpop.f32.mrb[0].mxu0
          %1032 = vdwg.mxu0
          %v1033 = vadd.f32 %v520, %v907
          %v1034 = vadd.f32 %v521, %v910
          %v1035 = vadd.f32 %v522, %v915
          %v1036 = vadd.f32 %v523, %v918
          %v1037 = vadd.f32 %v524, %v923
          %v1038 = vadd.f32 %v525, %v926
          %v1039 = vadd.f32 %v526, %v931
          %v1040 = vadd.f32 %v527, %v934
          %v1041 = vadd.f32 %v528, %v939
          %v1042 = vadd.f32 %v529, %v942
          %v1043 = vadd.f32 %v530, %v947
          %v1044 = vadd.f32 %v531, %v950
          %v1045 = vadd.f32 %v532, %v955
          %v1046 = vadd.f32 %v533, %v958
          %v1047 = vadd.f32 %v534, %v963
          %v1048 = vadd.f32 %v535, %v966
          %v1049 = vadd.f32 %v536, %v971
          %v1050 = vadd.f32 %v537, %v974
          %v1051 = vadd.f32 %v538, %v979
          %v1052 = vadd.f32 %v539, %v982
          %v1053 = vadd.f32 %v540, %v987
          %v1054 = vadd.f32 %v541, %v990
          %v1055 = vadd.f32 %v542, %v995
          %v1056 = vadd.f32 %v543, %v998
          %v1057 = vadd.f32 %v544, %v1003
          %v1058 = vadd.f32 %v545, %v1006
          %v1059 = vadd.f32 %v546, %v1011
          %v1060 = vadd.f32 %v547, %v1014
          %v1061 = vadd.f32 %v548, %v1019
          %v1062 = vadd.f32 %v549, %v1022
          %v1063 = vadd.f32 %v550, %v1027
          %v1064 = vadd.f32 %v551, %v1030
          %1065 = vst [vmem:[#allocation2] sm:$0xff] %v1033
          %1066 = vst [vmem:[#allocation2 + $0x8] sm:$0xff] %v1034
          %1067 = vst [vmem:[#allocation2 + $0x10] sm:$0xff] %v1035
          %1068 = vst [vmem:[#allocation2 + $0x18] sm:$0xff] %v1036
          %1069 = vst [vmem:[#allocation2 + $0x20] sm:$0xff] %v1037
          %1070 = vst [vmem:[#allocation2 + $0x28] sm:$0xff] %v1038
          %1071 = vst [vmem:[#allocation2 + $0x30] sm:$0xff] %v1039
          %1072 = vst [vmem:[#allocation2 + $0x38] sm:$0xff] %v1040
          %1073 = vst [vmem:[#allocation2 + $0x40] sm:$0xff] %v1041
          %1074 = vst [vmem:[#allocation2 + $0x48] sm:$0xff] %v1042
          %1075 = vst [vmem:[#allocation2 + $0x50] sm:$0xff] %v1043
          %1076 = vst [vmem:[#allocation2 + $0x58] sm:$0xff] %v1044
          %1077 = vst [vmem:[#allocation2 + $0x60] sm:$0xff] %v1045
          %1078 = vst [vmem:[#allocation2 + $0x68] sm:$0xff] %v1046
          %1079 = vst [vmem:[#allocation2 + $0x70] sm:$0xff] %v1047
          %1080 = vst [vmem:[#allocation2 + $0x78] sm:$0xff] %v1048
          %1081 = vst [vmem:[#allocation2 + $0x80] sm:$0xff] %v1049
          %1082 = vst [vmem:[#allocation2 + $0x88] sm:$0xff] %v1050
          %1083 = vst [vmem:[#allocation2 + $0x90] sm:$0xff] %v1051
          %1084 = vst [vmem:[#allocation2 + $0x98] sm:$0xff] %v1052
          %1085 = vst [vmem:[#allocation2 + $0xa0] sm:$0xff] %v1053
          %1086 = vst [vmem:[#allocation2 + $0xa8] sm:$0xff] %v1054
          %1087 = vst [vmem:[#allocation2 + $0xb0] sm:$0xff] %v1055
          %1088 = vst [vmem:[#allocation2 + $0xb8] sm:$0xff] %v1056
          %1089 = vst [vmem:[#allocation2 + $0xc0] sm:$0xff] %v1057
          %1090 = vst [vmem:[#allocation2 + $0xc8] sm:$0xff] %v1058
          %1091 = vst [vmem:[#allocation2 + $0xd0] sm:$0xff] %v1059
          %1092 = vst [vmem:[#allocation2 + $0xd8] sm:$0xff] %v1060
          %1093 = vst [vmem:[#allocation2 + $0xe0] sm:$0xff] %v1061
          %1094 = vst [vmem:[#allocation2 + $0xe8] sm:$0xff] %v1062
          %1095 = vst [vmem:[#allocation2 + $0xf0] sm:$0xff] %v1063
          %1096 = vst [vmem:[#allocation2 + $0xf8] sm:$0xff] %v1064
        $region78: #{lightgcn_forward.6} parent=65 // pred_fallthru
          _
        %p1097 = scmp.eq.s32.totalorder %s36, 2
        // Predicated region
        $region79: #{lightgcn_forward.6} parent=65 // pred_check
          %p1098 = pneg %p1097
        $region80: #{lightgcn_forward.6} parent=65 // pred_check_branch
          %1100 = sbr.rel (%p1098) target = $region82
        $region81: #{lightgcn_forward.6} parent=65 // pred_region
          %v1101 = vld [vmem:[#allocation2] sm:$0xff]
          %v1102 = vld [vmem:[#allocation2 + $0x8] sm:$0xff]
          %v1103 = vld [vmem:[#allocation2 + $0x10] sm:$0xff]
          %v1104 = vld [vmem:[#allocation2 + $0x18] sm:$0xff]
          %v1105 = vld [vmem:[#allocation2 + $0x20] sm:$0xff]
          %v1106 = vld [vmem:[#allocation2 + $0x28] sm:$0xff]
          %v1107 = vld [vmem:[#allocation2 + $0x30] sm:$0xff]
          %v1108 = vld [vmem:[#allocation2 + $0x38] sm:$0xff]
          %v1109 = vld [vmem:[#allocation2 + $0x40] sm:$0xff]
          %v1110 = vld [vmem:[#allocation2 + $0x48] sm:$0xff]
          %v1111 = vld [vmem:[#allocation2 + $0x50] sm:$0xff]
          %v1112 = vld [vmem:[#allocation2 + $0x58] sm:$0xff]
          %v1113 = vld [vmem:[#allocation2 + $0x60] sm:$0xff]
          %v1114 = vld [vmem:[#allocation2 + $0x68] sm:$0xff]
          %v1115 = vld [vmem:[#allocation2 + $0x70] sm:$0xff]
          %v1116 = vld [vmem:[#allocation2 + $0x78] sm:$0xff]
          %v1117 = vld [vmem:[#allocation2 + $0x80] sm:$0xff]
          %v1118 = vld [vmem:[#allocation2 + $0x88] sm:$0xff]
          %v1119 = vld [vmem:[#allocation2 + $0x90] sm:$0xff]
          %v1120 = vld [vmem:[#allocation2 + $0x98] sm:$0xff]
          %v1121 = vld [vmem:[#allocation2 + $0xa0] sm:$0xff]
          %v1122 = vld [vmem:[#allocation2 + $0xa8] sm:$0xff]
          %v1123 = vld [vmem:[#allocation2 + $0xb0] sm:$0xff]
          %v1124 = vld [vmem:[#allocation2 + $0xb8] sm:$0xff]
          %v1125 = vld [vmem:[#allocation2 + $0xc0] sm:$0xff]
          %v1126 = vld [vmem:[#allocation2 + $0xc8] sm:$0xff]
          %v1127 = vld [vmem:[#allocation2 + $0xd0] sm:$0xff]
          %v1128 = vld [vmem:[#allocation2 + $0xd8] sm:$0xff]
          %v1129 = vld [vmem:[#allocation2 + $0xe0] sm:$0xff]
          %v1130 = vld [vmem:[#allocation2 + $0xe8] sm:$0xff]
          %v1131 = vld [vmem:[#allocation2 + $0xf0] sm:$0xff]
          %v1132 = vld [vmem:[#allocation2 + $0xf8] sm:$0xff]
          %v1133 = vpack.c.bf16 %v1102, %v1101
          %v1134 = vpack.c.bf16 %v1104, %v1103
          %v1135 = vpack.c.bf16 %v1106, %v1105
          %v1136 = vpack.c.bf16 %v1108, %v1107
          %v1137 = vpack.c.bf16 %v1110, %v1109
          %v1138 = vpack.c.bf16 %v1112, %v1111
          %v1139 = vpack.c.bf16 %v1114, %v1113
          %v1140 = vpack.c.bf16 %v1116, %v1115
          %v1141 = vpack.c.bf16 %v1118, %v1117
          %v1142 = vpack.c.bf16 %v1120, %v1119
          %v1143 = vpack.c.bf16 %v1122, %v1121
          %v1144 = vpack.c.bf16 %v1124, %v1123
          %v1145 = vpack.c.bf16 %v1126, %v1125
          %v1146 = vpack.c.bf16 %v1128, %v1127
          %v1147 = vpack.c.bf16 %v1130, %v1129
          %v1148 = vpack.c.bf16 %v1132, %v1131
          %v1165 = vunpack.c.l.b16 %v1133
          %v1166 = vunpack.c.h.b16 %v1133
          %v1167 = vunpack.c.l.b16 %v1134
          %v1168 = vunpack.c.h.b16 %v1134
          %v1169 = vunpack.c.l.b16 %v1135
          %v1170 = vunpack.c.h.b16 %v1135
          %v1171 = vunpack.c.l.b16 %v1136
          %v1172 = vunpack.c.h.b16 %v1136
          %v1173 = vunpack.c.l.b16 %v1137
          %v1174 = vunpack.c.h.b16 %v1137
          %v1175 = vunpack.c.l.b16 %v1138
          %v1176 = vunpack.c.h.b16 %v1138
          %v1177 = vunpack.c.l.b16 %v1139
          %v1178 = vunpack.c.h.b16 %v1139
          %v1179 = vunpack.c.l.b16 %v1140
          %v1180 = vunpack.c.h.b16 %v1140
          %v1181 = vunpack.c.l.b16 %v1141
          %v1182 = vunpack.c.h.b16 %v1141
          %v1183 = vunpack.c.l.b16 %v1142
          %v1184 = vunpack.c.h.b16 %v1142
          %v1185 = vunpack.c.l.b16 %v1143
          %v1186 = vunpack.c.h.b16 %v1143
          %v1187 = vunpack.c.l.b16 %v1144
          %v1188 = vunpack.c.h.b16 %v1144
          %v1189 = vunpack.c.l.b16 %v1145
          %v1190 = vunpack.c.h.b16 %v1145
          %v1191 = vunpack.c.l.b16 %v1146
          %v1192 = vunpack.c.h.b16 %v1146
          %v1193 = vunpack.c.l.b16 %v1147
          %v1194 = vunpack.c.h.b16 %v1147
          %v1195 = vunpack.c.l.b16 %v1148
          %v1196 = vunpack.c.h.b16 %v1148
          %v1197 = vpack.c.b16 %v1165, %v1165
          %v1198 = vpack.c.b16 %v1166, %v1166
          %v1199 = vpack.c.b16 %v1167, %v1167
          %v1200 = vpack.c.b16 %v1168, %v1168
          %v1201 = vpack.c.b16 %v1169, %v1169
          %v1202 = vpack.c.b16 %v1170, %v1170
          %v1203 = vpack.c.b16 %v1171, %v1171
          %v1204 = vpack.c.b16 %v1172, %v1172
          %v1205 = vpack.c.b16 %v1173, %v1173
          %v1206 = vpack.c.b16 %v1174, %v1174
          %v1207 = vpack.c.b16 %v1175, %v1175
          %v1208 = vpack.c.b16 %v1176, %v1176
          %v1209 = vpack.c.b16 %v1177, %v1177
          %v1210 = vpack.c.b16 %v1178, %v1178
          %v1211 = vpack.c.b16 %v1179, %v1179
          %v1212 = vpack.c.b16 %v1180, %v1180
          %v1213 = vpack.c.b16 %v1181, %v1181
          %v1214 = vpack.c.b16 %v1182, %v1182
          %v1215 = vpack.c.b16 %v1183, %v1183
          %v1216 = vpack.c.b16 %v1184, %v1184
          %v1217 = vpack.c.b16 %v1185, %v1185
          %v1218 = vpack.c.b16 %v1186, %v1186
          %v1219 = vpack.c.b16 %v1187, %v1187
          %v1220 = vpack.c.b16 %v1188, %v1188
          %v1221 = vpack.c.b16 %v1189, %v1189
          %v1222 = vpack.c.b16 %v1190, %v1190
          %v1223 = vpack.c.b16 %v1191, %v1191
          %v1224 = vpack.c.b16 %v1192, %v1192
          %v1225 = vpack.c.b16 %v1193, %v1193
          %v1226 = vpack.c.b16 %v1194, %v1194
          %v1227 = vpack.c.b16 %v1195, %v1195
          %v1228 = vpack.c.b16 %v1196, %v1196
          %1261 = vst [vmem:[%s440] sm:$0xf] %v1197
          %1262 = vst [vmem:[%s440 + $0x4] sm:$0xf] %v1198
          %1263 = vst [vmem:[%s440 + $0x8] sm:$0xf] %v1199
          %1264 = vst [vmem:[%s440 + $0xc] sm:$0xf] %v1200
          %1265 = vst [vmem:[%s440 + $0x10] sm:$0xf] %v1201
          %1266 = vst [vmem:[%s440 + $0x14] sm:$0xf] %v1202
          %1267 = vst [vmem:[%s440 + $0x18] sm:$0xf] %v1203
          %1268 = vst [vmem:[%s440 + $0x1c] sm:$0xf] %v1204
          %1269 = vst [vmem:[%s440 + $0x20] sm:$0xf] %v1205
          %1270 = vst [vmem:[%s440 + $0x24] sm:$0xf] %v1206
          %1271 = vst [vmem:[%s440 + $0x28] sm:$0xf] %v1207
          %1272 = vst [vmem:[%s440 + $0x2c] sm:$0xf] %v1208
          %1273 = vst [vmem:[%s440 + $0x30] sm:$0xf] %v1209
          %1274 = vst [vmem:[%s440 + $0x34] sm:$0xf] %v1210
          %1275 = vst [vmem:[%s440 + $0x38] sm:$0xf] %v1211
          %1276 = vst [vmem:[%s440 + $0x3c] sm:$0xf] %v1212
          %1277 = vst [vmem:[%s440 + $0x40] sm:$0xf] %v1213
          %1278 = vst [vmem:[%s440 + $0x44] sm:$0xf] %v1214
          %1279 = vst [vmem:[%s440 + $0x48] sm:$0xf] %v1215
          %1280 = vst [vmem:[%s440 + $0x4c] sm:$0xf] %v1216
          %1281 = vst [vmem:[%s440 + $0x50] sm:$0xf] %v1217
          %1282 = vst [vmem:[%s440 + $0x54] sm:$0xf] %v1218
          %1283 = vst [vmem:[%s440 + $0x58] sm:$0xf] %v1219
          %1284 = vst [vmem:[%s440 + $0x5c] sm:$0xf] %v1220
          %1285 = vst [vmem:[%s440 + $0x60] sm:$0xf] %v1221
          %1286 = vst [vmem:[%s440 + $0x64] sm:$0xf] %v1222
          %1287 = vst [vmem:[%s440 + $0x68] sm:$0xf] %v1223
          %1288 = vst [vmem:[%s440 + $0x6c] sm:$0xf] %v1224
          %1289 = vst [vmem:[%s440 + $0x70] sm:$0xf] %v1225
          %1290 = vst [vmem:[%s440 + $0x74] sm:$0xf] %v1226
          %1291 = vst [vmem:[%s440 + $0x78] sm:$0xf] %v1227
          %1292 = vst [vmem:[%s440 + $0x7c] sm:$0xf] %v1228
          %v1293 = vld [vmem:[%s469] sm:$0xff]
          %v1294 = vld [vmem:[%s469 + $0x8] sm:$0xff]
          %v1295 = vld [vmem:[%s469 + $0x10] sm:$0xff]
          %v1296 = vld [vmem:[%s469 + $0x18] sm:$0xff]
          %v1297 = vld [vmem:[%s469 + $0x20] sm:$0xff]
          %v1298 = vld [vmem:[%s469 + $0x28] sm:$0xff]
          %v1299 = vld [vmem:[%s469 + $0x30] sm:$0xff]
          %v1300 = vld [vmem:[%s469 + $0x38] sm:$0xff]
          %v1301 = vld [vmem:[%s469 + $0x40] sm:$0xff]
          %v1302 = vld [vmem:[%s469 + $0x48] sm:$0xff]
          %v1303 = vld [vmem:[%s469 + $0x50] sm:$0xff]
          %v1304 = vld [vmem:[%s469 + $0x58] sm:$0xff]
          %v1305 = vld [vmem:[%s469 + $0x60] sm:$0xff]
          %v1306 = vld [vmem:[%s469 + $0x68] sm:$0xff]
          %v1307 = vld [vmem:[%s469 + $0x70] sm:$0xff]
          %v1308 = vld [vmem:[%s469 + $0x78] sm:$0xff]
          %v1309 = vld [vmem:[%s469 + $0x80] sm:$0xff]
          %v1310 = vld [vmem:[%s469 + $0x88] sm:$0xff]
          %v1311 = vld [vmem:[%s469 + $0x90] sm:$0xff]
          %v1312 = vld [vmem:[%s469 + $0x98] sm:$0xff]
          %v1313 = vld [vmem:[%s469 + $0xa0] sm:$0xff]
          %v1314 = vld [vmem:[%s469 + $0xa8] sm:$0xff]
          %v1315 = vld [vmem:[%s469 + $0xb0] sm:$0xff]
          %v1316 = vld [vmem:[%s469 + $0xb8] sm:$0xff]
          %v1317 = vld [vmem:[%s469 + $0xc0] sm:$0xff]
          %v1318 = vld [vmem:[%s469 + $0xc8] sm:$0xff]
          %v1319 = vld [vmem:[%s469 + $0xd0] sm:$0xff]
          %v1320 = vld [vmem:[%s469 + $0xd8] sm:$0xff]
          %v1321 = vld [vmem:[%s469 + $0xe0] sm:$0xff]
          %v1322 = vld [vmem:[%s469 + $0xe8] sm:$0xff]
          %v1323 = vld [vmem:[%s469 + $0xf0] sm:$0xff]
          %v1324 = vld [vmem:[%s469 + $0xf8] sm:$0xff]
          %v1325 = vadd.f32 %v1293, %v1101
          %v1326 = vadd.f32 %v1294, %v1102
          %v1327 = vadd.f32 %v1295, %v1103
          %v1328 = vadd.f32 %v1296, %v1104
          %v1329 = vadd.f32 %v1297, %v1105
          %v1330 = vadd.f32 %v1298, %v1106
          %v1331 = vadd.f32 %v1299, %v1107
          %v1332 = vadd.f32 %v1300, %v1108
          %v1333 = vadd.f32 %v1301, %v1109
          %v1334 = vadd.f32 %v1302, %v1110
          %v1335 = vadd.f32 %v1303, %v1111
          %v1336 = vadd.f32 %v1304, %v1112
          %v1337 = vadd.f32 %v1305, %v1113
          %v1338 = vadd.f32 %v1306, %v1114
          %v1339 = vadd.f32 %v1307, %v1115
          %v1340 = vadd.f32 %v1308, %v1116
          %v1341 = vadd.f32 %v1309, %v1117
          %v1342 = vadd.f32 %v1310, %v1118
          %v1343 = vadd.f32 %v1311, %v1119
          %v1344 = vadd.f32 %v1312, %v1120
          %v1345 = vadd.f32 %v1313, %v1121
          %v1346 = vadd.f32 %v1314, %v1122
          %v1347 = vadd.f32 %v1315, %v1123
          %v1348 = vadd.f32 %v1316, %v1124
          %v1349 = vadd.f32 %v1317, %v1125
          %v1350 = vadd.f32 %v1318, %v1126
          %v1351 = vadd.f32 %v1319, %v1127
          %v1352 = vadd.f32 %v1320, %v1128
          %v1353 = vadd.f32 %v1321, %v1129
          %v1354 = vadd.f32 %v1322, %v1130
          %v1355 = vadd.f32 %v1323, %v1131
          %v1356 = vadd.f32 %v1324, %v1132
          %1357 = vst [vmem:[%s476] sm:$0xff] %v1325
          %1358 = vst [vmem:[%s476 + $0x8] sm:$0xff] %v1326
          %1359 = vst [vmem:[%s476 + $0x10] sm:$0xff] %v1327
          %1360 = vst [vmem:[%s476 + $0x18] sm:$0xff] %v1328
          %1361 = vst [vmem:[%s476 + $0x20] sm:$0xff] %v1329
          %1362 = vst [vmem:[%s476 + $0x28] sm:$0xff] %v1330
          %1363 = vst [vmem:[%s476 + $0x30] sm:$0xff] %v1331
          %1364 = vst [vmem:[%s476 + $0x38] sm:$0xff] %v1332
          %1365 = vst [vmem:[%s476 + $0x40] sm:$0xff] %v1333
          %1366 = vst [vmem:[%s476 + $0x48] sm:$0xff] %v1334
          %1367 = vst [vmem:[%s476 + $0x50] sm:$0xff] %v1335
          %1368 = vst [vmem:[%s476 + $0x58] sm:$0xff] %v1336
          %1369 = vst [vmem:[%s476 + $0x60] sm:$0xff] %v1337
          %1370 = vst [vmem:[%s476 + $0x68] sm:$0xff] %v1338
          %1371 = vst [vmem:[%s476 + $0x70] sm:$0xff] %v1339
          %1372 = vst [vmem:[%s476 + $0x78] sm:$0xff] %v1340
          %1373 = vst [vmem:[%s476 + $0x80] sm:$0xff] %v1341
          %1374 = vst [vmem:[%s476 + $0x88] sm:$0xff] %v1342
          %1375 = vst [vmem:[%s476 + $0x90] sm:$0xff] %v1343
          %1376 = vst [vmem:[%s476 + $0x98] sm:$0xff] %v1344
          %1377 = vst [vmem:[%s476 + $0xa0] sm:$0xff] %v1345
          %1378 = vst [vmem:[%s476 + $0xa8] sm:$0xff] %v1346
          %1379 = vst [vmem:[%s476 + $0xb0] sm:$0xff] %v1347
          %1380 = vst [vmem:[%s476 + $0xb8] sm:$0xff] %v1348
          %1381 = vst [vmem:[%s476 + $0xc0] sm:$0xff] %v1349
          %1382 = vst [vmem:[%s476 + $0xc8] sm:$0xff] %v1350
          %1383 = vst [vmem:[%s476 + $0xd0] sm:$0xff] %v1351
          %1384 = vst [vmem:[%s476 + $0xd8] sm:$0xff] %v1352
          %1385 = vst [vmem:[%s476 + $0xe0] sm:$0xff] %v1353
          %1386 = vst [vmem:[%s476 + $0xe8] sm:$0xff] %v1354
          %1387 = vst [vmem:[%s476 + $0xf0] sm:$0xff] %v1355
          %1388 = vst [vmem:[%s476 + $0xf8] sm:$0xff] %v1356
        $region82: #{lightgcn_forward.6} parent=65 // pred_fallthru
          _
        %s1389 = sand.u32 %s143, 1
        %s1390 = scalar_lea.sflag [#allocation8], %s1389
        %s1391 = sand.u32 %s143, 1
        %s1392 = smul.addr %s1391, 128
        %s1393 = scalar_lea.vmem [#allocation7], %s1392
        %s1394 = smul.u32 32, %s35
        %p1395 = scmp.lt.s32.totalorder %s1394, 95
        %s1396 = scalar_select %p1395, %s1394, 95
        %s1397 = smul.addr %s1396, 8
        %s1398 = scalar_lea.vmem %s6, %s1397
        // Predicated region
        $region83: #{lightgcn_forward.6} parent=65 // pred_check
          %p1399 = pneg %p153
        $region84: #{lightgcn_forward.6} parent=65 // pred_check_branch
          %1401 = sbr.rel (%p1399) target = $region86
        $region85: #{lightgcn_forward.6} parent=65 // pred_region
          %s1402 = smul.u32 32, %s35
          %s1404 = ssub.s32 2048, 2048
          %1405 = vsyncadd %s1390, %s1404
          %s1406 = smul.addr %s1402, 64
          %s1407 = scalar_lea.hbm %s5, %s1406
          %s1408 = sshll.u32 %s1393, 4
          %s1409 = int_to_ptr.vmem [resolvable:$true] %s1408
          %1414 = dma.vmem_to_hbm [thread:$0]  %s1409, 2048, %s1407, %s1390, 64, 64, 4
        $region86: #{lightgcn_forward.6} parent=65 // pred_fallthru
          _
        // Predicated region
        $region87: #{lightgcn_forward.6} parent=65 // pred_check
          %p1415 = pneg %p179
        $region88: #{lightgcn_forward.6} parent=65 // pred_check_branch
          %1417 = sbr.rel (%p1415) target = $region90
        $region89: #{lightgcn_forward.6} parent=65 // pred_region
          %s1418 = smul.u32 32, %s35
        $region90: #{lightgcn_forward.6} parent=65 // pred_fallthru
          _
      $region66: #{lightgcn_forward.6} parent=5 // pred_fallthru
        _
      %p1419 = scmp.le.s32.totalorder 2, %s26
      // Predicated region
      $region91: #{lightgcn_forward.6} parent=5 // pred_check
        %p1420 = pneg %p1419
      $region92: #{lightgcn_forward.6} parent=5 // pred_check_branch
        %1422 = sbr.rel (%p1420) target = $region94
      $region93: #{lightgcn_forward.6} parent=5 // pred_region
        %s1423 = ssub.s32 %s26, 2
        // Predicated region
        $region95: #{lightgcn_forward.6} parent=93 // pred_check
          %p1424 = pneg %p159
        $region96: #{lightgcn_forward.6} parent=93 // pred_check_branch
          %1426 = sbr.rel (%p1424) target = $region98
        $region97: #{lightgcn_forward.6} parent=93 // pred_region
          %s1427 = sand.u32 %s144, 1
          %s1428 = scalar_lea.sflag [#allocation8], %s1427
          %s1429 = sand.u32 %s144, 1
          %s1430 = smul.addr %s1429, 128
          %s1431 = scalar_lea.vmem [#allocation7], %s1430
          %1432 = dma.done %s1428, 2048
        $region98: #{lightgcn_forward.6} parent=93 // pred_fallthru
          _
        // Predicated region
        $region99: #{lightgcn_forward.6} parent=93 // pred_check
          %p1433 = pneg %p185
        $region100: #{lightgcn_forward.6} parent=93 // pred_check_branch
          %1435 = sbr.rel (%p1433) target = $region102
        $region101: #{lightgcn_forward.6} parent=93 // pred_region
          %s1436 = smul.u32 32, %s37
          %p1437 = scmp.lt.s32.totalorder %s1436, 95
          %s1438 = scalar_select %p1437, %s1436, 95
          %s1439 = smul.addr %s1438, 8
          %s1440 = scalar_lea.vmem %s6, %s1439
        $region102: #{lightgcn_forward.6} parent=93 // pred_fallthru
          _
      $region94: #{lightgcn_forward.6} parent=5 // pred_fallthru
        _
    $region6: #{lightgcn_forward.6} parent=1 // loop_footer
      %s30 = sadd.s32 1, %s26
    $region7: #{lightgcn_forward.6} parent=1 // loop_footer_branch
      %25 = sbr.rel target = $region3
    $region8: #{lightgcn_forward.6} parent=1 // loop_exit
      _
    %1441 = vsyncpa [#allocation8], 1
    %s1442 = scalar_lea.sflag [#allocation8], 1
    %1443 = vsyncpa %s1442, 1

// kernel: lightgcn_forward.7
$region0: #{lightgcn_forward.7}
  #allocation0 [shape = 'u32[]', space=smem, size = 0x4, offset = 0x4, fixed_abs, tag = 'smem constant byte address 0x4 - core index']
  #allocation1 [shape = 'u32[144,128]{1,0:T(1,128)}', space=vmem, size = 0x12000, scoped, tag = 'internal scratch']
  %s0 = inlined_call_operand.vmem [shape: f32[256,128], index: 0, kind: input, shape index: {}]
  %s1 = inlined_call_operand.vmem [shape: f32[256,128], index: 1, kind: input, shape index: {}]
  %s2 = inlined_call_operand.vmem [shape: f32[256,1], index: 2, kind: output, shape index: {}]
  %s3 = sld [smem:[#allocation0]]
  $region41: #{lightgcn_forward.7} parent=0
    _
  %s5 = ssub.s32 1, %s3
  %s6 = scalar_select 0, %s5, %s3
  loop: start=0, step=1, limit=4
  $region2: #{lightgcn_forward.7} parent=0 // loop_pre_header
    _
  $region3: #{lightgcn_forward.7} parent=0 // loop_header
    %s8 = sphi 0, %s12
    %p9 = scmp.ge.s32.totalorder %s8, 4
    %s18 = sphi 0, %s20
    %s21 = sphi 0, %s18
    %s22 = sphi 0, %s21
    %s38 = sphi 0, %s22
    %s44 = sphi 0, %s46
    %s47 = sphi 0, %s44
    %s48 = sphi 0, %s47
    %s64 = sphi 0, %s48
    %s70 = sphi 0, %s72
    %s73 = sphi 0, %s70
    %s74 = sphi 0, %s73
    %s90 = sphi 0, %s74
  $region4: #{lightgcn_forward.7} parent=0 // loop_header_branch
    %11 = sbr.rel (%p9) target = $region8
  $region5: #{lightgcn_forward.7} parent=0 // loop_body
    %s13 = ssub.s32 %s8, 1
    %s14 = ssub.s32 %s8, 2
    %s15 = sadd.s32 %s8, 1
    %s16 = ssub.s32 %s8, %s15
    %p17 = scmp.eq.s32.totalorder %s16, 0
    %s19 = sadd.s32 %s18, 1
    %s20 = scalar_select %p17, %s18, %s19
    %p23 = pneg %p17
    %p24 = scmp.eq.s32.totalorder %s8, 1
    %p25 = por %p23, %p24
    %p26 = scmp.ne.s32.totalorder %s18, %s21
    %p27 = scmp.eq.s32.totalorder %s8, 0
    %p28 = por %p26, %p27
    %p29 = scmp.ne.s32.totalorder %s18, %s21
    %p30 = scmp.eq.s32.totalorder %s13, 1
    %p31 = por %p29, %p30
    %p32 = scmp.ne.s32.totalorder %s21, %s22
    %p33 = scmp.eq.s32.totalorder %s13, 0
    %p34 = por %p32, %p33
    %p35 = scmp.ne.s32.totalorder %s21, %s22
    %p36 = scmp.eq.s32.totalorder %s14, 1
    %p37 = por %p35, %p36
    %p39 = scmp.ne.s32.totalorder %s22, %s38
    %p40 = scmp.eq.s32.totalorder %s14, 0
    %p41 = por %p39, %p40
    %s42 = ssub.s32 %s8, %s15
    %p43 = scmp.eq.s32.totalorder %s42, 0
    %s45 = sadd.s32 %s44, 1
    %s46 = scalar_select %p43, %s44, %s45
    %p49 = pneg %p43
    %p50 = scmp.eq.s32.totalorder %s8, 1
    %p51 = por %p49, %p50
    %p52 = scmp.ne.s32.totalorder %s44, %s47
    %p53 = scmp.eq.s32.totalorder %s8, 0
    %p54 = por %p52, %p53
    %p55 = scmp.ne.s32.totalorder %s44, %s47
    %p56 = scmp.eq.s32.totalorder %s13, 1
    %p57 = por %p55, %p56
    %p58 = scmp.ne.s32.totalorder %s47, %s48
    %p59 = scmp.eq.s32.totalorder %s13, 0
    %p60 = por %p58, %p59
    %p61 = scmp.ne.s32.totalorder %s47, %s48
    %p62 = scmp.eq.s32.totalorder %s14, 1
    %p63 = por %p61, %p62
    %p65 = scmp.ne.s32.totalorder %s48, %s64
    %p66 = scmp.eq.s32.totalorder %s14, 0
    %p67 = por %p65, %p66
    %s68 = ssub.s32 %s8, %s15
    %p69 = scmp.eq.s32.totalorder %s68, 0
    %s71 = sadd.s32 %s70, 1
    %s72 = scalar_select %p69, %s70, %s71
    %p75 = pneg %p69
    %p76 = scmp.eq.s32.totalorder %s8, 1
    %p77 = por %p75, %p76
    %p78 = scmp.ne.s32.totalorder %s70, %s73
    %p79 = scmp.eq.s32.totalorder %s8, 0
    %p80 = por %p78, %p79
    %p81 = scmp.ne.s32.totalorder %s70, %s73
    %p82 = scmp.eq.s32.totalorder %s13, 1
    %p83 = por %p81, %p82
    %p84 = scmp.ne.s32.totalorder %s73, %s74
    %p85 = scmp.eq.s32.totalorder %s13, 0
    %p86 = por %p84, %p85
    %p87 = scmp.ne.s32.totalorder %s73, %s74
    %p88 = scmp.eq.s32.totalorder %s14, 1
    %p89 = por %p87, %p88
    %p91 = scmp.ne.s32.totalorder %s74, %s90
    %p92 = scmp.eq.s32.totalorder %s14, 0
    %p93 = por %p91, %p92
    %p94 = scmp.le.s32.totalorder 1, %s8
    %p95 = scmp.lt.s32.totalorder %s8, 3
    %p96 = pnand %p94, %p95
    %p97 = pneg %p96
    // Predicated region
    $region9: #{lightgcn_forward.7} parent=5 // pred_check
      _
    $region10: #{lightgcn_forward.7} parent=5 // pred_check_branch
      %99 = sbr.rel (%p96) target = $region12
    $region11: #{lightgcn_forward.7} parent=5 // pred_region
      %s100 = ssub.s32 %s8, 1
    $region12: #{lightgcn_forward.7} parent=5 // pred_fallthru
      _
    %p101 = scmp.lt.s32.totalorder %s8, 2
    // Predicated region
    $region13: #{lightgcn_forward.7} parent=5 // pred_check
      %p102 = pneg %p101
    $region14: #{lightgcn_forward.7} parent=5 // pred_check_branch
      %104 = sbr.rel (%p102) target = $region16
    $region15: #{lightgcn_forward.7} parent=5 // pred_region
      // Predicated region
      $region17: #{lightgcn_forward.7} parent=15 // pred_check
        %p105 = pneg %p28
      $region18: #{lightgcn_forward.7} parent=15 // pred_check_branch
        %107 = sbr.rel (%p105) target = $region20
      $region19: #{lightgcn_forward.7} parent=15 // pred_region
        %s108 = smul.u32 16, %s8
        %p109 = scmp.lt.s32.totalorder %s108, 31
        %s110 = scalar_select %p109, %s108, 31
        %s111 = smul.addr %s110, 8
        %s112 = scalar_lea.vmem %s0, %s111
        %s113 = smul.u32 16, %s8
      $region20: #{lightgcn_forward.7} parent=15 // pred_fallthru
        _
      // Predicated region
      $region21: #{lightgcn_forward.7} parent=15 // pred_check
        %p114 = pneg %p54
      $region22: #{lightgcn_forward.7} parent=15 // pred_check_branch
        %116 = sbr.rel (%p114) target = $region24
      $region23: #{lightgcn_forward.7} parent=15 // pred_region
        %s117 = smul.u32 16, %s8
        %p118 = scmp.lt.s32.totalorder %s117, 31
        %s119 = scalar_select %p118, %s117, 31
        %s120 = smul.addr %s119, 8
        %s121 = scalar_lea.vmem %s1, %s120
        %s122 = smul.u32 16, %s8
      $region24: #{lightgcn_forward.7} parent=15 // pred_fallthru
        _
    $region16: #{lightgcn_forward.7} parent=5 // pred_fallthru
      _
    %p123 = scmp.le.s32.totalorder 1, %s8
    %p124 = scmp.lt.s32.totalorder %s8, 3
    %p125 = pnand %p123, %p124
    %p126 = pneg %p125
    // Predicated region
    $region25: #{lightgcn_forward.7} parent=5 // pred_check
      _
    $region26: #{lightgcn_forward.7} parent=5 // pred_check_branch
      %128 = sbr.rel (%p125) target = $region28
    $region27: #{lightgcn_forward.7} parent=5 // pred_region
      %s129 = ssub.s32 %s8, 1
      %s130 = smul.u32 16, %s13
      %p131 = scmp.lt.s32.totalorder %s130, 31
      %s132 = scalar_select %p131, %s130, 31
      %s133 = smul.addr %s132, 8
      %s134 = scalar_lea.vmem %s0, %s133
      %p135 = pneg %p34
      %p136 = pneg %p31
      %s137 = smul.u32 16, %s13
      %p138 = scmp.lt.s32.totalorder %s137, 31
      %s139 = scalar_select %p138, %s137, 31
      %s140 = smul.addr %s139, 8
      %s141 = scalar_lea.vmem %s1, %s140
      %p142 = pneg %p60
      %p143 = pneg %p57
      %p144 = pneg %p86
      %p145 = pneg %p83
      %s146 = smul.u32 16, %s13
      %p147 = scmp.lt.s32.totalorder %s146, 31
      %s148 = scalar_select %p147, %s146, 31
      %s149 = smul.addr %s148, 8
      %s150 = scalar_lea.vmem %s2, %s149
      %s151 = smul.u32 16, %s13
      %p152 = scmp.lt.s32.totalorder %s151, 31
      %s153 = scalar_select %p152, %s151, 31
      %s154 = smul.addr %s153, 8
      %s155 = scalar_lea.vmem %s0, %s154
      %s156 = smul.u32 16, %s13
      %s157 = smul.u32 16, %s13
      %p158 = scmp.lt.s32.totalorder %s157, 31
      %s159 = scalar_select %p158, %s157, 31
      %s160 = smul.addr %s159, 8
      %s161 = scalar_lea.vmem %s1, %s160
      %s162 = smul.u32 16, %s13
      %s163 = smul.u32 16, %s13
      %p164 = scmp.lt.s32.totalorder %s163, 31
      %s165 = scalar_select %p164, %s163, 31
      %s166 = smul.addr %s165, 8
      %s167 = scalar_lea.vmem %s2, %s166
      %s168 = smul.u32 16, %s13
      %v169 = vld [vmem:[%s155] sm:$0xff]
      %v170 = vld [vmem:[%s155 + $0x8] sm:$0xff]
      %v171 = vld [vmem:[%s155 + $0x10] sm:$0xff]
      %v172 = vld [vmem:[%s155 + $0x18] sm:$0xff]
      %v173 = vld [vmem:[%s155 + $0x20] sm:$0xff]
      %v174 = vld [vmem:[%s155 + $0x28] sm:$0xff]
      %v175 = vld [vmem:[%s155 + $0x30] sm:$0xff]
      %v176 = vld [vmem:[%s155 + $0x38] sm:$0xff]
      %v177 = vld [vmem:[%s155 + $0x40] sm:$0xff]
      %v178 = vld [vmem:[%s155 + $0x48] sm:$0xff]
      %v179 = vld [vmem:[%s155 + $0x50] sm:$0xff]
      %v180 = vld [vmem:[%s155 + $0x58] sm:$0xff]
      %v181 = vld [vmem:[%s155 + $0x60] sm:$0xff]
      %v182 = vld [vmem:[%s155 + $0x68] sm:$0xff]
      %v183 = vld [vmem:[%s155 + $0x70] sm:$0xff]
      %v184 = vld [vmem:[%s155 + $0x78] sm:$0xff]
      %v185 = vld [vmem:[%s161] sm:$0xff]
      %v186 = vld [vmem:[%s161 + $0x8] sm:$0xff]
      %v187 = vld [vmem:[%s161 + $0x10] sm:$0xff]
      %v188 = vld [vmem:[%s161 + $0x18] sm:$0xff]
      %v189 = vld [vmem:[%s161 + $0x20] sm:$0xff]
      %v190 = vld [vmem:[%s161 + $0x28] sm:$0xff]
      %v191 = vld [vmem:[%s161 + $0x30] sm:$0xff]
      %v192 = vld [vmem:[%s161 + $0x38] sm:$0xff]
      %v193 = vld [vmem:[%s161 + $0x40] sm:$0xff]
      %v194 = vld [vmem:[%s161 + $0x48] sm:$0xff]
      %v195 = vld [vmem:[%s161 + $0x50] sm:$0xff]
      %v196 = vld [vmem:[%s161 + $0x58] sm:$0xff]
      %v197 = vld [vmem:[%s161 + $0x60] sm:$0xff]
      %v198 = vld [vmem:[%s161 + $0x68] sm:$0xff]
      %v199 = vld [vmem:[%s161 + $0x70] sm:$0xff]
      %v200 = vld [vmem:[%s161 + $0x78] sm:$0xff]
      %v201 = vmul.f32 %v169, %v185
      %v202 = vmul.f32 %v170, %v186
      %v203 = vmul.f32 %v171, %v187
      %v204 = vmul.f32 %v172, %v188
      %v205 = vmul.f32 %v173, %v189
      %v206 = vmul.f32 %v174, %v190
      %v207 = vmul.f32 %v175, %v191
      %v208 = vmul.f32 %v176, %v192
      %v209 = vmul.f32 %v177, %v193
      %v210 = vmul.f32 %v178, %v194
      %v211 = vmul.f32 %v179, %v195
      %v212 = vmul.f32 %v180, %v196
      %v213 = vmul.f32 %v181, %v197
      %v214 = vmul.f32 %v182, %v198
      %v215 = vmul.f32 %v183, %v199
      %v216 = vmul.f32 %v184, %v200
      %217 = vadd.xlane.f32.xlu0 %v201
      %v218 = vpop.xlane.xlu0 %217
      %219 = vadd.xlane.f32.xlu0 %v202
      %v220 = vpop.xlane.xlu0 %219
      %221 = vadd.xlane.f32.xlu0 %v203
      %v222 = vpop.xlane.xlu0 %221
      %223 = vadd.xlane.f32.xlu0 %v204
      %v224 = vpop.xlane.xlu0 %223
      %225 = vadd.xlane.f32.xlu0 %v205
      %v226 = vpop.xlane.xlu0 %225
      %227 = vadd.xlane.f32.xlu0 %v206
      %v228 = vpop.xlane.xlu0 %227
      %229 = vadd.xlane.f32.xlu0 %v207
      %v230 = vpop.xlane.xlu0 %229
      %231 = vadd.xlane.f32.xlu0 %v208
      %v232 = vpop.xlane.xlu0 %231
      %233 = vadd.xlane.f32.xlu0 %v209
      %v234 = vpop.xlane.xlu0 %233
      %235 = vadd.xlane.f32.xlu0 %v210
      %v236 = vpop.xlane.xlu0 %235
      %237 = vadd.xlane.f32.xlu0 %v211
      %v238 = vpop.xlane.xlu0 %237
      %239 = vadd.xlane.f32.xlu0 %v212
      %v240 = vpop.xlane.xlu0 %239
      %241 = vadd.xlane.f32.xlu0 %v213
      %v242 = vpop.xlane.xlu0 %241
      %243 = vadd.xlane.f32.xlu0 %v214
      %v244 = vpop.xlane.xlu0 %243
      %245 = vadd.xlane.f32.xlu0 %v215
      %v246 = vpop.xlane.xlu0 %245
      %247 = vadd.xlane.f32.xlu0 %v216
      %v248 = vpop.xlane.xlu0 %247
      %vm249 = vcmask 7168
      %250 = vst.msk [vmem:[%s167] sm:$0xff] %vm249, %v218
      %251 = vst.msk [vmem:[%s167 + $0x8] sm:$0xff] %vm249, %v220
      %252 = vst.msk [vmem:[%s167 + $0x10] sm:$0xff] %vm249, %v222
      %253 = vst.msk [vmem:[%s167 + $0x18] sm:$0xff] %vm249, %v224
      %254 = vst.msk [vmem:[%s167 + $0x20] sm:$0xff] %vm249, %v226
      %255 = vst.msk [vmem:[%s167 + $0x28] sm:$0xff] %vm249, %v228
      %256 = vst.msk [vmem:[%s167 + $0x30] sm:$0xff] %vm249, %v230
      %257 = vst.msk [vmem:[%s167 + $0x38] sm:$0xff] %vm249, %v232
      %258 = vst.msk [vmem:[%s167 + $0x40] sm:$0xff] %vm249, %v234
      %259 = vst.msk [vmem:[%s167 + $0x48] sm:$0xff] %vm249, %v236
      %260 = vst.msk [vmem:[%s167 + $0x50] sm:$0xff] %vm249, %v238
      %261 = vst.msk [vmem:[%s167 + $0x58] sm:$0xff] %vm249, %v240
      %262 = vst.msk [vmem:[%s167 + $0x60] sm:$0xff] %vm249, %v242
      %263 = vst.msk [vmem:[%s167 + $0x68] sm:$0xff] %vm249, %v244
      %264 = vst.msk [vmem:[%s167 + $0x70] sm:$0xff] %vm249, %v246
      %265 = vst.msk [vmem:[%s167 + $0x78] sm:$0xff] %vm249, %v248
      %s266 = smul.u32 16, %s13
      %p267 = scmp.lt.s32.totalorder %s266, 31
      %s268 = scalar_select %p267, %s266, 31
      %s269 = smul.addr %s268, 8
      %s270 = scalar_lea.vmem %s2, %s269
      // Predicated region
      $region29: #{lightgcn_forward.7} parent=27 // pred_check
        %p271 = pneg %p83
      $region30: #{lightgcn_forward.7} parent=27 // pred_check_branch
        %273 = sbr.rel (%p271) target = $region32
      $region31: #{lightgcn_forward.7} parent=27 // pred_region
        %s274 = smul.u32 16, %s13
      $region32: #{lightgcn_forward.7} parent=27 // pred_fallthru
        _
    $region28: #{lightgcn_forward.7} parent=5 // pred_fallthru
      _
    %p275 = scmp.le.s32.totalorder 2, %s8
    // Predicated region
    $region33: #{lightgcn_forward.7} parent=5 // pred_check
      %p276 = pneg %p275
    $region34: #{lightgcn_forward.7} parent=5 // pred_check_branch
      %278 = sbr.rel (%p276) target = $region36
    $region35: #{lightgcn_forward.7} parent=5 // pred_region
      %s279 = ssub.s32 %s8, 2
      // Predicated region
      $region37: #{lightgcn_forward.7} parent=35 // pred_check
        %p280 = pneg %p89
      $region38: #{lightgcn_forward.7} parent=35 // pred_check_branch
        %282 = sbr.rel (%p280) target = $region40
      $region39: #{lightgcn_forward.7} parent=35 // pred_region
        %s283 = smul.u32 16, %s14
        %p284 = scmp.lt.s32.totalorder %s283, 31
        %s285 = scalar_select %p284, %s283, 31
        %s286 = smul.addr %s285, 8
        %s287 = scalar_lea.vmem %s2, %s286
      $region40: #{lightgcn_forward.7} parent=35 // pred_fallthru
        _
    $region36: #{lightgcn_forward.7} parent=5 // pred_fallthru
      _
  $region6: #{lightgcn_forward.7} parent=0 // loop_footer
    %s12 = sadd.s32 1, %s8
  $region7: #{lightgcn_forward.7} parent=0 // loop_footer_branch
    %7 = sbr.rel target = $region3
  $region8: #{lightgcn_forward.7} parent=0 // loop_exit
    _

</llo_original>
